<compile_context>
chip_gen: v6e
topology: v6e:2x2x1
jax: 0.10.0
libtpu: 0.0.40
codegen_flags: <defaults>
</compile_context>

<pallas_src>
import jax
import jax.numpy as jnp
from jax.experimental import pallas as pl
from jax.experimental.pallas import tpu as pltpu

EPS = 1e-5                      # nn.BatchNorm3d default eps
VMEM_LIMIT = 48 * 1024 * 1024   # scoped-VMEM cap: safe on v7x (64 MiB phys), ample on v5e/v6e
MXU_BF16 = True                 # bf16 MXU operands, f32 accumulation
STATS_LANES = 128               # per-channel stats padded to a full lane register


# ---------------------------------------------------------------------------
# Pallas kernels
# ---------------------------------------------------------------------------
def _conv_body(x, w_ref, e_ref, o_ref, st_ref):
    """Shared conv core for one batch sample.

    x      : (D, H*W*Cin) f32 value (already BN1-affine+ReLU'd for conv2)
    w_ref  : (3, H*W*Cin, H*W*Cout) 2-D block-Toeplitz weights (index = kd),
             'same' spatial zero-padding baked in; bf16 when MXU_BF16
    e_ref  : (H*W*Cout, STATS_LANES) channel-collapse matrix (lane-padded identity)
    o_ref  : (D, H*W*Cout) raw (pre-BN) conv output, f32
    st_ref : (2, STATS_LANES) per-sample [sum, sum-of-squares] of this sample's outputs
    """
    Dd, K = x.shape
    # Depth halo built in-register: row d of x_m1 / x_p1 is x[d-1] / x[d+1], zero at edges.
    z = jnp.zeros((1, K), jnp.float32)
    x_m1 = jnp.concatenate([z, x[:Dd - 1, :]], axis=0)
    x_p1 = jnp.concatenate([x[1:, :], z], axis=0)
    cdt = jnp.bfloat16 if MXU_BF16 else jnp.float32
    acc = jnp.dot(x_m1.astype(cdt), w_ref[0], preferred_element_type=jnp.float32)
    acc += jnp.dot(x.astype(cdt), w_ref[1], preferred_element_type=jnp.float32)
    acc += jnp.dot(x_p1.astype(cdt), w_ref[2], preferred_element_type=jnp.float32)
    # NOTE: conv bias omitted on purpose — a per-channel constant cancels in train-mode BN.
    o_ref[...] = acc
    e = e_ref[...]
    s = jnp.dot(jnp.sum(acc, axis=0, keepdims=True), e,
                preferred_element_type=jnp.float32)             # (1, STATS_LANES)
    ss = jnp.dot(jnp.sum(acc * acc, axis=0, keepdims=True), e,
                 preferred_element_type=jnp.float32)            # (1, STATS_LANES)
    st_ref[...] = jnp.concatenate([s, ss], axis=0)              # (2, STATS_LANES)


def _conv_kernel(x_ref, w_ref, e_ref, o_ref, st_ref):
    _conv_body(x_ref[...], w_ref, e_ref, o_ref, st_ref)


def _bn_relu_conv_kernel(y_ref, sc_ref, sh_ref, w_ref, e_ref, o_ref, st_ref):
    # BN1 affine + ReLU fused into conv2's input path (rides free in the VPU slot).
    x = jnp.maximum(y_ref[...] * sc_ref[...] + sh_ref[...], 0.0)
    _conv_body(x, w_ref, e_ref, o_ref, st_ref)


def _bn_add_relu_kernel(y_ref, sc_ref, sh_ref, r_ref, o_ref):
    # relu(y*scale + shift + residual) — BN folded into a single FMA per element.
    o_ref[...] = jnp.maximum(y_ref[...] * sc_ref[...] + sh_ref[...] + r_ref[...], 0.0)


# ---------------------------------------------------------------------------
# Weight preparation / pallas_call wrappers
# ---------------------------------------------------------------------------
def _toeplitz2d_weights(wt, H, W):
    """(Cout, Cin, 3, 3, 3) torch weights -> (3, H*W*Cin, H*W*Cout) 2-D block-Toeplitz.

    'Same' zero-padding over (H, W) is baked in, so the kernel needs no spatial pad.
    """
    c_out, c_in = wt.shape[0], wt.shape[1]
    k = jnp.arange(3)
    hh = jnp.arange(H)
    ww = jnp.arange(W)
    sel_h = (hh[None, :, None] == hh[None, None, :] + k[:, None, None] - 1).astype(wt.dtype)
    sel_w = (ww[None, :, None] == ww[None, None, :] + k[:, None, None] - 1).astype(wt.dtype)
    # (kd, h_in, w_in, c_in, h_out, w_out, c_out)
    wb = jnp.einsum("oidhw,hpq,wrs->dpriqso", wt, sel_h, sel_w)
    return wb.reshape(3, H * W * c_in, H * W * c_out)


def _conv3d(x3d, w_toep, e_col, bn_scale=None, bn_shift=None):
    """3x3x3 conv (padding=1, stride=1) on a (N, D, H*W*Cin) slab.

    Returns raw (pre-BN) output (N, D, H*W*Cout) and per-sample BN stats
    (N, 2, STATS_LANES).  If bn_scale/bn_shift are given, relu(x*scale + shift)
    is applied to the loaded input inside the kernel (fused BN1+ReLU path).
    """
    Nb, D, K = x3d.shape
    L = w_toep.shape[2]
    x_spec = pl.BlockSpec((None, D, K), lambda n: (n, 0, 0))
    w_spec = pl.BlockSpec(w_toep.shape, lambda n: (0, 0, 0))
    e_spec = pl.BlockSpec(e_col.shape, lambda n: (0, 0))
    vec_spec = pl.BlockSpec((1, K), lambda n: (0, 0))
    out_specs = (pl.BlockSpec((None, D, L), lambda n: (n, 0, 0)),
                 pl.BlockSpec((None, 2, STATS_LANES), lambda n: (n, 0, 0)))
    out_shape = (jax.ShapeDtypeStruct((Nb, D, L), jnp.float32),
                 jax.ShapeDtypeStruct((Nb, 2, STATS_LANES), jnp.float32))
    cp = pltpu.CompilerParams(dimension_semantics=("parallel",),
                              vmem_limit_bytes=VMEM_LIMIT)
    if bn_scale is None:
        return pl.pallas_call(
            _conv_kernel, grid=(Nb,),
            in_specs=[x_spec, w_spec, e_spec],
            out_specs=out_specs, out_shape=out_shape,
            compiler_params=cp,
        )(x3d, w_toep, e_col)
    return pl.pallas_call(
        _bn_relu_conv_kernel, grid=(Nb,),
        in_specs=[x_spec, vec_spec, vec_spec, w_spec, e_spec],
        out_specs=out_specs, out_shape=out_shape,
        compiler_params=cp,
    )(x3d, bn_scale, bn_shift, w_toep, e_col)


def _bn_affine(stats, m, gamma, beta):
    """Finalize train-mode BN: per-channel scale/shift from accumulated sum/sumsq."""
    c = gamma.shape[0]
    s = jnp.sum(stats, axis=0)                       # (2, STATS_LANES)
    mean = s[0, :c] / m
    var = jnp.maximum(s[1, :c] / m - mean * mean, 0.0)   # biased variance (f32)
    scale = gamma * jax.lax.rsqrt(var + EPS)
    shift = beta - mean * scale
    return scale, shift


def _row_tile(rows, lanes):
    budget = max((4 * 1024 * 1024) // (4 * lanes), 8)    # ~4 MiB per stream per buffer
    for t in (1024, 512, 256, 128, 64, 32, 16, 8):
        if t <= budget and rows % t == 0 and rows // t >= 2:
            return t
    return rows


def _bn_add_relu(y2d, scale_l, shift_l, residual):
    """Tiled, lane-dense bn2-affine + residual-add + ReLU over (rows, H*W*C)."""
    R, L = y2d.shape
    TR = _row_tile(R, L)
    row_spec = pl.BlockSpec((TR, L), lambda i: (i, 0))
    vec_spec = pl.BlockSpec((1, L), lambda i: (0, 0))
    cp = pltpu.CompilerParams(dimension_semantics=("parallel",),
                              vmem_limit_bytes=VMEM_LIMIT)
    return pl.pallas_call(
        _bn_add_relu_kernel, grid=(R // TR,),
        in_specs=[row_spec, vec_spec, vec_spec, row_spec],
        out_specs=row_spec,
        out_shape=jax.ShapeDtypeStruct((R, L), jnp.float32),
        compiler_params=cp,
    )(y2d, scale_l, shift_l, residual)


# ---------------------------------------------------------------------------
# Residual.forward
# ---------------------------------------------------------------------------
def residual_forward(X, params):
    N, Cin, D, H, W = X.shape
    Cout = params["w1"].shape[0]
    assert Cin == Cout, "identity shortcut requires input_channels == num_channels"
    M = N * D * H * W
    L = H * W * Cout

    # NCDHW -> NDHWC, fused to lane-dense (N, D, H*W*C) slabs (H*W*C = 256 here).
    x = jnp.transpose(X, (0, 2, 3, 4, 1)).reshape(N, D, H * W * Cin)

    wdt = jnp.bfloat16 if MXU_BF16 else jnp.float32
    w1t = _toeplitz2d_weights(params["w1"], H, W).astype(wdt)
    w2t = _toeplitz2d_weights(params["w2"], H, W).astype(wdt)
    e_col = (jnp.arange(L)[:, None] % Cout ==
             jnp.arange(STATS_LANES)[None, :]).astype(jnp.float32)

    # Y = conv1(X) raw output + per-sample BN sums (bias dropped: cancels in train-mode BN).
    y1, st1 = _conv3d(x, w1t, e_col)
    sc1, sh1 = _bn_affine(st1, M, params["gamma1"], params["beta1"])

    # Y = conv2(relu(bn1(Y))) with BN1-affine+ReLU fused into conv2's input path.
    y2, st2 = _conv3d(y1, w2t, e_col,
                      bn_scale=jnp.tile(sc1, H * W).reshape(1, L),
                      bn_shift=jnp.tile(sh1, H * W).reshape(1, L))
    sc2, sh2 = _bn_affine(st2, M, params["gamma2"], params["beta2"])

    # out = relu(bn2(Y) + X)
    out = _bn_add_relu(y2.reshape(N * D, L),
                       jnp.tile(sc2, H * W).reshape(1, L),
                       jnp.tile(sh2, H * W).reshape(1, L),
                       x.reshape(N * D, L))
    return jnp.transpose(out.reshape(N, D, H, W, Cout), (0, 4, 1, 2, 3))


# ---------------------------------------------------------------------------
# Deterministic parameter init (PyTorch-style uniform bounds)
# ---------------------------------------------------------------------------
def init_params(key, c_in, c_out):
    ks = jax.random.split(key, 4)
    bound1 = 1.0 / (c_in * 27) ** 0.5
    bound2 = 1.0 / (c_out * 27) ** 0.5
    return dict(
        w1=jax.random.uniform(ks[0], (c_out, c_in, 3, 3, 3), jnp.float32, -bound1, bound1),
        b1=jax.random.uniform(ks[1], (c_out,), jnp.float32, -bound1, bound1),
        gamma1=jnp.ones((c_out,), jnp.float32),
        beta1=jnp.zeros((c_out,), jnp.float32),
        w2=jax.random.uniform(ks[2], (c_out, c_out, 3, 3, 3), jnp.float32, -bound2, bound2),
        b2=jax.random.uniform(ks[3], (c_out,), jnp.float32, -bound2, bound2),
        gamma2=jnp.ones((c_out,), jnp.float32),
        beta2=jnp.zeros((c_out,), jnp.float32),
    )


# ---------------------------------------------------------------------------
# Pure-JAX reference (with conv bias — its exact cancellation in BN is verified here)
# ---------------------------------------------------------------------------
def _reference(X, params):
    def conv3d(x, w, b):
        out = jax.lax.conv_general_dilated(
            x, w, window_strides=(1, 1, 1),
            padding=((1, 1), (1, 1), (1, 1)),
            dimension_numbers=("NCDHW", "OIDHW", "NCDHW"),
            precision=jax.lax.Precision.HIGHEST)
        return out + b[None, :, None, None, None]

    def bn(y, g, be):
        mean = jnp.mean(y, axis=(0, 2, 3, 4), keepdims=True)
        var = jnp.mean((y - mean) ** 2, axis=(0, 2, 3, 4), keepdims=True)
        yh = (y - mean) * jax.lax.rsqrt(var + EPS)
        return yh * g[None, :, None, None, None] + be[None, :, None, None, None]

    Y = jax.nn.relu(bn(conv3d(X, params["w1"], params["b1"]), params["gamma1"], params["beta1"]))
    Y = bn(conv3d(Y, params["w2"], params["b2"]), params["gamma2"], params["beta2"])
    return jax.nn.relu(Y + X)


if __name__ == "__main__":
    key = jax.random.PRNGKey(0)
    kx, kp = jax.random.split(key)

    # Residual(input_channels=4, num_channels=4, use_1x1conv=False, strides=1)
    N, C, D, H, W = 2, 4, 8, 8, 8
    X = jax.random.normal(kx, (N, C, D, H, W), jnp.float32)
    params = init_params(kp, C, C)

    fwd = jax.jit(residual_forward)
    out = jax.block_until_ready(fwd(X, params))
    ref = jax.block_until_ready(_reference(X, params))

    assert out.shape == X.shape and out.dtype == X.dtype
    # bf16 MXU operands loosen agreement with the pure-f32 reference (f32 accumulation kept).
    tol = 3e-2 if MXU_BF16 else 5e-3
    max_err = float(jnp.max(jnp.abs(out - ref)))
    if max_err > tol:
        raise AssertionError(f"Pallas result mismatch vs reference: max abs err = {max_err}")
    print("KERNEL_OK")
</pallas_src>

<mosaic_0001>
module attributes {stable_mosaic.version = 11 : i64} {
  func.func @_conv_kernel(%arg0: i32, %arg1: memref<1x8x256xf32, #tpu.memory_space<vmem>>, %arg2: memref<3x256x256xbf16, #tpu.memory_space<vmem>>, %arg3: memref<256x128xf32, #tpu.memory_space<vmem>>, %arg4: memref<1x8x256xf32, #tpu.memory_space<vmem>>, %arg5: memref<1x2x128xf32, #tpu.memory_space<vmem>>) attributes {dimension_semantics = [#tpu.dimension_semantics<parallel>], iteration_bounds = array<i64: 2>, scalar_prefetch = 0 : i64, scratch_operands = 0 : i64, tpu.core_type = #tpu.core_type<tc>, window_params = [{transform_indices = @transform_0, window_bounds = array<i64: 1, 8, 256>}, {pipeline_mode = #tpu.pipeline_mode<synchronous>, transform_indices = @transform_1, window_bounds = array<i64: 3, 256, 256>}, {pipeline_mode = #tpu.pipeline_mode<synchronous>, transform_indices = @transform_2, window_bounds = array<i64: 256, 128>}, {transform_indices = @transform_3, window_bounds = array<i64: 1, 8, 256>}, {transform_indices = @transform_4, window_bounds = array<i64: 1, 2, 128>}]} {
    %c0 = arith.constant 0 : index
    %c0_0 = arith.constant 0 : index
    %c0_1 = arith.constant 0 : index
    %0 = vector.load %arg1[%c0, %c0_0, %c0_1] : memref<1x8x256xf32, #tpu.memory_space<vmem>>, vector<1x8x256xf32>
    %1 = vector.shape_cast %0 : vector<1x8x256xf32> to vector<8x256xf32>
    %cst = arith.constant 0.000000e+00 : f32
    %2 = vector.broadcast %cst : f32 to vector<1x256xf32>
    %3 = vector.extract_strided_slice %1 {offsets = [0, 0], sizes = [7, 256], strides = [1, 1]} : vector<8x256xf32> to vector<7x256xf32>
    %4 = tpu.concatenate %2, %3 in 0 : vector<1x256xf32>, vector<7x256xf32> -> vector<8x256xf32>
    %5 = vector.extract_strided_slice %1 {offsets = [1, 0], sizes = [7, 256], strides = [1, 1]} : vector<8x256xf32> to vector<7x256xf32>
    %6 = tpu.concatenate %5, %2 in 0 : vector<7x256xf32>, vector<1x256xf32> -> vector<8x256xf32>
    %7 = arith.truncf %4 : vector<8x256xf32> to vector<8x256xbf16>
    %c0_2 = arith.constant 0 : index
    %c0_3 = arith.constant 0 : index
    %c0_4 = arith.constant 0 : index
    %8 = vector.load %arg2[%c0_2, %c0_3, %c0_4] : memref<3x256x256xbf16, #tpu.memory_space<vmem>>, vector<1x256x256xbf16>
    %9 = vector.shape_cast %8 : vector<1x256x256xbf16> to vector<256x256xbf16>
    %cst_5 = arith.constant dense<0.000000e+00> : vector<8x256xf32>
    %10 = tpu.matmul %7, %9, %cst_5 {dimension_numbers = #tpu.dot_dimension_numbers<[1], [0], [0], [1], [0, 0, 1, 1], [], []>} : vector<8x256xbf16>, vector<256x256xbf16>, vector<8x256xf32> -> vector<8x256xf32>
    %11 = arith.truncf %1 : vector<8x256xf32> to vector<8x256xbf16>
    %c1 = arith.constant 1 : index
    %c0_6 = arith.constant 0 : index
    %c0_7 = arith.constant 0 : index
    %12 = vector.load %arg2[%c1, %c0_6, %c0_7] : memref<3x256x256xbf16, #tpu.memory_space<vmem>>, vector<1x256x256xbf16>
    %13 = vector.shape_cast %12 : vector<1x256x256xbf16> to vector<256x256xbf16>
    %cst_8 = arith.constant dense<0.000000e+00> : vector<8x256xf32>
    %14 = tpu.matmul %11, %13, %cst_8 {dimension_numbers = #tpu.dot_dimension_numbers<[1], [0], [0], [1], [0, 0, 1, 1], [], []>} : vector<8x256xbf16>, vector<256x256xbf16>, vector<8x256xf32> -> vector<8x256xf32>
    %15 = arith.addf %10, %14 : vector<8x256xf32>
    %16 = arith.truncf %6 : vector<8x256xf32> to vector<8x256xbf16>
    %c2 = arith.constant 2 : index
    %c0_9 = arith.constant 0 : index
    %c0_10 = arith.constant 0 : index
    %17 = vector.load %arg2[%c2, %c0_9, %c0_10] : memref<3x256x256xbf16, #tpu.memory_space<vmem>>, vector<1x256x256xbf16>
    %18 = vector.shape_cast %17 : vector<1x256x256xbf16> to vector<256x256xbf16>
    %cst_11 = arith.constant dense<0.000000e+00> : vector<8x256xf32>
    %19 = tpu.matmul %16, %18, %cst_11 {dimension_numbers = #tpu.dot_dimension_numbers<[1], [0], [0], [1], [0, 0, 1, 1], [], []>} : vector<8x256xbf16>, vector<256x256xbf16>, vector<8x256xf32> -> vector<8x256xf32>
    %20 = arith.addf %15, %19 : vector<8x256xf32>
    %c0_12 = arith.constant 0 : index
    %c0_13 = arith.constant 0 : index
    %c0_14 = arith.constant 0 : index
    %21 = vector.load %arg4[%c0_12, %c0_13, %c0_14] : memref<1x8x256xf32, #tpu.memory_space<vmem>>, vector<1x8x256xf32>
    %22 = vector.shape_cast %21 : vector<1x8x256xf32> to vector<8x256xf32>
    %23 = vector.shape_cast %20 : vector<8x256xf32> to vector<1x8x256xf32>
    tpu.vector_store %arg4[%c0_12, %c0_13, %c0_14], %23 {strides = array<i32>} : memref<1x8x256xf32, #tpu.memory_space<vmem>>, vector<1x8x256xf32>,
    %c0_15 = arith.constant 0 : index
    %c0_16 = arith.constant 0 : index
    %24 = vector.load %arg3[%c0_15, %c0_16] : memref<256x128xf32, #tpu.memory_space<vmem>>, vector<256x128xf32>
    %cst_17 = arith.constant dense<0.000000e+00> : vector<256xf32>
    %25 = vector.multi_reduction <add>, %20, %cst_17 [0] : vector<8x256xf32> to vector<256xf32>
    %26 = vector.shape_cast %25 : vector<256xf32> to vector<1x256xf32>
    %cst_18 = arith.constant dense<0.000000e+00> : vector<1x128xf32>
    %27 = tpu.matmul %26, %24, %cst_18 {dimension_numbers = #tpu.dot_dimension_numbers<[1], [0], [0], [1], [0, 0, 1, 1], [], []>} : vector<1x256xf32>, vector<256x128xf32>, vector<1x128xf32> -> vector<1x128xf32>
    %28 = arith.mulf %20, %20 : vector<8x256xf32>
    %cst_19 = arith.constant dense<0.000000e+00> : vector<256xf32>
    %29 = vector.multi_reduction <add>, %28, %cst_19 [0] : vector<8x256xf32> to vector<256xf32>
    %30 = vector.shape_cast %29 : vector<256xf32> to vector<1x256xf32>
    %cst_20 = arith.constant dense<0.000000e+00> : vector<1x128xf32>
    %31 = tpu.matmul %30, %24, %cst_20 {dimension_numbers = #tpu.dot_dimension_numbers<[1], [0], [0], [1], [0, 0, 1, 1], [], []>} : vector<1x256xf32>, vector<256x128xf32>, vector<1x128xf32> -> vector<1x128xf32>
    %32 = tpu.concatenate %27, %31 in 0 : vector<1x128xf32>, vector<1x128xf32> -> vector<2x128xf32>
    %c0_21 = arith.constant 0 : index
    %c0_22 = arith.constant 0 : index
    %c0_23 = arith.constant 0 : index
    %33 = vector.load %arg5[%c0_21, %c0_22, %c0_23] : memref<1x2x128xf32, #tpu.memory_space<vmem>>, vector<1x2x128xf32>
    %34 = vector.shape_cast %33 : vector<1x2x128xf32> to vector<2x128xf32>
    %35 = vector.shape_cast %32 : vector<2x128xf32> to vector<1x2x128xf32>
    tpu.vector_store %arg5[%c0_21, %c0_22, %c0_23], %35 {strides = array<i32>} : memref<1x2x128xf32, #tpu.memory_space<vmem>>, vector<1x2x128xf32>,
    return
  }
  func.func @transform_0(%arg0: i32) -> (i32, i32, i32) {
    %c0_i32 = arith.constant 0 : i32
    %c0_i32_0 = arith.constant 0 : i32
    %c0_i32_1 = arith.constant 0 : i32
    return %arg0, %c0_i32, %c0_i32_0 : i32, i32, i32
  }
  func.func @transform_1(%arg0: i32) -> (i32, i32, i32) {
    %c0_i32 = arith.constant 0 : i32
    %c0_i32_0 = arith.constant 0 : i32
    %c0_i32_1 = arith.constant 0 : i32
    %c0_i32_2 = arith.constant 0 : i32
    return %c0_i32, %c0_i32_0, %c0_i32_1 : i32, i32, i32
  }
  func.func @transform_2(%arg0: i32) -> (i32, i32) {
    %c0_i32 = arith.constant 0 : i32
    %c0_i32_0 = arith.constant 0 : i32
    %c0_i32_1 = arith.constant 0 : i32
    return %c0_i32, %c0_i32_0 : i32, i32
  }
  func.func @transform_3(%arg0: i32) -> (i32, i32, i32) {
    %c0_i32 = arith.constant 0 : i32
    %c0_i32_0 = arith.constant 0 : i32
    %c0_i32_1 = arith.constant 0 : i32
    return %arg0, %c0_i32, %c0_i32_0 : i32, i32, i32
  }
  func.func @transform_4(%arg0: i32) -> (i32, i32, i32) {
    %c0_i32 = arith.constant 0 : i32
    %c0_i32_0 = arith.constant 0 : i32
    %c0_i32_1 = arith.constant 0 : i32
    return %arg0, %c0_i32, %c0_i32_0 : i32, i32, i32
  }
}

module attributes {stable_mosaic.version = 11 : i64} {
  func.func @_bn_relu_conv_kernel(%arg0: i32, %arg1: memref<1x8x256xf32, #tpu.memory_space<vmem>>, %arg2: memref<1x256xf32, #tpu.memory_space<vmem>>, %arg3: memref<1x256xf32, #tpu.memory_space<vmem>>, %arg4: memref<3x256x256xbf16, #tpu.memory_space<vmem>>, %arg5: memref<256x128xf32, #tpu.memory_space<vmem>>, %arg6: memref<1x8x256xf32, #tpu.memory_space<vmem>>, %arg7: memref<1x2x128xf32, #tpu.memory_space<vmem>>) attributes {dimension_semantics = [#tpu.dimension_semantics<parallel>], iteration_bounds = array<i64: 2>, scalar_prefetch = 0 : i64, scratch_operands = 0 : i64, tpu.core_type = #tpu.core_type<tc>, window_params = [{transform_indices = @transform_0, window_bounds = array<i64: 1, 8, 256>}, {pipeline_mode = #tpu.pipeline_mode<synchronous>, transform_indices = @transform_1, window_bounds = array<i64: 1, 256>}, {pipeline_mode = #tpu.pipeline_mode<synchronous>, transform_indices = @transform_2, window_bounds = array<i64: 1, 256>}, {pipeline_mode = #tpu.pipeline_mode<synchronous>, transform_indices = @transform_3, window_bounds = array<i64: 3, 256, 256>}, {pipeline_mode = #tpu.pipeline_mode<synchronous>, transform_indices = @transform_4, window_bounds = array<i64: 256, 128>}, {transform_indices = @transform_5, window_bounds = array<i64: 1, 8, 256>}, {transform_indices = @transform_6, window_bounds = array<i64: 1, 2, 128>}]} {
    %c0 = arith.constant 0 : index
    %c0_0 = arith.constant 0 : index
    %c0_1 = arith.constant 0 : index
    %0 = vector.load %arg1[%c0, %c0_0, %c0_1] : memref<1x8x256xf32, #tpu.memory_space<vmem>>, vector<1x8x256xf32>
    %1 = vector.shape_cast %0 : vector<1x8x256xf32> to vector<8x256xf32>
    %c0_2 = arith.constant 0 : index
    %c0_3 = arith.constant 0 : index
    %2 = vector.load %arg2[%c0_2, %c0_3] : memref<1x256xf32, #tpu.memory_space<vmem>>, vector<1x256xf32>
    %3 = vector.broadcast %2 : vector<1x256xf32> to vector<8x256xf32>
    %4 = arith.mulf %1, %3 : vector<8x256xf32>
    %c0_4 = arith.constant 0 : index
    %c0_5 = arith.constant 0 : index
    %5 = vector.load %arg3[%c0_4, %c0_5] : memref<1x256xf32, #tpu.memory_space<vmem>>, vector<1x256xf32>
    %6 = vector.broadcast %5 : vector<1x256xf32> to vector<8x256xf32>
    %7 = arith.addf %4, %6 : vector<8x256xf32>
    %cst = arith.constant 0.000000e+00 : f32
    %8 = vector.broadcast %cst : f32 to vector<8x256xf32>
    %9 = arith.maximumf %7, %8 : vector<8x256xf32>
    %cst_6 = arith.constant 0.000000e+00 : f32
    %10 = vector.broadcast %cst_6 : f32 to vector<1x256xf32>
    %11 = vector.extract_strided_slice %9 {offsets = [0, 0], sizes = [7, 256], strides = [1, 1]} : vector<8x256xf32> to vector<7x256xf32>
    %12 = tpu.concatenate %10, %11 in 0 : vector<1x256xf32>, vector<7x256xf32> -> vector<8x256xf32>
    %13 = vector.extract_strided_slice %9 {offsets = [1, 0], sizes = [7, 256], strides = [1, 1]} : vector<8x256xf32> to vector<7x256xf32>
    %14 = tpu.concatenate %13, %10 in 0 : vector<7x256xf32>, vector<1x256xf32> -> vector<8x256xf32>
    %15 = arith.truncf %12 : vector<8x256xf32> to vector<8x256xbf16>
    %c0_7 = arith.constant 0 : index
    %c0_8 = arith.constant 0 : index
    %c0_9 = arith.constant 0 : index
    %16 = vector.load %arg4[%c0_7, %c0_8, %c0_9] : memref<3x256x256xbf16, #tpu.memory_space<vmem>>, vector<1x256x256xbf16>
    %17 = vector.shape_cast %16 : vector<1x256x256xbf16> to vector<256x256xbf16>
    %cst_10 = arith.constant dense<0.000000e+00> : vector<8x256xf32>
    %18 = tpu.matmul %15, %17, %cst_10 {dimension_numbers = #tpu.dot_dimension_numbers<[1], [0], [0], [1], [0, 0, 1, 1], [], []>} : vector<8x256xbf16>, vector<256x256xbf16>, vector<8x256xf32> -> vector<8x256xf32>
    %19 = arith.truncf %9 : vector<8x256xf32> to vector<8x256xbf16>
    %c1 = arith.constant 1 : index
    %c0_11 = arith.constant 0 : index
    %c0_12 = arith.constant 0 : index
    %20 = vector.load %arg4[%c1, %c0_11, %c0_12] : memref<3x256x256xbf16, #tpu.memory_space<vmem>>, vector<1x256x256xbf16>
    %21 = vector.shape_cast %20 : vector<1x256x256xbf16> to vector<256x256xbf16>
    %cst_13 = arith.constant dense<0.000000e+00> : vector<8x256xf32>
    %22 = tpu.matmul %19, %21, %cst_13 {dimension_numbers = #tpu.dot_dimension_numbers<[1], [0], [0], [1], [0, 0, 1, 1], [], []>} : vector<8x256xbf16>, vector<256x256xbf16>, vector<8x256xf32> -> vector<8x256xf32>
    %23 = arith.addf %18, %22 : vector<8x256xf32>
    %24 = arith.truncf %14 : vector<8x256xf32> to vector<8x256xbf16>
    %c2 = arith.constant 2 : index
    %c0_14 = arith.constant 0 : index
    %c0_15 = arith.constant 0 : index
    %25 = vector.load %arg4[%c2, %c0_14, %c0_15] : memref<3x256x256xbf16, #tpu.memory_space<vmem>>, vector<1x256x256xbf16>
    %26 = vector.shape_cast %25 : vector<1x256x256xbf16> to vector<256x256xbf16>
    %cst_16 = arith.constant dense<0.000000e+00> : vector<8x256xf32>
    %27 = tpu.matmul %24, %26, %cst_16 {dimension_numbers = #tpu.dot_dimension_numbers<[1], [0], [0], [1], [0, 0, 1, 1], [], []>} : vector<8x256xbf16>, vector<256x256xbf16>, vector<8x256xf32> -> vector<8x256xf32>
    %28 = arith.addf %23, %27 : vector<8x256xf32>
    %c0_17 = arith.constant 0 : index
    %c0_18 = arith.constant 0 : index
    %c0_19 = arith.constant 0 : index
    %29 = vector.load %arg6[%c0_17, %c0_18, %c0_19] : memref<1x8x256xf32, #tpu.memory_space<vmem>>, vector<1x8x256xf32>
    %30 = vector.shape_cast %29 : vector<1x8x256xf32> to vector<8x256xf32>
    %31 = vector.shape_cast %28 : vector<8x256xf32> to vector<1x8x256xf32>
    tpu.vector_store %arg6[%c0_17, %c0_18, %c0_19], %31 {strides = array<i32>} : memref<1x8x256xf32, #tpu.memory_space<vmem>>, vector<1x8x256xf32>,
    %c0_20 = arith.constant 0 : index
    %c0_21 = arith.constant 0 : index
    %32 = vector.load %arg5[%c0_20, %c0_21] : memref<256x128xf32, #tpu.memory_space<vmem>>, vector<256x128xf32>
    %cst_22 = arith.constant dense<0.000000e+00> : vector<256xf32>
    %33 = vector.multi_reduction <add>, %28, %cst_22 [0] : vector<8x256xf32> to vector<256xf32>
    %34 = vector.shape_cast %33 : vector<256xf32> to vector<1x256xf32>
    %cst_23 = arith.constant dense<0.000000e+00> : vector<1x128xf32>
    %35 = tpu.matmul %34, %32, %cst_23 {dimension_numbers = #tpu.dot_dimension_numbers<[1], [0], [0], [1], [0, 0, 1, 1], [], []>} : vector<1x256xf32>, vector<256x128xf32>, vector<1x128xf32> -> vector<1x128xf32>
    %36 = arith.mulf %28, %28 : vector<8x256xf32>
    %cst_24 = arith.constant dense<0.000000e+00> : vector<256xf32>
    %37 = vector.multi_reduction <add>, %36, %cst_24 [0] : vector<8x256xf32> to vector<256xf32>
    %38 = vector.shape_cast %37 : vector<256xf32> to vector<1x256xf32>
    %cst_25 = arith.constant dense<0.000000e+00> : vector<1x128xf32>
    %39 = tpu.matmul %38, %32, %cst_25 {dimension_numbers = #tpu.dot_dimension_numbers<[1], [0], [0], [1], [0, 0, 1, 1], [], []>} : vector<1x256xf32>, vector<256x128xf32>, vector<1x128xf32> -> vector<1x128xf32>
    %40 = tpu.concatenate %35, %39 in 0 : vector<1x128xf32>, vector<1x128xf32> -> vector<2x128xf32>
    %c0_26 = arith.constant 0 : index
    %c0_27 = arith.constant 0 : index
    %c0_28 = arith.constant 0 : index
    %41 = vector.load %arg7[%c0_26, %c0_27, %c0_28] : memref<1x2x128xf32, #tpu.memory_space<vmem>>, vector<1x2x128xf32>
    %42 = vector.shape_cast %41 : vector<1x2x128xf32> to vector<2x128xf32>
    %43 = vector.shape_cast %40 : vector<2x128xf32> to vector<1x2x128xf32>
    tpu.vector_store %arg7[%c0_26, %c0_27, %c0_28], %43 {strides = array<i32>} : memref<1x2x128xf32, #tpu.memory_space<vmem>>, vector<1x2x128xf32>,
    return
  }
  func.func @transform_0(%arg0: i32) -> (i32, i32, i32) {
    %c0_i32 = arith.constant 0 : i32
    %c0_i32_0 = arith.constant 0 : i32
    %c0_i32_1 = arith.constant 0 : i32
    return %arg0, %c0_i32, %c0_i32_0 : i32, i32, i32
  }
  func.func @transform_1(%arg0: i32) -> (i32, i32) {
    %c0_i32 = arith.constant 0 : i32
    %c0_i32_0 = arith.constant 0 : i32
    %c0_i32_1 = arith.constant 0 : i32
    return %c0_i32, %c0_i32_0 : i32, i32
  }
  func.func @transform_2(%arg0: i32) -> (i32, i32) {
    %c0_i32 = arith.constant 0 : i32
    %c0_i32_0 = arith.constant 0 : i32
    %c0_i32_1 = arith.constant 0 : i32
    return %c0_i32, %c0_i32_0 : i32, i32
  }
  func.func @transform_3(%arg0: i32) -> (i32, i32, i32) {
    %c0_i32 = arith.constant 0 : i32
    %c0_i32_0 = arith.constant 0 : i32
    %c0_i32_1 = arith.constant 0 : i32
    %c0_i32_2 = arith.constant 0 : i32
    return %c0_i32, %c0_i32_0, %c0_i32_1 : i32, i32, i32
  }
  func.func @transform_4(%arg0: i32) -> (i32, i32) {
    %c0_i32 = arith.constant 0 : i32
    %c0_i32_0 = arith.constant 0 : i32
    %c0_i32_1 = arith.constant 0 : i32
    return %c0_i32, %c0_i32_0 : i32, i32
  }
  func.func @transform_5(%arg0: i32) -> (i32, i32, i32) {
    %c0_i32 = arith.constant 0 : i32
    %c0_i32_0 = arith.constant 0 : i32
    %c0_i32_1 = arith.constant 0 : i32
    return %arg0, %c0_i32, %c0_i32_0 : i32, i32, i32
  }
  func.func @transform_6(%arg0: i32) -> (i32, i32, i32) {
    %c0_i32 = arith.constant 0 : i32
    %c0_i32_0 = arith.constant 0 : i32
    %c0_i32_1 = arith.constant 0 : i32
    return %arg0, %c0_i32, %c0_i32_0 : i32, i32, i32
  }
}

module attributes {stable_mosaic.version = 11 : i64} {
  func.func @_bn_add_relu_kernel(%arg0: i32, %arg1: memref<8x256xf32, #tpu.memory_space<vmem>>, %arg2: memref<1x256xf32, #tpu.memory_space<vmem>>, %arg3: memref<1x256xf32, #tpu.memory_space<vmem>>, %arg4: memref<8x256xf32, #tpu.memory_space<vmem>>, %arg5: memref<8x256xf32, #tpu.memory_space<vmem>>) attributes {dimension_semantics = [#tpu.dimension_semantics<parallel>], iteration_bounds = array<i64: 2>, scalar_prefetch = 0 : i64, scratch_operands = 0 : i64, tpu.core_type = #tpu.core_type<tc>, window_params = [{transform_indices = @transform_0, window_bounds = array<i64: 8, 256>}, {pipeline_mode = #tpu.pipeline_mode<synchronous>, transform_indices = @transform_1, window_bounds = array<i64: 1, 256>}, {pipeline_mode = #tpu.pipeline_mode<synchronous>, transform_indices = @transform_2, window_bounds = array<i64: 1, 256>}, {transform_indices = @transform_3, window_bounds = array<i64: 8, 256>}, {transform_indices = @transform_4, window_bounds = array<i64: 8, 256>}]} {
    %c0 = arith.constant 0 : index
    %c0_0 = arith.constant 0 : index
    %0 = vector.load %arg1[%c0, %c0_0] : memref<8x256xf32, #tpu.memory_space<vmem>>, vector<8x256xf32>
    %c0_1 = arith.constant 0 : index
    %c0_2 = arith.constant 0 : index
    %1 = vector.load %arg2[%c0_1, %c0_2] : memref<1x256xf32, #tpu.memory_space<vmem>>, vector<1x256xf32>
    %2 = vector.broadcast %1 : vector<1x256xf32> to vector<8x256xf32>
    %3 = arith.mulf %0, %2 : vector<8x256xf32>
    %c0_3 = arith.constant 0 : index
    %c0_4 = arith.constant 0 : index
    %4 = vector.load %arg3[%c0_3, %c0_4] : memref<1x256xf32, #tpu.memory_space<vmem>>, vector<1x256xf32>
    %5 = vector.broadcast %4 : vector<1x256xf32> to vector<8x256xf32>
    %6 = arith.addf %3, %5 : vector<8x256xf32>
    %c0_5 = arith.constant 0 : index
    %c0_6 = arith.constant 0 : index
    %7 = vector.load %arg4[%c0_5, %c0_6] : memref<8x256xf32, #tpu.memory_space<vmem>>, vector<8x256xf32>
    %8 = arith.addf %6, %7 : vector<8x256xf32>
    %cst = arith.constant 0.000000e+00 : f32
    %9 = vector.broadcast %cst : f32 to vector<8x256xf32>
    %10 = arith.maximumf %8, %9 : vector<8x256xf32>
    %c0_7 = arith.constant 0 : index
    %c0_8 = arith.constant 0 : index
    %11 = vector.load %arg5[%c0_7, %c0_8] : memref<8x256xf32, #tpu.memory_space<vmem>>, vector<8x256xf32>
    tpu.vector_store %arg5[%c0_7, %c0_8], %10 {strides = array<i32>} : memref<8x256xf32, #tpu.memory_space<vmem>>, vector<8x256xf32>,
    return
  }
  func.func @transform_0(%arg0: i32) -> (i32, i32) {
    %c0_i32 = arith.constant 0 : i32
    %c0_i32_0 = arith.constant 0 : i32
    return %arg0, %c0_i32 : i32, i32
  }
  func.func @transform_1(%arg0: i32) -> (i32, i32) {
    %c0_i32 = arith.constant 0 : i32
    %c0_i32_0 = arith.constant 0 : i32
    %c0_i32_1 = arith.constant 0 : i32
    return %c0_i32, %c0_i32_0 : i32, i32
  }
  func.func @transform_2(%arg0: i32) -> (i32, i32) {
    %c0_i32 = arith.constant 0 : i32
    %c0_i32_0 = arith.constant 0 : i32
    %c0_i32_1 = arith.constant 0 : i32
    return %c0_i32, %c0_i32_0 : i32, i32
  }
  func.func @transform_3(%arg0: i32) -> (i32, i32) {
    %c0_i32 = arith.constant 0 : i32
    %c0_i32_0 = arith.constant 0 : i32
    return %arg0, %c0_i32 : i32, i32
  }
  func.func @transform_4(%arg0: i32) -> (i32, i32) {
    %c0_i32 = arith.constant 0 : i32
    %c0_i32_0 = arith.constant 0 : i32
    return %arg0, %c0_i32 : i32, i32
  }
}

</mosaic_0001>

<llo_original>
// kernel: residual_forward.3
$region0: #{residual_forward.3}
  #allocation0 [shape = 'u32[]', space=smem, size = 0x4, offset = 0x4, fixed_abs, tag = 'smem constant byte address 0x4 - core index']
  #allocation1 [shape = 'u32[144,128]{1,0:T(1,128)}', space=vmem, size = 0x12000, scoped, tag = 'internal scratch']
  %s0 = inlined_call_operand.vmem [shape: f32[2,8,256], index: 0, kind: input, shape index: {}]
  %s1 = inlined_call_operand.vmem [shape: bf16[3,256,256], index: 1, kind: input, shape index: {}]
  %s2 = inlined_call_operand.vmem [shape: f32[256,128], index: 2, kind: input, shape index: {}]
  %s3 = inlined_call_operand.vmem [shape: f32[2,8,256], index: 3, kind: output, shape index: {0}]
  %s4 = inlined_call_operand.vmem [shape: f32[2,2,128], index: 4, kind: output, shape index: {1}]
  %5 = xla_tuple %s3, %s4
  %s6 = sld [smem:[#allocation0]]
  $region53: #{residual_forward.3} parent=0
    _
  %s8 = ssub.s32 1, %s6
  %s9 = scalar_select 0, %s8, %s6
  loop: start=0, step=1, limit=4
  $region2: #{residual_forward.3} parent=0 // loop_pre_header
    _
  $region3: #{residual_forward.3} parent=0 // loop_header
    %s11 = sphi 0, %s15
    %p12 = scmp.ge.s32.totalorder %s11, 4
    %s21 = sphi 0, %s23
    %s24 = sphi 0, %s21
    %s25 = sphi 0, %s24
    %s41 = sphi 0, %s25
    %s45 = sphi 0, %s45
    %s47 = sphi 0, %s45
    %s48 = sphi 0, %s47
    %s62 = sphi 0, %s48
    %s66 = sphi 0, %s66
    %s68 = sphi 0, %s66
    %s69 = sphi 0, %s68
    %s83 = sphi 0, %s69
    %s89 = sphi 0, %s91
    %s92 = sphi 0, %s89
    %s93 = sphi 0, %s92
    %s109 = sphi 0, %s93
    %s115 = sphi 0, %s117
    %s118 = sphi 0, %s115
    %s119 = sphi 0, %s118
    %s135 = sphi 0, %s119
  $region4: #{residual_forward.3} parent=0 // loop_header_branch
    %14 = sbr.rel (%p12) target = $region8
  $region5: #{residual_forward.3} parent=0 // loop_body
    %s16 = ssub.s32 %s11, 1
    %s17 = ssub.s32 %s11, 2
    %s18 = sadd.s32 %s11, 1
    %s19 = ssub.s32 %s11, %s18
    %p20 = scmp.eq.s32.totalorder %s19, 0
    %s22 = sadd.s32 %s21, 1
    %s23 = scalar_select %p20, %s21, %s22
    %p26 = pneg %p20
    %p27 = scmp.eq.s32.totalorder %s11, 1
    %p28 = por %p26, %p27
    %p29 = scmp.ne.s32.totalorder %s21, %s24
    %p30 = scmp.eq.s32.totalorder %s11, 0
    %p31 = por %p29, %p30
    %p32 = scmp.ne.s32.totalorder %s21, %s24
    %p33 = scmp.eq.s32.totalorder %s16, 1
    %p34 = por %p32, %p33
    %p35 = scmp.ne.s32.totalorder %s24, %s25
    %p36 = scmp.eq.s32.totalorder %s16, 0
    %p37 = por %p35, %p36
    %p38 = scmp.ne.s32.totalorder %s24, %s25
    %p39 = scmp.eq.s32.totalorder %s17, 1
    %p40 = por %p38, %p39
    %p42 = scmp.ne.s32.totalorder %s25, %s41
    %p43 = scmp.eq.s32.totalorder %s17, 0
    %p44 = por %p42, %p43
    %s46 = sadd.s32 %s45, 1
    %p49 = scmp.eq.s32.totalorder %s11, 1
    %p50 = scmp.ne.s32.totalorder %s45, %s47
    %p51 = scmp.eq.s32.totalorder %s11, 0
    %p52 = por %p50, %p51
    %p53 = scmp.ne.s32.totalorder %s45, %s47
    %p54 = scmp.eq.s32.totalorder %s16, 1
    %p55 = por %p53, %p54
    %p56 = scmp.ne.s32.totalorder %s47, %s48
    %p57 = scmp.eq.s32.totalorder %s16, 0
    %p58 = por %p56, %p57
    %p59 = scmp.ne.s32.totalorder %s47, %s48
    %p60 = scmp.eq.s32.totalorder %s17, 1
    %p61 = por %p59, %p60
    %p63 = scmp.ne.s32.totalorder %s48, %s62
    %p64 = scmp.eq.s32.totalorder %s17, 0
    %p65 = por %p63, %p64
    %s67 = sadd.s32 %s66, 1
    %p70 = scmp.eq.s32.totalorder %s11, 1
    %p71 = scmp.ne.s32.totalorder %s66, %s68
    %p72 = scmp.eq.s32.totalorder %s11, 0
    %p73 = por %p71, %p72
    %p74 = scmp.ne.s32.totalorder %s66, %s68
    %p75 = scmp.eq.s32.totalorder %s16, 1
    %p76 = por %p74, %p75
    %p77 = scmp.ne.s32.totalorder %s68, %s69
    %p78 = scmp.eq.s32.totalorder %s16, 0
    %p79 = por %p77, %p78
    %p80 = scmp.ne.s32.totalorder %s68, %s69
    %p81 = scmp.eq.s32.totalorder %s17, 1
    %p82 = por %p80, %p81
    %p84 = scmp.ne.s32.totalorder %s69, %s83
    %p85 = scmp.eq.s32.totalorder %s17, 0
    %p86 = por %p84, %p85
    %s87 = ssub.s32 %s11, %s18
    %p88 = scmp.eq.s32.totalorder %s87, 0
    %s90 = sadd.s32 %s89, 1
    %s91 = scalar_select %p88, %s89, %s90
    %p94 = pneg %p88
    %p95 = scmp.eq.s32.totalorder %s11, 1
    %p96 = por %p94, %p95
    %p97 = scmp.ne.s32.totalorder %s89, %s92
    %p98 = scmp.eq.s32.totalorder %s11, 0
    %p99 = por %p97, %p98
    %p100 = scmp.ne.s32.totalorder %s89, %s92
    %p101 = scmp.eq.s32.totalorder %s16, 1
    %p102 = por %p100, %p101
    %p103 = scmp.ne.s32.totalorder %s92, %s93
    %p104 = scmp.eq.s32.totalorder %s16, 0
    %p105 = por %p103, %p104
    %p106 = scmp.ne.s32.totalorder %s92, %s93
    %p107 = scmp.eq.s32.totalorder %s17, 1
    %p108 = por %p106, %p107
    %p110 = scmp.ne.s32.totalorder %s93, %s109
    %p111 = scmp.eq.s32.totalorder %s17, 0
    %p112 = por %p110, %p111
    %s113 = ssub.s32 %s11, %s18
    %p114 = scmp.eq.s32.totalorder %s113, 0
    %s116 = sadd.s32 %s115, 1
    %s117 = scalar_select %p114, %s115, %s116
    %p120 = pneg %p114
    %p121 = scmp.eq.s32.totalorder %s11, 1
    %p122 = por %p120, %p121
    %p123 = scmp.ne.s32.totalorder %s115, %s118
    %p124 = scmp.eq.s32.totalorder %s11, 0
    %p125 = por %p123, %p124
    %p126 = scmp.ne.s32.totalorder %s115, %s118
    %p127 = scmp.eq.s32.totalorder %s16, 1
    %p128 = por %p126, %p127
    %p129 = scmp.ne.s32.totalorder %s118, %s119
    %p130 = scmp.eq.s32.totalorder %s16, 0
    %p131 = por %p129, %p130
    %p132 = scmp.ne.s32.totalorder %s118, %s119
    %p133 = scmp.eq.s32.totalorder %s17, 1
    %p134 = por %p132, %p133
    %p136 = scmp.ne.s32.totalorder %s119, %s135
    %p137 = scmp.eq.s32.totalorder %s17, 0
    %p138 = por %p136, %p137
    %p139 = scmp.le.s32.totalorder 1, %s11
    %p140 = scmp.lt.s32.totalorder %s11, 3
    %p141 = pnand %p139, %p140
    %p142 = pneg %p141
    // Predicated region
    $region9: #{residual_forward.3} parent=5 // pred_check
      _
    $region10: #{residual_forward.3} parent=5 // pred_check_branch
      %144 = sbr.rel (%p141) target = $region12
    $region11: #{residual_forward.3} parent=5 // pred_region
      %s145 = ssub.s32 %s11, 1
      // Predicated region
      $region13: #{residual_forward.3} parent=11 // pred_check
        %p146 = pneg %p58
      $region14: #{residual_forward.3} parent=11 // pred_check_branch
        %148 = sbr.rel (%p146) target = $region16
      $region15: #{residual_forward.3} parent=11 // pred_region
        _
      $region16: #{residual_forward.3} parent=11 // pred_fallthru
        _
      // Predicated region
      $region17: #{residual_forward.3} parent=11 // pred_check
        %p149 = pneg %p79
      $region18: #{residual_forward.3} parent=11 // pred_check_branch
        %151 = sbr.rel (%p149) target = $region20
      $region19: #{residual_forward.3} parent=11 // pred_region
        _
      $region20: #{residual_forward.3} parent=11 // pred_fallthru
        _
    $region12: #{residual_forward.3} parent=5 // pred_fallthru
      _
    %p152 = scmp.lt.s32.totalorder %s11, 2
    // Predicated region
    $region21: #{residual_forward.3} parent=5 // pred_check
      %p153 = pneg %p152
    $region22: #{residual_forward.3} parent=5 // pred_check_branch
      %155 = sbr.rel (%p153) target = $region24
    $region23: #{residual_forward.3} parent=5 // pred_region
      // Predicated region
      $region25: #{residual_forward.3} parent=23 // pred_check
        %p156 = pneg %p31
      $region26: #{residual_forward.3} parent=23 // pred_check_branch
        %158 = sbr.rel (%p156) target = $region28
      $region27: #{residual_forward.3} parent=23 // pred_region
        %p159 = scmp.lt.s32.totalorder %s11, 1
        %s160 = scalar_select %p159, %s11, 1
        %s161 = smul.addr %s160, 2
        %s162 = smul.addr %s161, 8
        %s163 = scalar_lea.vmem %s0, %s162
      $region28: #{residual_forward.3} parent=23 // pred_fallthru
        _
    $region24: #{residual_forward.3} parent=5 // pred_fallthru
      _
    %p164 = scmp.le.s32.totalorder 1, %s11
    %p165 = scmp.lt.s32.totalorder %s11, 3
    %p166 = pnand %p164, %p165
    %p167 = pneg %p166
    // Predicated region
    $region29: #{residual_forward.3} parent=5 // pred_check
      _
    $region30: #{residual_forward.3} parent=5 // pred_check_branch
      %169 = sbr.rel (%p166) target = $region32
    $region31: #{residual_forward.3} parent=5 // pred_region
      %s170 = ssub.s32 %s11, 1
      %p171 = scmp.lt.s32.totalorder %s16, 1
      %s172 = scalar_select %p171, %s16, 1
      %s173 = smul.addr %s172, 2
      %s174 = smul.addr %s173, 8
      %s175 = scalar_lea.vmem %s0, %s174
      %p176 = pneg %p37
      %p177 = pneg %p34
      %p178 = pneg %p58
      %p179 = pneg %p55
      %p180 = pneg %p79
      %p181 = pneg %p76
      %p182 = pneg %p105
      %p183 = pneg %p102
      %p184 = scmp.lt.s32.totalorder %s16, 1
      %s185 = scalar_select %p184, %s16, 1
      %s186 = smul.addr %s185, 2
      %s187 = smul.addr %s186, 8
      %s188 = scalar_lea.vmem %s3, %s187
      %p189 = pneg %p131
      %p190 = pneg %p128
      %p191 = scmp.lt.s32.totalorder %s16, 1
      %s192 = scalar_select %p191, %s16, 1
      %s193 = smul.addr %s192, 2
      %s194 = scalar_lea.vmem %s4, %s193
      %p195 = scmp.lt.s32.totalorder %s16, 1
      %s196 = scalar_select %p195, %s16, 1
      %s197 = smul.addr %s196, 2
      %s198 = smul.addr %s197, 8
      %s199 = scalar_lea.vmem %s0, %s198
      %p200 = scmp.lt.s32.totalorder %s16, 1
      %s201 = scalar_select %p200, %s16, 1
      %s202 = smul.addr %s201, 2
      %s203 = smul.addr %s202, 8
      %s204 = scalar_lea.vmem %s3, %s203
      %p205 = scmp.lt.s32.totalorder %s16, 1
      %s206 = scalar_select %p205, %s16, 1
      %s207 = smul.addr %s206, 2
      %s208 = scalar_lea.vmem %s4, %s207
      %v209 = vld [vmem:[%s199] sm:$0xff]
      %v210 = vld [vmem:[%s199 + $0x8] sm:$0xff]
      %v213 = vrot.slane %v209, 7
      %v214 = vrot.slane %v210, 7
      %vm217 = vcmask 1040384
      %v218 = vsel %vm217, 0.0, %v213
      %v219 = vsel %vm217, 0.0, %v214
      %v220 = vrot.slane %v209, 1
      %v221 = vrot.slane %v210, 1
      %vm224 = vcmask 1046528
      %v225 = vsel %vm224, %v220, 0.0
      %v226 = vsel %vm224, %v221, 0.0
      %v227 = vpack.c.bf16 %v218, %v218
      %v228 = vpack.c.bf16 %v219, %v219
      %v229 = vld [vmem:[%s1] sm:$0xff]
      %v230 = vld [vmem:[%s1 + $0x8] sm:$0xff]
      %v231 = vld [vmem:[%s1 + $0x10] sm:$0xff]
      %v232 = vld [vmem:[%s1 + $0x18] sm:$0xff]
      %v233 = vld [vmem:[%s1 + $0x20] sm:$0xff]
      %v234 = vld [vmem:[%s1 + $0x28] sm:$0xff]
      %v235 = vld [vmem:[%s1 + $0x30] sm:$0xff]
      %v236 = vld [vmem:[%s1 + $0x38] sm:$0xff]
      %v237 = vld [vmem:[%s1 + $0x40] sm:$0xff]
      %v238 = vld [vmem:[%s1 + $0x48] sm:$0xff]
      %v239 = vld [vmem:[%s1 + $0x50] sm:$0xff]
      %v240 = vld [vmem:[%s1 + $0x58] sm:$0xff]
      %v241 = vld [vmem:[%s1 + $0x60] sm:$0xff]
      %v242 = vld [vmem:[%s1 + $0x68] sm:$0xff]
      %v243 = vld [vmem:[%s1 + $0x70] sm:$0xff]
      %v244 = vld [vmem:[%s1 + $0x78] sm:$0xff]
      %v245 = vld [vmem:[%s1 + $0x80] sm:$0xff]
      %v246 = vld [vmem:[%s1 + $0x88] sm:$0xff]
      %v247 = vld [vmem:[%s1 + $0x90] sm:$0xff]
      %v248 = vld [vmem:[%s1 + $0x98] sm:$0xff]
      %v249 = vld [vmem:[%s1 + $0xa0] sm:$0xff]
      %v250 = vld [vmem:[%s1 + $0xa8] sm:$0xff]
      %v251 = vld [vmem:[%s1 + $0xb0] sm:$0xff]
      %v252 = vld [vmem:[%s1 + $0xb8] sm:$0xff]
      %v253 = vld [vmem:[%s1 + $0xc0] sm:$0xff]
      %v254 = vld [vmem:[%s1 + $0xc8] sm:$0xff]
      %v255 = vld [vmem:[%s1 + $0xd0] sm:$0xff]
      %v256 = vld [vmem:[%s1 + $0xd8] sm:$0xff]
      %v257 = vld [vmem:[%s1 + $0xe0] sm:$0xff]
      %v258 = vld [vmem:[%s1 + $0xe8] sm:$0xff]
      %v259 = vld [vmem:[%s1 + $0xf0] sm:$0xff]
      %v260 = vld [vmem:[%s1 + $0xf8] sm:$0xff]
      %v261 = vpack.c.bf16 %v209, %v209
      %v262 = vpack.c.bf16 %v210, %v210
      %s263 = scalar_lea.vmem %s1, 256
      %v264 = vld [vmem:[%s263] sm:$0xff]
      %v265 = vld [vmem:[%s263 + $0x8] sm:$0xff]
      %v266 = vld [vmem:[%s263 + $0x10] sm:$0xff]
      %v267 = vld [vmem:[%s263 + $0x18] sm:$0xff]
      %v268 = vld [vmem:[%s263 + $0x20] sm:$0xff]
      %v269 = vld [vmem:[%s263 + $0x28] sm:$0xff]
      %v270 = vld [vmem:[%s263 + $0x30] sm:$0xff]
      %v271 = vld [vmem:[%s263 + $0x38] sm:$0xff]
      %v272 = vld [vmem:[%s263 + $0x40] sm:$0xff]
      %v273 = vld [vmem:[%s263 + $0x48] sm:$0xff]
      %v274 = vld [vmem:[%s263 + $0x50] sm:$0xff]
      %v275 = vld [vmem:[%s263 + $0x58] sm:$0xff]
      %v276 = vld [vmem:[%s263 + $0x60] sm:$0xff]
      %v277 = vld [vmem:[%s263 + $0x68] sm:$0xff]
      %v278 = vld [vmem:[%s263 + $0x70] sm:$0xff]
      %v279 = vld [vmem:[%s263 + $0x78] sm:$0xff]
      %v280 = vld [vmem:[%s263 + $0x80] sm:$0xff]
      %v281 = vld [vmem:[%s263 + $0x88] sm:$0xff]
      %v282 = vld [vmem:[%s263 + $0x90] sm:$0xff]
      %v283 = vld [vmem:[%s263 + $0x98] sm:$0xff]
      %v284 = vld [vmem:[%s263 + $0xa0] sm:$0xff]
      %v285 = vld [vmem:[%s263 + $0xa8] sm:$0xff]
      %v286 = vld [vmem:[%s263 + $0xb0] sm:$0xff]
      %v287 = vld [vmem:[%s263 + $0xb8] sm:$0xff]
      %v288 = vld [vmem:[%s263 + $0xc0] sm:$0xff]
      %v289 = vld [vmem:[%s263 + $0xc8] sm:$0xff]
      %v290 = vld [vmem:[%s263 + $0xd0] sm:$0xff]
      %v291 = vld [vmem:[%s263 + $0xd8] sm:$0xff]
      %v292 = vld [vmem:[%s263 + $0xe0] sm:$0xff]
      %v293 = vld [vmem:[%s263 + $0xe8] sm:$0xff]
      %v294 = vld [vmem:[%s263 + $0xf0] sm:$0xff]
      %v295 = vld [vmem:[%s263 + $0xf8] sm:$0xff]
      %v328 = vunpack.c.l.b16 %v264
      %v329 = vunpack.c.h.b16 %v264
      %v330 = vunpack.c.l.b16 %v265
      %v331 = vunpack.c.h.b16 %v265
      %v332 = vunpack.c.l.b16 %v266
      %v333 = vunpack.c.h.b16 %v266
      %v334 = vunpack.c.l.b16 %v267
      %v335 = vunpack.c.h.b16 %v267
      %v336 = vunpack.c.l.b16 %v268
      %v337 = vunpack.c.h.b16 %v268
      %v338 = vunpack.c.l.b16 %v269
      %v339 = vunpack.c.h.b16 %v269
      %v340 = vunpack.c.l.b16 %v270
      %v341 = vunpack.c.h.b16 %v270
      %v342 = vunpack.c.l.b16 %v271
      %v343 = vunpack.c.h.b16 %v271
      %v344 = vunpack.c.l.b16 %v272
      %v345 = vunpack.c.h.b16 %v272
      %v346 = vunpack.c.l.b16 %v273
      %v347 = vunpack.c.h.b16 %v273
      %v348 = vunpack.c.l.b16 %v274
      %v349 = vunpack.c.h.b16 %v274
      %v350 = vunpack.c.l.b16 %v275
      %v351 = vunpack.c.h.b16 %v275
      %v352 = vunpack.c.l.b16 %v276
      %v353 = vunpack.c.h.b16 %v276
      %v354 = vunpack.c.l.b16 %v277
      %v355 = vunpack.c.h.b16 %v277
      %v356 = vunpack.c.l.b16 %v278
      %v357 = vunpack.c.h.b16 %v278
      %v358 = vunpack.c.l.b16 %v279
      %v359 = vunpack.c.h.b16 %v279
      %v360 = vunpack.c.l.b16 %v280
      %v361 = vunpack.c.h.b16 %v280
      %v362 = vunpack.c.l.b16 %v281
      %v363 = vunpack.c.h.b16 %v281
      %v364 = vunpack.c.l.b16 %v282
      %v365 = vunpack.c.h.b16 %v282
      %v366 = vunpack.c.l.b16 %v283
      %v367 = vunpack.c.h.b16 %v283
      %v368 = vunpack.c.l.b16 %v284
      %v369 = vunpack.c.h.b16 %v284
      %v370 = vunpack.c.l.b16 %v285
      %v371 = vunpack.c.h.b16 %v285
      %v372 = vunpack.c.l.b16 %v286
      %v373 = vunpack.c.h.b16 %v286
      %v374 = vunpack.c.l.b16 %v287
      %v375 = vunpack.c.h.b16 %v287
      %v376 = vunpack.c.l.b16 %v288
      %v377 = vunpack.c.h.b16 %v288
      %v378 = vunpack.c.l.b16 %v289
      %v379 = vunpack.c.h.b16 %v289
      %v380 = vunpack.c.l.b16 %v290
      %v381 = vunpack.c.h.b16 %v290
      %v382 = vunpack.c.l.b16 %v291
      %v383 = vunpack.c.h.b16 %v291
      %v384 = vunpack.c.l.b16 %v292
      %v385 = vunpack.c.h.b16 %v292
      %v386 = vunpack.c.l.b16 %v293
      %v387 = vunpack.c.h.b16 %v293
      %v388 = vunpack.c.l.b16 %v294
      %v389 = vunpack.c.h.b16 %v294
      %v390 = vunpack.c.l.b16 %v295
      %v391 = vunpack.c.h.b16 %v295
      %v392 = vpack.c.b16 %v330, %v328
      %v393 = vpack.c.b16 %v331, %v329
      %v394 = vpack.c.b16 %v334, %v332
      %v395 = vpack.c.b16 %v335, %v333
      %v396 = vpack.c.b16 %v338, %v336
      %v397 = vpack.c.b16 %v339, %v337
      %v398 = vpack.c.b16 %v342, %v340
      %v399 = vpack.c.b16 %v343, %v341
      %v400 = vpack.c.b16 %v346, %v344
      %v401 = vpack.c.b16 %v347, %v345
      %v402 = vpack.c.b16 %v350, %v348
      %v403 = vpack.c.b16 %v351, %v349
      %v404 = vpack.c.b16 %v354, %v352
      %v405 = vpack.c.b16 %v355, %v353
      %v406 = vpack.c.b16 %v358, %v356
      %v407 = vpack.c.b16 %v359, %v357
      %v408 = vpack.c.b16 %v362, %v360
      %v409 = vpack.c.b16 %v363, %v361
      %v410 = vpack.c.b16 %v366, %v364
      %v411 = vpack.c.b16 %v367, %v365
      %v412 = vpack.c.b16 %v370, %v368
      %v413 = vpack.c.b16 %v371, %v369
      %v414 = vpack.c.b16 %v374, %v372
      %v415 = vpack.c.b16 %v375, %v373
      %v416 = vpack.c.b16 %v378, %v376
      %v417 = vpack.c.b16 %v379, %v377
      %v418 = vpack.c.b16 %v382, %v380
      %v419 = vpack.c.b16 %v383, %v381
      %v420 = vpack.c.b16 %v386, %v384
      %v421 = vpack.c.b16 %v387, %v385
      %v422 = vpack.c.b16 %v390, %v388
      %v423 = vpack.c.b16 %v391, %v389
      %456 = vmatprep.subr.bf16.mxu0 %v407
      %457 = vmatpush1.bf16.msra.mxu0 %v406
      %458 = vmatprep.subr.bf16.mxu0 %v405
      %459 = vmatpush1.bf16.msra.mxu0 %v404
      %460 = vmatprep.subr.bf16.mxu0 %v403
      %461 = vmatpush1.bf16.msra.mxu0 %v402
      %462 = vmatprep.subr.bf16.mxu0 %v401
      %463 = vmatpush1.bf16.msra.mxu0 %v400
      %464 = vmatprep.subr.bf16.mxu0 %v399
      %465 = vmatpush1.bf16.msra.mxu0 %v398
      %466 = vmatprep.subr.bf16.mxu0 %v397
      %467 = vmatpush1.bf16.msra.mxu0 %v396
      %468 = vmatprep.subr.bf16.mxu0 %v395
      %469 = vmatpush1.bf16.msra.mxu0 %v394
      %470 = vmatprep.subr.bf16.mxu0 %v393
      %471 = vmatpush1.bf16.msra.mxu0 %v392
      %472 = vmatprep.subr.bf16.mxu0 %v423
      %473 = vmatpush2.bf16.msra.mxu0 %v422
      %474 = vmatprep.subr.bf16.mxu0 %v421
      %475 = vmatpush2.bf16.msra.mxu0 %v420
      %476 = vmatprep.subr.bf16.mxu0 %v419
      %477 = vmatpush2.bf16.msra.mxu0 %v418
      %478 = vmatprep.subr.bf16.mxu0 %v417
      %479 = vmatpush2.bf16.msra.mxu0 %v416
      %480 = vmatprep.subr.bf16.mxu0 %v415
      %481 = vmatpush2.bf16.msra.mxu0 %v414
      %482 = vmatprep.subr.bf16.mxu0 %v413
      %483 = vmatpush2.bf16.msra.mxu0 %v412
      %484 = vmatprep.subr.bf16.mxu0 %v411
      %485 = vmatpush2.bf16.msra.mxu0 %v410
      %486 = vmatprep.subr.bf16.mxu0 %v409
      %487 = vmatpush2.bf16.msra.mxu0 %v408
      %488 = vmatprep.mubr.bf16.mxu0 %v262
      %489 = vmatmul.mubr.bf16.gmra.mxu0 %v261
      %v490 = vpop.f32.mrf.mxu0
      %v491 = vadd.f32 0.0, %v490
      %v492 = vpop.f32.mrf.mxu0
      %v493 = vadd.f32 0.0, %v492
      %v494 = vpop.f32.mrf.mxu0
      %v495 = vpop.f32.mrf.mxu0
      %496 = vdwg.mxu0
      %v529 = vunpack.c.l.b16 %v229
      %v530 = vunpack.c.h.b16 %v229
      %v531 = vunpack.c.l.b16 %v230
      %v532 = vunpack.c.h.b16 %v230
      %v533 = vunpack.c.l.b16 %v231
      %v534 = vunpack.c.h.b16 %v231
      %v535 = vunpack.c.l.b16 %v232
      %v536 = vunpack.c.h.b16 %v232
      %v537 = vunpack.c.l.b16 %v233
      %v538 = vunpack.c.h.b16 %v233
      %v539 = vunpack.c.l.b16 %v234
      %v540 = vunpack.c.h.b16 %v234
      %v541 = vunpack.c.l.b16 %v235
      %v542 = vunpack.c.h.b16 %v235
      %v543 = vunpack.c.l.b16 %v236
      %v544 = vunpack.c.h.b16 %v236
      %v545 = vunpack.c.l.b16 %v237
      %v546 = vunpack.c.h.b16 %v237
      %v547 = vunpack.c.l.b16 %v238
      %v548 = vunpack.c.h.b16 %v238
      %v549 = vunpack.c.l.b16 %v239
      %v550 = vunpack.c.h.b16 %v239
      %v551 = vunpack.c.l.b16 %v240
      %v552 = vunpack.c.h.b16 %v240
      %v553 = vunpack.c.l.b16 %v241
      %v554 = vunpack.c.h.b16 %v241
      %v555 = vunpack.c.l.b16 %v242
      %v556 = vunpack.c.h.b16 %v242
      %v557 = vunpack.c.l.b16 %v243
      %v558 = vunpack.c.h.b16 %v243
      %v559 = vunpack.c.l.b16 %v244
      %v560 = vunpack.c.h.b16 %v244
      %v561 = vunpack.c.l.b16 %v245
      %v562 = vunpack.c.h.b16 %v245
      %v563 = vunpack.c.l.b16 %v246
      %v564 = vunpack.c.h.b16 %v246
      %v565 = vunpack.c.l.b16 %v247
      %v566 = vunpack.c.h.b16 %v247
      %v567 = vunpack.c.l.b16 %v248
      %v568 = vunpack.c.h.b16 %v248
      %v569 = vunpack.c.l.b16 %v249
      %v570 = vunpack.c.h.b16 %v249
      %v571 = vunpack.c.l.b16 %v250
      %v572 = vunpack.c.h.b16 %v250
      %v573 = vunpack.c.l.b16 %v251
      %v574 = vunpack.c.h.b16 %v251
      %v575 = vunpack.c.l.b16 %v252
      %v576 = vunpack.c.h.b16 %v252
      %v577 = vunpack.c.l.b16 %v253
      %v578 = vunpack.c.h.b16 %v253
      %v579 = vunpack.c.l.b16 %v254
      %v580 = vunpack.c.h.b16 %v254
      %v581 = vunpack.c.l.b16 %v255
      %v582 = vunpack.c.h.b16 %v255
      %v583 = vunpack.c.l.b16 %v256
      %v584 = vunpack.c.h.b16 %v256
      %v585 = vunpack.c.l.b16 %v257
      %v586 = vunpack.c.h.b16 %v257
      %v587 = vunpack.c.l.b16 %v258
      %v588 = vunpack.c.h.b16 %v258
      %v589 = vunpack.c.l.b16 %v259
      %v590 = vunpack.c.h.b16 %v259
      %v591 = vunpack.c.l.b16 %v260
      %v592 = vunpack.c.h.b16 %v260
      %v593 = vpack.c.b16 %v531, %v529
      %v594 = vpack.c.b16 %v532, %v530
      %v595 = vpack.c.b16 %v535, %v533
      %v596 = vpack.c.b16 %v536, %v534
      %v597 = vpack.c.b16 %v539, %v537
      %v598 = vpack.c.b16 %v540, %v538
      %v599 = vpack.c.b16 %v543, %v541
      %v600 = vpack.c.b16 %v544, %v542
      %v601 = vpack.c.b16 %v547, %v545
      %v602 = vpack.c.b16 %v548, %v546
      %v603 = vpack.c.b16 %v551, %v549
      %v604 = vpack.c.b16 %v552, %v550
      %v605 = vpack.c.b16 %v555, %v553
      %v606 = vpack.c.b16 %v556, %v554
      %v607 = vpack.c.b16 %v559, %v557
      %v608 = vpack.c.b16 %v560, %v558
      %v609 = vpack.c.b16 %v563, %v561
      %v610 = vpack.c.b16 %v564, %v562
      %v611 = vpack.c.b16 %v567, %v565
      %v612 = vpack.c.b16 %v568, %v566
      %v613 = vpack.c.b16 %v571, %v569
      %v614 = vpack.c.b16 %v572, %v570
      %v615 = vpack.c.b16 %v575, %v573
      %v616 = vpack.c.b16 %v576, %v574
      %v617 = vpack.c.b16 %v579, %v577
      %v618 = vpack.c.b16 %v580, %v578
      %v619 = vpack.c.b16 %v583, %v581
      %v620 = vpack.c.b16 %v584, %v582
      %v621 = vpack.c.b16 %v587, %v585
      %v622 = vpack.c.b16 %v588, %v586
      %v623 = vpack.c.b16 %v591, %v589
      %v624 = vpack.c.b16 %v592, %v590
      %657 = vmatprep.subr.bf16.mxu0 %v608
      %658 = vmatpush1.bf16.msra.mxu0 %v607
      %659 = vmatprep.subr.bf16.mxu0 %v606
      %660 = vmatpush1.bf16.msra.mxu0 %v605
      %661 = vmatprep.subr.bf16.mxu0 %v604
      %662 = vmatpush1.bf16.msra.mxu0 %v603
      %663 = vmatprep.subr.bf16.mxu0 %v602
      %664 = vmatpush1.bf16.msra.mxu0 %v601
      %665 = vmatprep.subr.bf16.mxu0 %v600
      %666 = vmatpush1.bf16.msra.mxu0 %v599
      %667 = vmatprep.subr.bf16.mxu0 %v598
      %668 = vmatpush1.bf16.msra.mxu0 %v597
      %669 = vmatprep.subr.bf16.mxu0 %v596
      %670 = vmatpush1.bf16.msra.mxu0 %v595
      %671 = vmatprep.subr.bf16.mxu0 %v594
      %672 = vmatpush1.bf16.msra.mxu0 %v593
      %673 = vmatprep.subr.bf16.mxu0 %v624
      %674 = vmatpush2.bf16.msra.mxu0 %v623
      %675 = vmatprep.subr.bf16.mxu0 %v622
      %676 = vmatpush2.bf16.msra.mxu0 %v621
      %677 = vmatprep.subr.bf16.mxu0 %v620
      %678 = vmatpush2.bf16.msra.mxu0 %v619
      %679 = vmatprep.subr.bf16.mxu0 %v618
      %680 = vmatpush2.bf16.msra.mxu0 %v617
      %681 = vmatprep.subr.bf16.mxu0 %v616
      %682 = vmatpush2.bf16.msra.mxu0 %v615
      %683 = vmatprep.subr.bf16.mxu0 %v614
      %684 = vmatpush2.bf16.msra.mxu0 %v613
      %685 = vmatprep.subr.bf16.mxu0 %v612
      %686 = vmatpush2.bf16.msra.mxu0 %v611
      %687 = vmatprep.subr.bf16.mxu0 %v610
      %688 = vmatpush2.bf16.msra.mxu0 %v609
      %689 = vmatprep.mubr.bf16.mxu0 %v228
      %690 = vmatmul.mubr.bf16.gmra.mxu0 %v227
      %v691 = vpop.f32.mrf.mxu0
      %v692 = vadd.f32 %v491, %v691
      %v693 = vpop.f32.mrf.mxu0
      %v694 = vadd.f32 %v493, %v693
      %v695 = vpop.f32.mrf.mxu0
      %v696 = vpop.f32.mrf.mxu0
      %697 = vdwg.mxu0
      %v698 = vpack.c.bf16 %v225, %v225
      %v699 = vpack.c.bf16 %v226, %v226
      %s700 = scalar_lea.vmem %s1, 512
      %v701 = vld [vmem:[%s700] sm:$0xff]
      %v702 = vld [vmem:[%s700 + $0x8] sm:$0xff]
      %v703 = vld [vmem:[%s700 + $0x10] sm:$0xff]
      %v704 = vld [vmem:[%s700 + $0x18] sm:$0xff]
      %v705 = vld [vmem:[%s700 + $0x20] sm:$0xff]
      %v706 = vld [vmem:[%s700 + $0x28] sm:$0xff]
      %v707 = vld [vmem:[%s700 + $0x30] sm:$0xff]
      %v708 = vld [vmem:[%s700 + $0x38] sm:$0xff]
      %v709 = vld [vmem:[%s700 + $0x40] sm:$0xff]
      %v710 = vld [vmem:[%s700 + $0x48] sm:$0xff]
      %v711 = vld [vmem:[%s700 + $0x50] sm:$0xff]
      %v712 = vld [vmem:[%s700 + $0x58] sm:$0xff]
      %v713 = vld [vmem:[%s700 + $0x60] sm:$0xff]
      %v714 = vld [vmem:[%s700 + $0x68] sm:$0xff]
      %v715 = vld [vmem:[%s700 + $0x70] sm:$0xff]
      %v716 = vld [vmem:[%s700 + $0x78] sm:$0xff]
      %v717 = vld [vmem:[%s700 + $0x80] sm:$0xff]
      %v718 = vld [vmem:[%s700 + $0x88] sm:$0xff]
      %v719 = vld [vmem:[%s700 + $0x90] sm:$0xff]
      %v720 = vld [vmem:[%s700 + $0x98] sm:$0xff]
      %v721 = vld [vmem:[%s700 + $0xa0] sm:$0xff]
      %v722 = vld [vmem:[%s700 + $0xa8] sm:$0xff]
      %v723 = vld [vmem:[%s700 + $0xb0] sm:$0xff]
      %v724 = vld [vmem:[%s700 + $0xb8] sm:$0xff]
      %v725 = vld [vmem:[%s700 + $0xc0] sm:$0xff]
      %v726 = vld [vmem:[%s700 + $0xc8] sm:$0xff]
      %v727 = vld [vmem:[%s700 + $0xd0] sm:$0xff]
      %v728 = vld [vmem:[%s700 + $0xd8] sm:$0xff]
      %v729 = vld [vmem:[%s700 + $0xe0] sm:$0xff]
      %v730 = vld [vmem:[%s700 + $0xe8] sm:$0xff]
      %v731 = vld [vmem:[%s700 + $0xf0] sm:$0xff]
      %v732 = vld [vmem:[%s700 + $0xf8] sm:$0xff]
      %v765 = vunpack.c.l.b16 %v701
      %v766 = vunpack.c.h.b16 %v701
      %v767 = vunpack.c.l.b16 %v702
      %v768 = vunpack.c.h.b16 %v702
      %v769 = vunpack.c.l.b16 %v703
      %v770 = vunpack.c.h.b16 %v703
      %v771 = vunpack.c.l.b16 %v704
      %v772 = vunpack.c.h.b16 %v704
      %v773 = vunpack.c.l.b16 %v705
      %v774 = vunpack.c.h.b16 %v705
      %v775 = vunpack.c.l.b16 %v706
      %v776 = vunpack.c.h.b16 %v706
      %v777 = vunpack.c.l.b16 %v707
      %v778 = vunpack.c.h.b16 %v707
      %v779 = vunpack.c.l.b16 %v708
      %v780 = vunpack.c.h.b16 %v708
      %v781 = vunpack.c.l.b16 %v709
      %v782 = vunpack.c.h.b16 %v709
      %v783 = vunpack.c.l.b16 %v710
      %v784 = vunpack.c.h.b16 %v710
      %v785 = vunpack.c.l.b16 %v711
      %v786 = vunpack.c.h.b16 %v711
      %v787 = vunpack.c.l.b16 %v712
      %v788 = vunpack.c.h.b16 %v712
      %v789 = vunpack.c.l.b16 %v713
      %v790 = vunpack.c.h.b16 %v713
      %v791 = vunpack.c.l.b16 %v714
      %v792 = vunpack.c.h.b16 %v714
      %v793 = vunpack.c.l.b16 %v715
      %v794 = vunpack.c.h.b16 %v715
      %v795 = vunpack.c.l.b16 %v716
      %v796 = vunpack.c.h.b16 %v716
      %v797 = vunpack.c.l.b16 %v717
      %v798 = vunpack.c.h.b16 %v717
      %v799 = vunpack.c.l.b16 %v718
      %v800 = vunpack.c.h.b16 %v718
      %v801 = vunpack.c.l.b16 %v719
      %v802 = vunpack.c.h.b16 %v719
      %v803 = vunpack.c.l.b16 %v720
      %v804 = vunpack.c.h.b16 %v720
      %v805 = vunpack.c.l.b16 %v721
      %v806 = vunpack.c.h.b16 %v721
      %v807 = vunpack.c.l.b16 %v722
      %v808 = vunpack.c.h.b16 %v722
      %v809 = vunpack.c.l.b16 %v723
      %v810 = vunpack.c.h.b16 %v723
      %v811 = vunpack.c.l.b16 %v724
      %v812 = vunpack.c.h.b16 %v724
      %v813 = vunpack.c.l.b16 %v725
      %v814 = vunpack.c.h.b16 %v725
      %v815 = vunpack.c.l.b16 %v726
      %v816 = vunpack.c.h.b16 %v726
      %v817 = vunpack.c.l.b16 %v727
      %v818 = vunpack.c.h.b16 %v727
      %v819 = vunpack.c.l.b16 %v728
      %v820 = vunpack.c.h.b16 %v728
      %v821 = vunpack.c.l.b16 %v729
      %v822 = vunpack.c.h.b16 %v729
      %v823 = vunpack.c.l.b16 %v730
      %v824 = vunpack.c.h.b16 %v730
      %v825 = vunpack.c.l.b16 %v731
      %v826 = vunpack.c.h.b16 %v731
      %v827 = vunpack.c.l.b16 %v732
      %v828 = vunpack.c.h.b16 %v732
      %v829 = vpack.c.b16 %v767, %v765
      %v830 = vpack.c.b16 %v768, %v766
      %v831 = vpack.c.b16 %v771, %v769
      %v832 = vpack.c.b16 %v772, %v770
      %v833 = vpack.c.b16 %v775, %v773
      %v834 = vpack.c.b16 %v776, %v774
      %v835 = vpack.c.b16 %v779, %v777
      %v836 = vpack.c.b16 %v780, %v778
      %v837 = vpack.c.b16 %v783, %v781
      %v838 = vpack.c.b16 %v784, %v782
      %v839 = vpack.c.b16 %v787, %v785
      %v840 = vpack.c.b16 %v788, %v786
      %v841 = vpack.c.b16 %v791, %v789
      %v842 = vpack.c.b16 %v792, %v790
      %v843 = vpack.c.b16 %v795, %v793
      %v844 = vpack.c.b16 %v796, %v794
      %v845 = vpack.c.b16 %v799, %v797
      %v846 = vpack.c.b16 %v800, %v798
      %v847 = vpack.c.b16 %v803, %v801
      %v848 = vpack.c.b16 %v804, %v802
      %v849 = vpack.c.b16 %v807, %v805
      %v850 = vpack.c.b16 %v808, %v806
      %v851 = vpack.c.b16 %v811, %v809
      %v852 = vpack.c.b16 %v812, %v810
      %v853 = vpack.c.b16 %v815, %v813
      %v854 = vpack.c.b16 %v816, %v814
      %v855 = vpack.c.b16 %v819, %v817
      %v856 = vpack.c.b16 %v820, %v818
      %v857 = vpack.c.b16 %v823, %v821
      %v858 = vpack.c.b16 %v824, %v822
      %v859 = vpack.c.b16 %v827, %v825
      %v860 = vpack.c.b16 %v828, %v826
      %893 = vmatprep.subr.bf16.mxu0 %v844
      %894 = vmatpush1.bf16.msra.mxu0 %v843
      %895 = vmatprep.subr.bf16.mxu0 %v842
      %896 = vmatpush1.bf16.msra.mxu0 %v841
      %897 = vmatprep.subr.bf16.mxu0 %v840
      %898 = vmatpush1.bf16.msra.mxu0 %v839
      %899 = vmatprep.subr.bf16.mxu0 %v838
      %900 = vmatpush1.bf16.msra.mxu0 %v837
      %901 = vmatprep.subr.bf16.mxu0 %v836
      %902 = vmatpush1.bf16.msra.mxu0 %v835
      %903 = vmatprep.subr.bf16.mxu0 %v834
      %904 = vmatpush1.bf16.msra.mxu0 %v833
      %905 = vmatprep.subr.bf16.mxu0 %v832
      %906 = vmatpush1.bf16.msra.mxu0 %v831
      %907 = vmatprep.subr.bf16.mxu0 %v830
      %908 = vmatpush1.bf16.msra.mxu0 %v829
      %909 = vmatprep.subr.bf16.mxu0 %v860
      %910 = vmatpush2.bf16.msra.mxu0 %v859
      %911 = vmatprep.subr.bf16.mxu0 %v858
      %912 = vmatpush2.bf16.msra.mxu0 %v857
      %913 = vmatprep.subr.bf16.mxu0 %v856
      %914 = vmatpush2.bf16.msra.mxu0 %v855
      %915 = vmatprep.subr.bf16.mxu0 %v854
      %916 = vmatpush2.bf16.msra.mxu0 %v853
      %917 = vmatprep.subr.bf16.mxu0 %v852
      %918 = vmatpush2.bf16.msra.mxu0 %v851
      %919 = vmatprep.subr.bf16.mxu0 %v850
      %920 = vmatpush2.bf16.msra.mxu0 %v849
      %921 = vmatprep.subr.bf16.mxu0 %v848
      %922 = vmatpush2.bf16.msra.mxu0 %v847
      %923 = vmatprep.subr.bf16.mxu0 %v846
      %924 = vmatpush2.bf16.msra.mxu0 %v845
      %925 = vmatprep.mubr.bf16.mxu0 %v699
      %926 = vmatmul.mubr.bf16.gmra.mxu0 %v698
      %v927 = vpop.f32.mrf.mxu0
      %v928 = vadd.f32 0.0, %v927
      %v929 = vpop.f32.mrf.mxu0
      %v930 = vadd.f32 0.0, %v929
      %v931 = vpop.f32.mrf.mxu0
      %v932 = vpop.f32.mrf.mxu0
      %933 = vdwg.mxu0
      %v934 = vadd.f32 %v692, %v928
      %v935 = vadd.f32 %v694, %v930
      %936 = vst [vmem:[%s204] sm:$0xff] %v934
      %937 = vst [vmem:[%s204 + $0x8] sm:$0xff] %v935
      %v938 = vld [vmem:[%s2] sm:$0xff]
      %v939 = vld [vmem:[%s2 + $0x8] sm:$0xff]
      %v940 = vld [vmem:[%s2 + $0x10] sm:$0xff]
      %v941 = vld [vmem:[%s2 + $0x18] sm:$0xff]
      %v942 = vld [vmem:[%s2 + $0x20] sm:$0xff]
      %v943 = vld [vmem:[%s2 + $0x28] sm:$0xff]
      %v944 = vld [vmem:[%s2 + $0x30] sm:$0xff]
      %v945 = vld [vmem:[%s2 + $0x38] sm:$0xff]
      %v946 = vld [vmem:[%s2 + $0x40] sm:$0xff]
      %v947 = vld [vmem:[%s2 + $0x48] sm:$0xff]
      %v948 = vld [vmem:[%s2 + $0x50] sm:$0xff]
      %v949 = vld [vmem:[%s2 + $0x58] sm:$0xff]
      %v950 = vld [vmem:[%s2 + $0x60] sm:$0xff]
      %v951 = vld [vmem:[%s2 + $0x68] sm:$0xff]
      %v952 = vld [vmem:[%s2 + $0x70] sm:$0xff]
      %v953 = vld [vmem:[%s2 + $0x78] sm:$0xff]
      %v954 = vld [vmem:[%s2 + $0x80] sm:$0xff]
      %v955 = vld [vmem:[%s2 + $0x88] sm:$0xff]
      %v956 = vld [vmem:[%s2 + $0x90] sm:$0xff]
      %v957 = vld [vmem:[%s2 + $0x98] sm:$0xff]
      %v958 = vld [vmem:[%s2 + $0xa0] sm:$0xff]
      %v959 = vld [vmem:[%s2 + $0xa8] sm:$0xff]
      %v960 = vld [vmem:[%s2 + $0xb0] sm:$0xff]
      %v961 = vld [vmem:[%s2 + $0xb8] sm:$0xff]
      %v962 = vld [vmem:[%s2 + $0xc0] sm:$0xff]
      %v963 = vld [vmem:[%s2 + $0xc8] sm:$0xff]
      %v964 = vld [vmem:[%s2 + $0xd0] sm:$0xff]
      %v965 = vld [vmem:[%s2 + $0xd8] sm:$0xff]
      %v966 = vld [vmem:[%s2 + $0xe0] sm:$0xff]
      %v967 = vld [vmem:[%s2 + $0xe8] sm:$0xff]
      %v968 = vld [vmem:[%s2 + $0xf0] sm:$0xff]
      %v969 = vld [vmem:[%s2 + $0xf8] sm:$0xff]
      %v970 = vrot.slane %v934, 4
      %v971 = vadd.f32 %v934, %v970
      %v972 = vrot.slane %v971, 2
      %v973 = vadd.f32 %v971, %v972
      %v974 = vrot.slane %v973, 1
      %v975 = vadd.f32 %v973, %v974
      %v976 = vrot.slane %v935, 4
      %v977 = vadd.f32 %v935, %v976
      %v978 = vrot.slane %v977, 2
      %v979 = vadd.f32 %v977, %v978
      %v980 = vrot.slane %v979, 1
      %v981 = vadd.f32 %v979, %v980
      %982 = vmatprep.subr.mxu0 0.0
      %983 = vmatpush1.msra.mxu0 %v953
      %984 = vmatprep.subr.mxu0 0.0
      %985 = vmatpush1.msra.mxu0 %v952
      %986 = vmatprep.subr.mxu0 0.0
      %987 = vmatpush1.msra.mxu0 %v951
      %988 = vmatprep.subr.mxu0 0.0
      %989 = vmatpush1.msra.mxu0 %v950
      %990 = vmatprep.subr.mxu0 0.0
      %991 = vmatpush1.msra.mxu0 %v949
      %992 = vmatprep.subr.mxu0 0.0
      %993 = vmatpush1.msra.mxu0 %v948
      %994 = vmatprep.subr.mxu0 0.0
      %995 = vmatpush1.msra.mxu0 %v947
      %996 = vmatprep.subr.mxu0 0.0
      %997 = vmatpush1.msra.mxu0 %v946
      %998 = vmatprep.subr.mxu0 0.0
      %999 = vmatpush1.msra.mxu0 %v945
      %1000 = vmatprep.subr.mxu0 0.0
      %1001 = vmatpush1.msra.mxu0 %v944
      %1002 = vmatprep.subr.mxu0 0.0
      %1003 = vmatpush1.msra.mxu0 %v943
      %1004 = vmatprep.subr.mxu0 0.0
      %1005 = vmatpush1.msra.mxu0 %v942
      %1006 = vmatprep.subr.mxu0 0.0
      %1007 = vmatpush1.msra.mxu0 %v941
      %1008 = vmatprep.subr.mxu0 0.0
      %1009 = vmatpush1.msra.mxu0 %v940
      %1010 = vmatprep.subr.mxu0 0.0
      %1011 = vmatpush1.msra.mxu0 %v939
      %1012 = vmatprep.subr.mxu0 0.0
      %1013 = vmatpush1.msra.mxu0 %v938
      %1014 = vmatprep.subr.mxu0 0.0
      %1015 = vmatpush2.msra.mxu0 %v969
      %1016 = vmatprep.subr.mxu0 0.0
      %1017 = vmatpush2.msra.mxu0 %v968
      %1018 = vmatprep.subr.mxu0 0.0
      %1019 = vmatpush2.msra.mxu0 %v967
      %1020 = vmatprep.subr.mxu0 0.0
      %1021 = vmatpush2.msra.mxu0 %v966
      %1022 = vmatprep.subr.mxu0 0.0
      %1023 = vmatpush2.msra.mxu0 %v965
      %1024 = vmatprep.subr.mxu0 0.0
      %1025 = vmatpush2.msra.mxu0 %v964
      %1026 = vmatprep.subr.mxu0 0.0
      %1027 = vmatpush2.msra.mxu0 %v963
      %1028 = vmatprep.subr.mxu0 0.0
      %1029 = vmatpush2.msra.mxu0 %v962
      %1030 = vmatprep.subr.mxu0 0.0
      %1031 = vmatpush2.msra.mxu0 %v961
      %1032 = vmatprep.subr.mxu0 0.0
      %1033 = vmatpush2.msra.mxu0 %v960
      %1034 = vmatprep.subr.mxu0 0.0
      %1035 = vmatpush2.msra.mxu0 %v959
      %1036 = vmatprep.subr.mxu0 0.0
      %1037 = vmatpush2.msra.mxu0 %v958
      %1038 = vmatprep.subr.mxu0 0.0
      %1039 = vmatpush2.msra.mxu0 %v957
      %1040 = vmatprep.subr.mxu0 0.0
      %1041 = vmatpush2.msra.mxu0 %v956
      %1042 = vmatprep.subr.mxu0 0.0
      %1043 = vmatpush2.msra.mxu0 %v955
      %1044 = vmatprep.subr.mxu0 0.0
      %1045 = vmatpush2.msra.mxu0 %v954
      %1046 = vmatprep.mubr.f32.mxu0 %v981
      %1047 = vmatmul.mubr.f32.gmra.mxu0 %v975
      %v1048 = vpop.f32.mrf.mxu0
      %v1049 = vadd.f32 0.0, %v1048
      %v1050 = vpop.f32.mrf.mxu0
      %1051 = vdwg.mxu0
      %v1052 = vmul.f32 %v934, %v934
      %v1053 = vmul.f32 %v935, %v935
      %v1054 = vrot.slane %v1052, 4
      %v1055 = vadd.f32 %v1052, %v1054
      %v1056 = vrot.slane %v1055, 2
      %v1057 = vadd.f32 %v1055, %v1056
      %v1058 = vrot.slane %v1057, 1
      %v1059 = vadd.f32 %v1057, %v1058
      %v1060 = vrot.slane %v1053, 4
      %v1061 = vadd.f32 %v1053, %v1060
      %v1062 = vrot.slane %v1061, 2
      %v1063 = vadd.f32 %v1061, %v1062
      %v1064 = vrot.slane %v1063, 1
      %v1065 = vadd.f32 %v1063, %v1064
      %1066 = vmatprep.subr.mxu0 0.0
      %1067 = vmatpush1.msra.mxu0 %v953
      %1068 = vmatprep.subr.mxu0 0.0
      %1069 = vmatpush1.msra.mxu0 %v952
      %1070 = vmatprep.subr.mxu0 0.0
      %1071 = vmatpush1.msra.mxu0 %v951
      %1072 = vmatprep.subr.mxu0 0.0
      %1073 = vmatpush1.msra.mxu0 %v950
      %1074 = vmatprep.subr.mxu0 0.0
      %1075 = vmatpush1.msra.mxu0 %v949
      %1076 = vmatprep.subr.mxu0 0.0
      %1077 = vmatpush1.msra.mxu0 %v948
      %1078 = vmatprep.subr.mxu0 0.0
      %1079 = vmatpush1.msra.mxu0 %v947
      %1080 = vmatprep.subr.mxu0 0.0
      %1081 = vmatpush1.msra.mxu0 %v946
      %1082 = vmatprep.subr.mxu0 0.0
      %1083 = vmatpush1.msra.mxu0 %v945
      %1084 = vmatprep.subr.mxu0 0.0
      %1085 = vmatpush1.msra.mxu0 %v944
      %1086 = vmatprep.subr.mxu0 0.0
      %1087 = vmatpush1.msra.mxu0 %v943
      %1088 = vmatprep.subr.mxu0 0.0
      %1089 = vmatpush1.msra.mxu0 %v942
      %1090 = vmatprep.subr.mxu0 0.0
      %1091 = vmatpush1.msra.mxu0 %v941
      %1092 = vmatprep.subr.mxu0 0.0
      %1093 = vmatpush1.msra.mxu0 %v940
      %1094 = vmatprep.subr.mxu0 0.0
      %1095 = vmatpush1.msra.mxu0 %v939
      %1096 = vmatprep.subr.mxu0 0.0
      %1097 = vmatpush1.msra.mxu0 %v938
      %1098 = vmatprep.subr.mxu0 0.0
      %1099 = vmatpush2.msra.mxu0 %v969
      %1100 = vmatprep.subr.mxu0 0.0
      %1101 = vmatpush2.msra.mxu0 %v968
      %1102 = vmatprep.subr.mxu0 0.0
      %1103 = vmatpush2.msra.mxu0 %v967
      %1104 = vmatprep.subr.mxu0 0.0
      %1105 = vmatpush2.msra.mxu0 %v966
      %1106 = vmatprep.subr.mxu0 0.0
      %1107 = vmatpush2.msra.mxu0 %v965
      %1108 = vmatprep.subr.mxu0 0.0
      %1109 = vmatpush2.msra.mxu0 %v964
      %1110 = vmatprep.subr.mxu0 0.0
      %1111 = vmatpush2.msra.mxu0 %v963
      %1112 = vmatprep.subr.mxu0 0.0
      %1113 = vmatpush2.msra.mxu0 %v962
      %1114 = vmatprep.subr.mxu0 0.0
      %1115 = vmatpush2.msra.mxu0 %v961
      %1116 = vmatprep.subr.mxu0 0.0
      %1117 = vmatpush2.msra.mxu0 %v960
      %1118 = vmatprep.subr.mxu0 0.0
      %1119 = vmatpush2.msra.mxu0 %v959
      %1120 = vmatprep.subr.mxu0 0.0
      %1121 = vmatpush2.msra.mxu0 %v958
      %1122 = vmatprep.subr.mxu0 0.0
      %1123 = vmatpush2.msra.mxu0 %v957
      %1124 = vmatprep.subr.mxu0 0.0
      %1125 = vmatpush2.msra.mxu0 %v956
      %1126 = vmatprep.subr.mxu0 0.0
      %1127 = vmatpush2.msra.mxu0 %v955
      %1128 = vmatprep.subr.mxu0 0.0
      %1129 = vmatpush2.msra.mxu0 %v954
      %1130 = vmatprep.mubr.f32.mxu0 %v1065
      %1131 = vmatmul.mubr.f32.gmra.mxu0 %v1059
      %v1132 = vpop.f32.mrf.mxu0
      %v1133 = vadd.f32 0.0, %v1132
      %v1134 = vpop.f32.mrf.mxu0
      %1135 = vdwg.mxu0
      %v1137 = vrot.slane %v1133, 7
      %v1139 = vsel %vm217, %v1049, %v1137
      %1140 = vst [vmem:[%s208] sm:$0x3] %v1139
      %p1141 = scmp.lt.s32.totalorder %s16, 1
      %s1142 = scalar_select %p1141, %s16, 1
      %s1143 = smul.addr %s1142, 2
      %s1144 = smul.addr %s1143, 8
      %s1145 = scalar_lea.vmem %s3, %s1144
      %p1146 = scmp.lt.s32.totalorder %s16, 1
      %s1147 = scalar_select %p1146, %s16, 1
      %s1148 = smul.addr %s1147, 2
      %s1149 = scalar_lea.vmem %s4, %s1148
      // Predicated region
      $region33: #{residual_forward.3} parent=31 // pred_check
        %p1150 = pneg %p102
      $region34: #{residual_forward.3} parent=31 // pred_check_branch
        %1152 = sbr.rel (%p1150) target = $region36
      $region35: #{residual_forward.3} parent=31 // pred_region
        _
      $region36: #{residual_forward.3} parent=31 // pred_fallthru
        _
      // Predicated region
      $region37: #{residual_forward.3} parent=31 // pred_check
        %p1153 = pneg %p128
      $region38: #{residual_forward.3} parent=31 // pred_check_branch
        %1155 = sbr.rel (%p1153) target = $region40
      $region39: #{residual_forward.3} parent=31 // pred_region
        _
      $region40: #{residual_forward.3} parent=31 // pred_fallthru
        _
    $region32: #{residual_forward.3} parent=5 // pred_fallthru
      _
    %p1156 = scmp.le.s32.totalorder 2, %s11
    // Predicated region
    $region41: #{residual_forward.3} parent=5 // pred_check
      %p1157 = pneg %p1156
    $region42: #{residual_forward.3} parent=5 // pred_check_branch
      %1159 = sbr.rel (%p1157) target = $region44
    $region43: #{residual_forward.3} parent=5 // pred_region
      %s1160 = ssub.s32 %s11, 2
      // Predicated region
      $region45: #{residual_forward.3} parent=43 // pred_check
        %p1161 = pneg %p108
      $region46: #{residual_forward.3} parent=43 // pred_check_branch
        %1163 = sbr.rel (%p1161) target = $region48
      $region47: #{residual_forward.3} parent=43 // pred_region
        %p1164 = scmp.lt.s32.totalorder %s17, 1
        %s1165 = scalar_select %p1164, %s17, 1
        %s1166 = smul.addr %s1165, 2
        %s1167 = smul.addr %s1166, 8
        %s1168 = scalar_lea.vmem %s3, %s1167
      $region48: #{residual_forward.3} parent=43 // pred_fallthru
        _
      // Predicated region
      $region49: #{residual_forward.3} parent=43 // pred_check
        %p1169 = pneg %p134
      $region50: #{residual_forward.3} parent=43 // pred_check_branch
        %1171 = sbr.rel (%p1169) target = $region52
      $region51: #{residual_forward.3} parent=43 // pred_region
        %p1172 = scmp.lt.s32.totalorder %s17, 1
        %s1173 = scalar_select %p1172, %s17, 1
        %s1174 = smul.addr %s1173, 2
        %s1175 = scalar_lea.vmem %s4, %s1174
      $region52: #{residual_forward.3} parent=43 // pred_fallthru
        _
    $region44: #{residual_forward.3} parent=5 // pred_fallthru
      _
  $region6: #{residual_forward.3} parent=0 // loop_footer
    %s15 = sadd.s32 1, %s11
  $region7: #{residual_forward.3} parent=0 // loop_footer_branch
    %10 = sbr.rel target = $region3
  $region8: #{residual_forward.3} parent=0 // loop_exit
    _

// kernel: tile.23
$region0: #{tile.23}
  #allocation0 [shape = 's32[1]{0}', space=sflag, size = 0x4, scoped, tag = 'scoped memory for tile.23']
  %s0 = inlined_call_operand.vmem [shape: f32[4], index: 0, kind: input, shape index: {}]
  %s1 = inlined_call_operand.vmem [shape: f32[64,4], index: 1, kind: output, shape index: {}]
  // Predicated region
  $region2: #{tile.23} parent=0 // pred_check
    _
  $region3: #{tile.23} parent=0 // pred_check_branch
    %3 = sbr.rel (0) target = $region5
  $region4: #{tile.23} parent=0 // pred_region
    _
  $region5: #{tile.23} parent=0 // pred_fallthru
    _
  %v4 = vld [vmem:[%s0] ss:$0 sm:$0xff]
  %5 = vst [vmem:[%s1] sm:$0xff] %v4
  %s6 = scalar_lea.vmem %s1, 8
  %7 = vst [vmem:[%s6] sm:$0xff] %v4
  %s8 = scalar_lea.vmem %s1, 16
  %9 = vst [vmem:[%s8] sm:$0xff] %v4
  %s10 = scalar_lea.vmem %s1, 24
  %11 = vst [vmem:[%s10] sm:$0xff] %v4
  %s12 = scalar_lea.vmem %s1, 32
  %13 = vst [vmem:[%s12] sm:$0xff] %v4
  %s14 = scalar_lea.vmem %s1, 40
  %15 = vst [vmem:[%s14] sm:$0xff] %v4
  %s16 = scalar_lea.vmem %s1, 48
  %17 = vst [vmem:[%s16] sm:$0xff] %v4
  %s18 = scalar_lea.vmem %s1, 56
  %19 = vst [vmem:[%s18] sm:$0xff] %v4

// kernel: tile.24
$region0: #{tile.24}
  %s0 = inlined_call_operand.vmem [shape: f32[64,4], index: 0, kind: input, shape index: {}]
  %s1 = inlined_call_operand.vmem [shape: f32[1,256], index: 1, kind: output, shape index: {}]
  $region1: #{tile.24} parent=0
    #allocation0 [shape = 'u8[8192]{0}', space=vmem, size = 0x2000, scoped, tag = 'scoped mem for output reshape']
    %v2 = vld [vmem:[%s0] sm:$0x1]
    %s3 = scalar_lea.vmem %s0, 31
    %v4 = vld [vmem:[%s3] sm:$0x2]
    %vm5 = vcmask 1041409
    %v6 = vsel %vm5, %v4, %v2
    %vm7 = vcmask 31744
    %8 = vst.msk [vmem:[#allocation0] ss:$8 sm:$0x3] %vm7, %v6
    %s9 = scalar_lea.vmem %s0, 31
    %v10 = vld [vmem:[%s9] sm:$0x1]
    %s11 = scalar_lea.vmem %s0, 62
    %v12 = vld [vmem:[%s11] sm:$0x2]
    %vm13 = vcmask 1041409
    %v14 = vsel %vm13, %v12, %v10
    %15 = vrot.lane.b32.xlu0 %v14, 124
    %v16 = vpop.permute.xlu0 %15
    %vm17 = vcmask 1048544
    %18 = vst.msk [vmem:[#allocation0] ss:$8 sm:$0x3] %vm17, %v16
    %s19 = scalar_lea.vmem %s0, 30
    %v20 = vld [vmem:[%s19] sm:$0x1]
    %s21 = scalar_lea.vmem %s0, 61
    %v22 = vld [vmem:[%s21] sm:$0x2]
    %vm23 = vcmask 1041409
    %v24 = vsel %vm23, %v22, %v20
    %25 = vrot.lane.b32.xlu0 %v24, 120
    %v26 = vpop.permute.xlu0 %25
    %vm27 = vcmask 1015744
    %28 = vst.msk [vmem:[#allocation0] ss:$8 sm:$0x3] %vm27, %v26
    %s29 = scalar_lea.vmem %s0, 29
    %v30 = vld [vmem:[%s29] sm:$0x1]
    %s31 = scalar_lea.vmem %s0, 60
    %v32 = vld [vmem:[%s31] sm:$0x2]
    %vm33 = vcmask 1041409
    %v34 = vsel %vm33, %v32, %v30
    %35 = vrot.lane.b32.xlu0 %v34, 116
    %v36 = vpop.permute.xlu0 %35
    %vm37 = vcmask 982944
    %38 = vst.msk [vmem:[#allocation0] ss:$8 sm:$0x3] %vm37, %v36
    %s39 = scalar_lea.vmem %s0, 28
    %v40 = vld [vmem:[%s39] sm:$0x1]
    %s41 = scalar_lea.vmem %s0, 59
    %v42 = vld [vmem:[%s41] sm:$0x2]
    %vm43 = vcmask 1041409
    %v44 = vsel %vm43, %v42, %v40
    %45 = vrot.lane.b32.xlu0 %v44, 112
    %v46 = vpop.permute.xlu0 %45
    %vm47 = vcmask 950144
    %48 = vst.msk [vmem:[#allocation0] ss:$8 sm:$0x3] %vm47, %v46
    %s49 = scalar_lea.vmem %s0, 27
    %v50 = vld [vmem:[%s49] sm:$0x1]
    %s51 = scalar_lea.vmem %s0, 58
    %v52 = vld [vmem:[%s51] sm:$0x2]
    %vm53 = vcmask 1041409
    %v54 = vsel %vm53, %v52, %v50
    %55 = vrot.lane.b32.xlu0 %v54, 108
    %v56 = vpop.permute.xlu0 %55
    %vm57 = vcmask 917344
    %58 = vst.msk [vmem:[#allocation0] ss:$8 sm:$0x3] %vm57, %v56
    %s59 = scalar_lea.vmem %s0, 26
    %v60 = vld [vmem:[%s59] sm:$0x1]
    %s61 = scalar_lea.vmem %s0, 57
    %v62 = vld [vmem:[%s61] sm:$0x2]
    %vm63 = vcmask 1041409
    %v64 = vsel %vm63, %v62, %v60
    %65 = vrot.lane.b32.xlu0 %v64, 104
    %v66 = vpop.permute.xlu0 %65
    %vm67 = vcmask 884544
    %68 = vst.msk [vmem:[#allocation0] ss:$8 sm:$0x3] %vm67, %v66
    %s69 = scalar_lea.vmem %s0, 25
    %v70 = vld [vmem:[%s69] sm:$0x1]
    %s71 = scalar_lea.vmem %s0, 56
    %v72 = vld [vmem:[%s71] sm:$0x2]
    %vm73 = vcmask 1041409
    %v74 = vsel %vm73, %v72, %v70
    %75 = vrot.lane.b32.xlu0 %v74, 100
    %v76 = vpop.permute.xlu0 %75
    %vm77 = vcmask 851744
    %78 = vst.msk [vmem:[#allocation0] ss:$8 sm:$0x3] %vm77, %v76
    %s79 = scalar_lea.vmem %s0, 24
    %v80 = vld [vmem:[%s79] sm:$0x1]
    %s81 = scalar_lea.vmem %s0, 55
    %v82 = vld [vmem:[%s81] sm:$0x2]
    %vm83 = vcmask 1041409
    %v84 = vsel %vm83, %v82, %v80
    %85 = vrot.lane.b32.xlu0 %v84, 96
    %v86 = vpop.permute.xlu0 %85
    %vm87 = vcmask 818944
    %88 = vst.msk [vmem:[#allocation0] ss:$8 sm:$0x3] %vm87, %v86
    %s89 = scalar_lea.vmem %s0, 23
    %v90 = vld [vmem:[%s89] sm:$0x1]
    %s91 = scalar_lea.vmem %s0, 54
    %v92 = vld [vmem:[%s91] sm:$0x2]
    %vm93 = vcmask 1041409
    %v94 = vsel %vm93, %v92, %v90
    %95 = vrot.lane.b32.xlu0 %v94, 92
    %v96 = vpop.permute.xlu0 %95
    %vm97 = vcmask 786144
    %98 = vst.msk [vmem:[#allocation0] ss:$8 sm:$0x3] %vm97, %v96
    %s99 = scalar_lea.vmem %s0, 22
    %v100 = vld [vmem:[%s99] sm:$0x1]
    %s101 = scalar_lea.vmem %s0, 53
    %v102 = vld [vmem:[%s101] sm:$0x2]
    %vm103 = vcmask 1041409
    %v104 = vsel %vm103, %v102, %v100
    %105 = vrot.lane.b32.xlu0 %v104, 88
    %v106 = vpop.permute.xlu0 %105
    %vm107 = vcmask 753344
    %108 = vst.msk [vmem:[#allocation0] ss:$8 sm:$0x3] %vm107, %v106
    %s109 = scalar_lea.vmem %s0, 21
    %v110 = vld [vmem:[%s109] sm:$0x1]
    %s111 = scalar_lea.vmem %s0, 52
    %v112 = vld [vmem:[%s111] sm:$0x2]
    %vm113 = vcmask 1041409
    %v114 = vsel %vm113, %v112, %v110
    %115 = vrot.lane.b32.xlu0 %v114, 84
    %v116 = vpop.permute.xlu0 %115
    %vm117 = vcmask 720544
    %118 = vst.msk [vmem:[#allocation0] ss:$8 sm:$0x3] %vm117, %v116
    %s119 = scalar_lea.vmem %s0, 20
    %v120 = vld [vmem:[%s119] sm:$0x1]
    %s121 = scalar_lea.vmem %s0, 51
    %v122 = vld [vmem:[%s121] sm:$0x2]
    %vm123 = vcmask 1041409
    %v124 = vsel %vm123, %v122, %v120
    %125 = vrot.lane.b32.xlu0 %v124, 80
    %v126 = vpop.permute.xlu0 %125
    %vm127 = vcmask 687744
    %128 = vst.msk [vmem:[#allocation0] ss:$8 sm:$0x3] %vm127, %v126
    %s129 = scalar_lea.vmem %s0, 19
    %v130 = vld [vmem:[%s129] sm:$0x1]
    %s131 = scalar_lea.vmem %s0, 50
    %v132 = vld [vmem:[%s131] sm:$0x2]
    %vm133 = vcmask 1041409
    %v134 = vsel %vm133, %v132, %v130
    %135 = vrot.lane.b32.xlu0 %v134, 76
    %v136 = vpop.permute.xlu0 %135
    %vm137 = vcmask 654944
    %138 = vst.msk [vmem:[#allocation0] ss:$8 sm:$0x3] %vm137, %v136
    %s139 = scalar_lea.vmem %s0, 18
    %v140 = vld [vmem:[%s139] sm:$0x1]
    %s141 = scalar_lea.vmem %s0, 49
    %v142 = vld [vmem:[%s141] sm:$0x2]
    %vm143 = vcmask 1041409
    %v144 = vsel %vm143, %v142, %v140
    %145 = vrot.lane.b32.xlu0 %v144, 72
    %v146 = vpop.permute.xlu0 %145
    %vm147 = vcmask 622144
    %148 = vst.msk [vmem:[#allocation0] ss:$8 sm:$0x3] %vm147, %v146
    %s149 = scalar_lea.vmem %s0, 17
    %v150 = vld [vmem:[%s149] sm:$0x1]
    %s151 = scalar_lea.vmem %s0, 48
    %v152 = vld [vmem:[%s151] sm:$0x2]
    %vm153 = vcmask 1041409
    %v154 = vsel %vm153, %v152, %v150
    %155 = vrot.lane.b32.xlu0 %v154, 68
    %v156 = vpop.permute.xlu0 %155
    %vm157 = vcmask 589344
    %158 = vst.msk [vmem:[#allocation0] ss:$8 sm:$0x3] %vm157, %v156
    %s159 = scalar_lea.vmem %s0, 16
    %v160 = vld [vmem:[%s159] sm:$0x1]
    %s161 = scalar_lea.vmem %s0, 47
    %v162 = vld [vmem:[%s161] sm:$0x2]
    %vm163 = vcmask 1041409
    %v164 = vsel %vm163, %v162, %v160
    %165 = vrot.lane.b32.xlu0 %v164, 64
    %v166 = vpop.permute.xlu0 %165
    %vm167 = vcmask 556544
    %168 = vst.msk [vmem:[#allocation0] ss:$8 sm:$0x3] %vm167, %v166
    %s169 = scalar_lea.vmem %s0, 15
    %v170 = vld [vmem:[%s169] sm:$0x1]
    %s171 = scalar_lea.vmem %s0, 46
    %v172 = vld [vmem:[%s171] sm:$0x2]
    %vm173 = vcmask 1041409
    %v174 = vsel %vm173, %v172, %v170
    %175 = vrot.lane.b32.xlu0 %v174, 60
    %v176 = vpop.permute.xlu0 %175
    %vm177 = vcmask 523744
    %178 = vst.msk [vmem:[#allocation0] ss:$8 sm:$0x3] %vm177, %v176
    %s179 = scalar_lea.vmem %s0, 14
    %v180 = vld [vmem:[%s179] sm:$0x1]
    %s181 = scalar_lea.vmem %s0, 45
    %v182 = vld [vmem:[%s181] sm:$0x2]
    %vm183 = vcmask 1041409
    %v184 = vsel %vm183, %v182, %v180
    %185 = vrot.lane.b32.xlu0 %v184, 56
    %v186 = vpop.permute.xlu0 %185
    %vm187 = vcmask 490944
    %188 = vst.msk [vmem:[#allocation0] ss:$8 sm:$0x3] %vm187, %v186
    %s189 = scalar_lea.vmem %s0, 13
    %v190 = vld [vmem:[%s189] sm:$0x1]
    %s191 = scalar_lea.vmem %s0, 44
    %v192 = vld [vmem:[%s191] sm:$0x2]
    %vm193 = vcmask 1041409
    %v194 = vsel %vm193, %v192, %v190
    %195 = vrot.lane.b32.xlu0 %v194, 52
    %v196 = vpop.permute.xlu0 %195
    %vm197 = vcmask 458144
    %198 = vst.msk [vmem:[#allocation0] ss:$8 sm:$0x3] %vm197, %v196
    %s199 = scalar_lea.vmem %s0, 12
    %v200 = vld [vmem:[%s199] sm:$0x1]
    %s201 = scalar_lea.vmem %s0, 43
    %v202 = vld [vmem:[%s201] sm:$0x2]
    %vm203 = vcmask 1041409
    %v204 = vsel %vm203, %v202, %v200
    %205 = vrot.lane.b32.xlu0 %v204, 48
    %v206 = vpop.permute.xlu0 %205
    %vm207 = vcmask 425344
    %208 = vst.msk [vmem:[#allocation0] ss:$8 sm:$0x3] %vm207, %v206
    %s209 = scalar_lea.vmem %s0, 11
    %v210 = vld [vmem:[%s209] sm:$0x1]
    %s211 = scalar_lea.vmem %s0, 42
    %v212 = vld [vmem:[%s211] sm:$0x2]
    %vm213 = vcmask 1041409
    %v214 = vsel %vm213, %v212, %v210
    %215 = vrot.lane.b32.xlu0 %v214, 44
    %v216 = vpop.permute.xlu0 %215
    %vm217 = vcmask 392544
    %218 = vst.msk [vmem:[#allocation0] ss:$8 sm:$0x3] %vm217, %v216
    %s219 = scalar_lea.vmem %s0, 10
    %v220 = vld [vmem:[%s219] sm:$0x1]
    %s221 = scalar_lea.vmem %s0, 41
    %v222 = vld [vmem:[%s221] sm:$0x2]
    %vm223 = vcmask 1041409
    %v224 = vsel %vm223, %v222, %v220
    %225 = vrot.lane.b32.xlu0 %v224, 40
    %v226 = vpop.permute.xlu0 %225
    %vm227 = vcmask 359744
    %228 = vst.msk [vmem:[#allocation0] ss:$8 sm:$0x3] %vm227, %v226
    %s229 = scalar_lea.vmem %s0, 9
    %v230 = vld [vmem:[%s229] sm:$0x1]
    %s231 = scalar_lea.vmem %s0, 40
    %v232 = vld [vmem:[%s231] sm:$0x2]
    %vm233 = vcmask 1041409
    %v234 = vsel %vm233, %v232, %v230
    %235 = vrot.lane.b32.xlu0 %v234, 36
    %v236 = vpop.permute.xlu0 %235
    %vm237 = vcmask 326944
    %238 = vst.msk [vmem:[#allocation0] ss:$8 sm:$0x3] %vm237, %v236
    %s239 = scalar_lea.vmem %s0, 8
    %v240 = vld [vmem:[%s239] sm:$0x1]
    %s241 = scalar_lea.vmem %s0, 39
    %v242 = vld [vmem:[%s241] sm:$0x2]
    %vm243 = vcmask 1041409
    %v244 = vsel %vm243, %v242, %v240
    %245 = vrot.lane.b32.xlu0 %v244, 32
    %v246 = vpop.permute.xlu0 %245
    %vm247 = vcmask 294144
    %248 = vst.msk [vmem:[#allocation0] ss:$8 sm:$0x3] %vm247, %v246
    %s249 = scalar_lea.vmem %s0, 7
    %v250 = vld [vmem:[%s249] sm:$0x1]
    %s251 = scalar_lea.vmem %s0, 38
    %v252 = vld [vmem:[%s251] sm:$0x2]
    %vm253 = vcmask 1041409
    %v254 = vsel %vm253, %v252, %v250
    %255 = vrot.lane.b32.xlu0 %v254, 28
    %v256 = vpop.permute.xlu0 %255
    %vm257 = vcmask 261344
    %258 = vst.msk [vmem:[#allocation0] ss:$8 sm:$0x3] %vm257, %v256
    %s259 = scalar_lea.vmem %s0, 6
    %v260 = vld [vmem:[%s259] sm:$0x1]
    %s261 = scalar_lea.vmem %s0, 37
    %v262 = vld [vmem:[%s261] sm:$0x2]
    %vm263 = vcmask 1041409
    %v264 = vsel %vm263, %v262, %v260
    %265 = vrot.lane.b32.xlu0 %v264, 24
    %v266 = vpop.permute.xlu0 %265
    %vm267 = vcmask 228544
    %268 = vst.msk [vmem:[#allocation0] ss:$8 sm:$0x3] %vm267, %v266
    %s269 = scalar_lea.vmem %s0, 5
    %v270 = vld [vmem:[%s269] sm:$0x1]
    %s271 = scalar_lea.vmem %s0, 36
    %v272 = vld [vmem:[%s271] sm:$0x2]
    %vm273 = vcmask 1041409
    %v274 = vsel %vm273, %v272, %v270
    %275 = vrot.lane.b32.xlu0 %v274, 20
    %v276 = vpop.permute.xlu0 %275
    %vm277 = vcmask 195744
    %278 = vst.msk [vmem:[#allocation0] ss:$8 sm:$0x3] %vm277, %v276
    %s279 = scalar_lea.vmem %s0, 4
    %v280 = vld [vmem:[%s279] sm:$0x1]
    %s281 = scalar_lea.vmem %s0, 35
    %v282 = vld [vmem:[%s281] sm:$0x2]
    %vm283 = vcmask 1041409
    %v284 = vsel %vm283, %v282, %v280
    %285 = vrot.lane.b32.xlu0 %v284, 16
    %v286 = vpop.permute.xlu0 %285
    %vm287 = vcmask 162944
    %288 = vst.msk [vmem:[#allocation0] ss:$8 sm:$0x3] %vm287, %v286
    %s289 = scalar_lea.vmem %s0, 3
    %v290 = vld [vmem:[%s289] sm:$0x1]
    %s291 = scalar_lea.vmem %s0, 34
    %v292 = vld [vmem:[%s291] sm:$0x2]
    %vm293 = vcmask 1041409
    %v294 = vsel %vm293, %v292, %v290
    %295 = vrot.lane.b32.xlu0 %v294, 12
    %v296 = vpop.permute.xlu0 %295
    %vm297 = vcmask 130144
    %298 = vst.msk [vmem:[#allocation0] ss:$8 sm:$0x3] %vm297, %v296
    %s299 = scalar_lea.vmem %s0, 2
    %v300 = vld [vmem:[%s299] sm:$0x1]
    %s301 = scalar_lea.vmem %s0, 33
    %v302 = vld [vmem:[%s301] sm:$0x2]
    %vm303 = vcmask 1041409
    %v304 = vsel %vm303, %v302, %v300
    %305 = vrot.lane.b32.xlu0 %v304, 8
    %v306 = vpop.permute.xlu0 %305
    %vm307 = vcmask 97344
    %308 = vst.msk [vmem:[#allocation0] ss:$8 sm:$0x3] %vm307, %v306
    %s309 = scalar_lea.vmem %s0, 1
    %v310 = vld [vmem:[%s309] sm:$0x1]
    %s311 = scalar_lea.vmem %s0, 32
    %v312 = vld [vmem:[%s311] sm:$0x2]
    %vm313 = vcmask 1041409
    %v314 = vsel %vm313, %v312, %v310
    %315 = vrot.lane.b32.xlu0 %v314, 4
    %v316 = vpop.permute.xlu0 %315
    %vm317 = vcmask 64544
    %318 = vst.msk [vmem:[#allocation0] ss:$8 sm:$0x3] %vm317, %v316
    %s320 = sshll.u32 1, 1
    %s321 = ssub.s32 %s320, 1
    %v323 = vld [vmem:[#allocation0] sm:%s321]
    %s324 = sshll.u32 1, 1
    %s325 = ssub.s32 %s324, 1
    %326 = vst [vmem:[%s1] sm:%s325] %v323
    %s327 = scalar_lea.vmem [#allocation0], 8
    %v328 = vld [vmem:[%s327] sm:%s321]
    %s329 = sshll.u32 1, 1
    %s330 = ssub.s32 %s329, 1
    %s331 = scalar_lea.vmem %s1, 1
    %332 = vst [vmem:[%s331] sm:%s330] %v328

// kernel: residual_forward.4
$region0: #{residual_forward.4}
  #allocation0 [shape = 'u32[]', space=smem, size = 0x4, offset = 0x4, fixed_abs, tag = 'smem constant byte address 0x4 - core index']
  #allocation1 [shape = 'u32[144,128]{1,0:T(1,128)}', space=vmem, size = 0x12000, scoped, tag = 'internal scratch']
  %s0 = inlined_call_operand.vmem [shape: f32[2,8,256], index: 0, kind: input, shape index: {}]
  %s1 = inlined_call_operand.vmem [shape: f32[1,256], index: 1, kind: input, shape index: {}]
  %s2 = inlined_call_operand.vmem [shape: f32[1,256], index: 2, kind: input, shape index: {}]
  %s3 = inlined_call_operand.vmem [shape: bf16[3,256,256], index: 3, kind: input, shape index: {}]
  %s4 = inlined_call_operand.vmem [shape: f32[256,128], index: 4, kind: input, shape index: {}]
  %s5 = inlined_call_operand.vmem [shape: f32[2,8,256], index: 5, kind: output, shape index: {0}]
  %s6 = inlined_call_operand.vmem [shape: f32[2,2,128], index: 6, kind: output, shape index: {1}]
  %7 = xla_tuple %s5, %s6
  %s8 = sld [smem:[#allocation0]]
  $region61: #{residual_forward.4} parent=0
    _
  %s10 = ssub.s32 1, %s8
  %s11 = scalar_select 0, %s10, %s8
  loop: start=0, step=1, limit=4
  $region2: #{residual_forward.4} parent=0 // loop_pre_header
    _
  $region3: #{residual_forward.4} parent=0 // loop_header
    %s13 = sphi 0, %s17
    %p14 = scmp.ge.s32.totalorder %s13, 4
    %s23 = sphi 0, %s25
    %s26 = sphi 0, %s23
    %s27 = sphi 0, %s26
    %s43 = sphi 0, %s27
    %s47 = sphi 0, %s47
    %s49 = sphi 0, %s47
    %s50 = sphi 0, %s49
    %s64 = sphi 0, %s50
    %s68 = sphi 0, %s68
    %s70 = sphi 0, %s68
    %s71 = sphi 0, %s70
    %s85 = sphi 0, %s71
    %s89 = sphi 0, %s89
    %s91 = sphi 0, %s89
    %s92 = sphi 0, %s91
    %s106 = sphi 0, %s92
    %s110 = sphi 0, %s110
    %s112 = sphi 0, %s110
    %s113 = sphi 0, %s112
    %s127 = sphi 0, %s113
    %s133 = sphi 0, %s135
    %s136 = sphi 0, %s133
    %s137 = sphi 0, %s136
    %s153 = sphi 0, %s137
    %s159 = sphi 0, %s161
    %s162 = sphi 0, %s159
    %s163 = sphi 0, %s162
    %s179 = sphi 0, %s163
  $region4: #{residual_forward.4} parent=0 // loop_header_branch
    %16 = sbr.rel (%p14) target = $region8
  $region5: #{residual_forward.4} parent=0 // loop_body
    %s18 = ssub.s32 %s13, 1
    %s19 = ssub.s32 %s13, 2
    %s20 = sadd.s32 %s13, 1
    %s21 = ssub.s32 %s13, %s20
    %p22 = scmp.eq.s32.totalorder %s21, 0
    %s24 = sadd.s32 %s23, 1
    %s25 = scalar_select %p22, %s23, %s24
    %p28 = pneg %p22
    %p29 = scmp.eq.s32.totalorder %s13, 1
    %p30 = por %p28, %p29
    %p31 = scmp.ne.s32.totalorder %s23, %s26
    %p32 = scmp.eq.s32.totalorder %s13, 0
    %p33 = por %p31, %p32
    %p34 = scmp.ne.s32.totalorder %s23, %s26
    %p35 = scmp.eq.s32.totalorder %s18, 1
    %p36 = por %p34, %p35
    %p37 = scmp.ne.s32.totalorder %s26, %s27
    %p38 = scmp.eq.s32.totalorder %s18, 0
    %p39 = por %p37, %p38
    %p40 = scmp.ne.s32.totalorder %s26, %s27
    %p41 = scmp.eq.s32.totalorder %s19, 1
    %p42 = por %p40, %p41
    %p44 = scmp.ne.s32.totalorder %s27, %s43
    %p45 = scmp.eq.s32.totalorder %s19, 0
    %p46 = por %p44, %p45
    %s48 = sadd.s32 %s47, 1
    %p51 = scmp.eq.s32.totalorder %s13, 1
    %p52 = scmp.ne.s32.totalorder %s47, %s49
    %p53 = scmp.eq.s32.totalorder %s13, 0
    %p54 = por %p52, %p53
    %p55 = scmp.ne.s32.totalorder %s47, %s49
    %p56 = scmp.eq.s32.totalorder %s18, 1
    %p57 = por %p55, %p56
    %p58 = scmp.ne.s32.totalorder %s49, %s50
    %p59 = scmp.eq.s32.totalorder %s18, 0
    %p60 = por %p58, %p59
    %p61 = scmp.ne.s32.totalorder %s49, %s50
    %p62 = scmp.eq.s32.totalorder %s19, 1
    %p63 = por %p61, %p62
    %p65 = scmp.ne.s32.totalorder %s50, %s64
    %p66 = scmp.eq.s32.totalorder %s19, 0
    %p67 = por %p65, %p66
    %s69 = sadd.s32 %s68, 1
    %p72 = scmp.eq.s32.totalorder %s13, 1
    %p73 = scmp.ne.s32.totalorder %s68, %s70
    %p74 = scmp.eq.s32.totalorder %s13, 0
    %p75 = por %p73, %p74
    %p76 = scmp.ne.s32.totalorder %s68, %s70
    %p77 = scmp.eq.s32.totalorder %s18, 1
    %p78 = por %p76, %p77
    %p79 = scmp.ne.s32.totalorder %s70, %s71
    %p80 = scmp.eq.s32.totalorder %s18, 0
    %p81 = por %p79, %p80
    %p82 = scmp.ne.s32.totalorder %s70, %s71
    %p83 = scmp.eq.s32.totalorder %s19, 1
    %p84 = por %p82, %p83
    %p86 = scmp.ne.s32.totalorder %s71, %s85
    %p87 = scmp.eq.s32.totalorder %s19, 0
    %p88 = por %p86, %p87
    %s90 = sadd.s32 %s89, 1
    %p93 = scmp.eq.s32.totalorder %s13, 1
    %p94 = scmp.ne.s32.totalorder %s89, %s91
    %p95 = scmp.eq.s32.totalorder %s13, 0
    %p96 = por %p94, %p95
    %p97 = scmp.ne.s32.totalorder %s89, %s91
    %p98 = scmp.eq.s32.totalorder %s18, 1
    %p99 = por %p97, %p98
    %p100 = scmp.ne.s32.totalorder %s91, %s92
    %p101 = scmp.eq.s32.totalorder %s18, 0
    %p102 = por %p100, %p101
    %p103 = scmp.ne.s32.totalorder %s91, %s92
    %p104 = scmp.eq.s32.totalorder %s19, 1
    %p105 = por %p103, %p104
    %p107 = scmp.ne.s32.totalorder %s92, %s106
    %p108 = scmp.eq.s32.totalorder %s19, 0
    %p109 = por %p107, %p108
    %s111 = sadd.s32 %s110, 1
    %p114 = scmp.eq.s32.totalorder %s13, 1
    %p115 = scmp.ne.s32.totalorder %s110, %s112
    %p116 = scmp.eq.s32.totalorder %s13, 0
    %p117 = por %p115, %p116
    %p118 = scmp.ne.s32.totalorder %s110, %s112
    %p119 = scmp.eq.s32.totalorder %s18, 1
    %p120 = por %p118, %p119
    %p121 = scmp.ne.s32.totalorder %s112, %s113
    %p122 = scmp.eq.s32.totalorder %s18, 0
    %p123 = por %p121, %p122
    %p124 = scmp.ne.s32.totalorder %s112, %s113
    %p125 = scmp.eq.s32.totalorder %s19, 1
    %p126 = por %p124, %p125
    %p128 = scmp.ne.s32.totalorder %s113, %s127
    %p129 = scmp.eq.s32.totalorder %s19, 0
    %p130 = por %p128, %p129
    %s131 = ssub.s32 %s13, %s20
    %p132 = scmp.eq.s32.totalorder %s131, 0
    %s134 = sadd.s32 %s133, 1
    %s135 = scalar_select %p132, %s133, %s134
    %p138 = pneg %p132
    %p139 = scmp.eq.s32.totalorder %s13, 1
    %p140 = por %p138, %p139
    %p141 = scmp.ne.s32.totalorder %s133, %s136
    %p142 = scmp.eq.s32.totalorder %s13, 0
    %p143 = por %p141, %p142
    %p144 = scmp.ne.s32.totalorder %s133, %s136
    %p145 = scmp.eq.s32.totalorder %s18, 1
    %p146 = por %p144, %p145
    %p147 = scmp.ne.s32.totalorder %s136, %s137
    %p148 = scmp.eq.s32.totalorder %s18, 0
    %p149 = por %p147, %p148
    %p150 = scmp.ne.s32.totalorder %s136, %s137
    %p151 = scmp.eq.s32.totalorder %s19, 1
    %p152 = por %p150, %p151
    %p154 = scmp.ne.s32.totalorder %s137, %s153
    %p155 = scmp.eq.s32.totalorder %s19, 0
    %p156 = por %p154, %p155
    %s157 = ssub.s32 %s13, %s20
    %p158 = scmp.eq.s32.totalorder %s157, 0
    %s160 = sadd.s32 %s159, 1
    %s161 = scalar_select %p158, %s159, %s160
    %p164 = pneg %p158
    %p165 = scmp.eq.s32.totalorder %s13, 1
    %p166 = por %p164, %p165
    %p167 = scmp.ne.s32.totalorder %s159, %s162
    %p168 = scmp.eq.s32.totalorder %s13, 0
    %p169 = por %p167, %p168
    %p170 = scmp.ne.s32.totalorder %s159, %s162
    %p171 = scmp.eq.s32.totalorder %s18, 1
    %p172 = por %p170, %p171
    %p173 = scmp.ne.s32.totalorder %s162, %s163
    %p174 = scmp.eq.s32.totalorder %s18, 0
    %p175 = por %p173, %p174
    %p176 = scmp.ne.s32.totalorder %s162, %s163
    %p177 = scmp.eq.s32.totalorder %s19, 1
    %p178 = por %p176, %p177
    %p180 = scmp.ne.s32.totalorder %s163, %s179
    %p181 = scmp.eq.s32.totalorder %s19, 0
    %p182 = por %p180, %p181
    %p183 = scmp.le.s32.totalorder 1, %s13
    %p184 = scmp.lt.s32.totalorder %s13, 3
    %p185 = pnand %p183, %p184
    %p186 = pneg %p185
    // Predicated region
    $region9: #{residual_forward.4} parent=5 // pred_check
      _
    $region10: #{residual_forward.4} parent=5 // pred_check_branch
      %188 = sbr.rel (%p185) target = $region12
    $region11: #{residual_forward.4} parent=5 // pred_region
      %s189 = ssub.s32 %s13, 1
      // Predicated region
      $region13: #{residual_forward.4} parent=11 // pred_check
        %p190 = pneg %p60
      $region14: #{residual_forward.4} parent=11 // pred_check_branch
        %192 = sbr.rel (%p190) target = $region16
      $region15: #{residual_forward.4} parent=11 // pred_region
        _
      $region16: #{residual_forward.4} parent=11 // pred_fallthru
        _
      // Predicated region
      $region17: #{residual_forward.4} parent=11 // pred_check
        %p193 = pneg %p81
      $region18: #{residual_forward.4} parent=11 // pred_check_branch
        %195 = sbr.rel (%p193) target = $region20
      $region19: #{residual_forward.4} parent=11 // pred_region
        _
      $region20: #{residual_forward.4} parent=11 // pred_fallthru
        _
      // Predicated region
      $region21: #{residual_forward.4} parent=11 // pred_check
        %p196 = pneg %p102
      $region22: #{residual_forward.4} parent=11 // pred_check_branch
        %198 = sbr.rel (%p196) target = $region24
      $region23: #{residual_forward.4} parent=11 // pred_region
        _
      $region24: #{residual_forward.4} parent=11 // pred_fallthru
        _
      // Predicated region
      $region25: #{residual_forward.4} parent=11 // pred_check
        %p199 = pneg %p123
      $region26: #{residual_forward.4} parent=11 // pred_check_branch
        %201 = sbr.rel (%p199) target = $region28
      $region27: #{residual_forward.4} parent=11 // pred_region
        _
      $region28: #{residual_forward.4} parent=11 // pred_fallthru
        _
    $region12: #{residual_forward.4} parent=5 // pred_fallthru
      _
    %p202 = scmp.lt.s32.totalorder %s13, 2
    // Predicated region
    $region29: #{residual_forward.4} parent=5 // pred_check
      %p203 = pneg %p202
    $region30: #{residual_forward.4} parent=5 // pred_check_branch
      %205 = sbr.rel (%p203) target = $region32
    $region31: #{residual_forward.4} parent=5 // pred_region
      // Predicated region
      $region33: #{residual_forward.4} parent=31 // pred_check
        %p206 = pneg %p33
      $region34: #{residual_forward.4} parent=31 // pred_check_branch
        %208 = sbr.rel (%p206) target = $region36
      $region35: #{residual_forward.4} parent=31 // pred_region
        %p209 = scmp.lt.s32.totalorder %s13, 1
        %s210 = scalar_select %p209, %s13, 1
        %s211 = smul.addr %s210, 2
        %s212 = smul.addr %s211, 8
        %s213 = scalar_lea.vmem %s0, %s212
      $region36: #{residual_forward.4} parent=31 // pred_fallthru
        _
    $region32: #{residual_forward.4} parent=5 // pred_fallthru
      _
    %p214 = scmp.le.s32.totalorder 1, %s13
    %p215 = scmp.lt.s32.totalorder %s13, 3
    %p216 = pnand %p214, %p215
    %p217 = pneg %p216
    // Predicated region
    $region37: #{residual_forward.4} parent=5 // pred_check
      _
    $region38: #{residual_forward.4} parent=5 // pred_check_branch
      %219 = sbr.rel (%p216) target = $region40
    $region39: #{residual_forward.4} parent=5 // pred_region
      %s220 = ssub.s32 %s13, 1
      %p221 = scmp.lt.s32.totalorder %s18, 1
      %s222 = scalar_select %p221, %s18, 1
      %s223 = smul.addr %s222, 2
      %s224 = smul.addr %s223, 8
      %s225 = scalar_lea.vmem %s0, %s224
      %p226 = pneg %p39
      %p227 = pneg %p36
      %p228 = pneg %p60
      %p229 = pneg %p57
      %p230 = pneg %p81
      %p231 = pneg %p78
      %p232 = pneg %p102
      %p233 = pneg %p99
      %p234 = pneg %p123
      %p235 = pneg %p120
      %p236 = pneg %p149
      %p237 = pneg %p146
      %p238 = scmp.lt.s32.totalorder %s18, 1
      %s239 = scalar_select %p238, %s18, 1
      %s240 = smul.addr %s239, 2
      %s241 = smul.addr %s240, 8
      %s242 = scalar_lea.vmem %s5, %s241
      %p243 = pneg %p175
      %p244 = pneg %p172
      %p245 = scmp.lt.s32.totalorder %s18, 1
      %s246 = scalar_select %p245, %s18, 1
      %s247 = smul.addr %s246, 2
      %s248 = scalar_lea.vmem %s6, %s247
      %p249 = scmp.lt.s32.totalorder %s18, 1
      %s250 = scalar_select %p249, %s18, 1
      %s251 = smul.addr %s250, 2
      %s252 = smul.addr %s251, 8
      %s253 = scalar_lea.vmem %s0, %s252
      %p254 = scmp.lt.s32.totalorder %s18, 1
      %s255 = scalar_select %p254, %s18, 1
      %s256 = smul.addr %s255, 2
      %s257 = smul.addr %s256, 8
      %s258 = scalar_lea.vmem %s5, %s257
      %p259 = scmp.lt.s32.totalorder %s18, 1
      %s260 = scalar_select %p259, %s18, 1
      %s261 = smul.addr %s260, 2
      %s262 = scalar_lea.vmem %s6, %s261
      %v263 = vld [vmem:[%s253] sm:$0xff]
      %v264 = vld [vmem:[%s253 + $0x8] sm:$0xff]
      %v265 = vld [vmem:[%s1] sm:$0x3]
      %v267 = vlaneseq
      %v268 = vshrl.u32 %v267, 7
      %v269 = vsub.s32 0, %v268
      %v270 = vrot.slane %v265, %v269
      %v271 = vlaneseq
      %v272 = vshrl.u32 %v271, 7
      %v273 = vsub.s32 1, %v272
      %v274 = vrot.slane %v265, %v273
      %v277 = vmul.f32 %v263, %v270
      %v278 = vmul.f32 %v264, %v274
      %v279 = vld [vmem:[%s2] sm:$0x3]
      %v281 = vlaneseq
      %v282 = vshrl.u32 %v281, 7
      %v283 = vsub.s32 0, %v282
      %v284 = vrot.slane %v279, %v283
      %v285 = vlaneseq
      %v286 = vshrl.u32 %v285, 7
      %v287 = vsub.s32 1, %v286
      %v288 = vrot.slane %v279, %v287
      %v291 = vadd.f32 %v277, %v284
      %v292 = vadd.f32 %v278, %v288
      %v293 = vmax.f32 %v291, 0.0
      %v294 = vmax.f32 %v292, 0.0
      %v297 = vrot.slane %v293, 7
      %v298 = vrot.slane %v294, 7
      %vm301 = vcmask 1040384
      %v302 = vsel %vm301, 0.0, %v297
      %v303 = vsel %vm301, 0.0, %v298
      %v304 = vrot.slane %v293, 1
      %v305 = vrot.slane %v294, 1
      %vm308 = vcmask 1046528
      %v309 = vsel %vm308, %v304, 0.0
      %v310 = vsel %vm308, %v305, 0.0
      %v311 = vpack.c.bf16 %v302, %v302
      %v312 = vpack.c.bf16 %v303, %v303
      %v313 = vld [vmem:[%s3] sm:$0xff]
      %v314 = vld [vmem:[%s3 + $0x8] sm:$0xff]
      %v315 = vld [vmem:[%s3 + $0x10] sm:$0xff]
      %v316 = vld [vmem:[%s3 + $0x18] sm:$0xff]
      %v317 = vld [vmem:[%s3 + $0x20] sm:$0xff]
      %v318 = vld [vmem:[%s3 + $0x28] sm:$0xff]
      %v319 = vld [vmem:[%s3 + $0x30] sm:$0xff]
      %v320 = vld [vmem:[%s3 + $0x38] sm:$0xff]
      %v321 = vld [vmem:[%s3 + $0x40] sm:$0xff]
      %v322 = vld [vmem:[%s3 + $0x48] sm:$0xff]
      %v323 = vld [vmem:[%s3 + $0x50] sm:$0xff]
      %v324 = vld [vmem:[%s3 + $0x58] sm:$0xff]
      %v325 = vld [vmem:[%s3 + $0x60] sm:$0xff]
      %v326 = vld [vmem:[%s3 + $0x68] sm:$0xff]
      %v327 = vld [vmem:[%s3 + $0x70] sm:$0xff]
      %v328 = vld [vmem:[%s3 + $0x78] sm:$0xff]
      %v329 = vld [vmem:[%s3 + $0x80] sm:$0xff]
      %v330 = vld [vmem:[%s3 + $0x88] sm:$0xff]
      %v331 = vld [vmem:[%s3 + $0x90] sm:$0xff]
      %v332 = vld [vmem:[%s3 + $0x98] sm:$0xff]
      %v333 = vld [vmem:[%s3 + $0xa0] sm:$0xff]
      %v334 = vld [vmem:[%s3 + $0xa8] sm:$0xff]
      %v335 = vld [vmem:[%s3 + $0xb0] sm:$0xff]
      %v336 = vld [vmem:[%s3 + $0xb8] sm:$0xff]
      %v337 = vld [vmem:[%s3 + $0xc0] sm:$0xff]
      %v338 = vld [vmem:[%s3 + $0xc8] sm:$0xff]
      %v339 = vld [vmem:[%s3 + $0xd0] sm:$0xff]
      %v340 = vld [vmem:[%s3 + $0xd8] sm:$0xff]
      %v341 = vld [vmem:[%s3 + $0xe0] sm:$0xff]
      %v342 = vld [vmem:[%s3 + $0xe8] sm:$0xff]
      %v343 = vld [vmem:[%s3 + $0xf0] sm:$0xff]
      %v344 = vld [vmem:[%s3 + $0xf8] sm:$0xff]
      %v345 = vpack.c.bf16 %v293, %v293
      %v346 = vpack.c.bf16 %v294, %v294
      %s347 = scalar_lea.vmem %s3, 256
      %v348 = vld [vmem:[%s347] sm:$0xff]
      %v349 = vld [vmem:[%s347 + $0x8] sm:$0xff]
      %v350 = vld [vmem:[%s347 + $0x10] sm:$0xff]
      %v351 = vld [vmem:[%s347 + $0x18] sm:$0xff]
      %v352 = vld [vmem:[%s347 + $0x20] sm:$0xff]
      %v353 = vld [vmem:[%s347 + $0x28] sm:$0xff]
      %v354 = vld [vmem:[%s347 + $0x30] sm:$0xff]
      %v355 = vld [vmem:[%s347 + $0x38] sm:$0xff]
      %v356 = vld [vmem:[%s347 + $0x40] sm:$0xff]
      %v357 = vld [vmem:[%s347 + $0x48] sm:$0xff]
      %v358 = vld [vmem:[%s347 + $0x50] sm:$0xff]
      %v359 = vld [vmem:[%s347 + $0x58] sm:$0xff]
      %v360 = vld [vmem:[%s347 + $0x60] sm:$0xff]
      %v361 = vld [vmem:[%s347 + $0x68] sm:$0xff]
      %v362 = vld [vmem:[%s347 + $0x70] sm:$0xff]
      %v363 = vld [vmem:[%s347 + $0x78] sm:$0xff]
      %v364 = vld [vmem:[%s347 + $0x80] sm:$0xff]
      %v365 = vld [vmem:[%s347 + $0x88] sm:$0xff]
      %v366 = vld [vmem:[%s347 + $0x90] sm:$0xff]
      %v367 = vld [vmem:[%s347 + $0x98] sm:$0xff]
      %v368 = vld [vmem:[%s347 + $0xa0] sm:$0xff]
      %v369 = vld [vmem:[%s347 + $0xa8] sm:$0xff]
      %v370 = vld [vmem:[%s347 + $0xb0] sm:$0xff]
      %v371 = vld [vmem:[%s347 + $0xb8] sm:$0xff]
      %v372 = vld [vmem:[%s347 + $0xc0] sm:$0xff]
      %v373 = vld [vmem:[%s347 + $0xc8] sm:$0xff]
      %v374 = vld [vmem:[%s347 + $0xd0] sm:$0xff]
      %v375 = vld [vmem:[%s347 + $0xd8] sm:$0xff]
      %v376 = vld [vmem:[%s347 + $0xe0] sm:$0xff]
      %v377 = vld [vmem:[%s347 + $0xe8] sm:$0xff]
      %v378 = vld [vmem:[%s347 + $0xf0] sm:$0xff]
      %v379 = vld [vmem:[%s347 + $0xf8] sm:$0xff]
      %v412 = vunpack.c.l.b16 %v348
      %v413 = vunpack.c.h.b16 %v348
      %v414 = vunpack.c.l.b16 %v349
      %v415 = vunpack.c.h.b16 %v349
      %v416 = vunpack.c.l.b16 %v350
      %v417 = vunpack.c.h.b16 %v350
      %v418 = vunpack.c.l.b16 %v351
      %v419 = vunpack.c.h.b16 %v351
      %v420 = vunpack.c.l.b16 %v352
      %v421 = vunpack.c.h.b16 %v352
      %v422 = vunpack.c.l.b16 %v353
      %v423 = vunpack.c.h.b16 %v353
      %v424 = vunpack.c.l.b16 %v354
      %v425 = vunpack.c.h.b16 %v354
      %v426 = vunpack.c.l.b16 %v355
      %v427 = vunpack.c.h.b16 %v355
      %v428 = vunpack.c.l.b16 %v356
      %v429 = vunpack.c.h.b16 %v356
      %v430 = vunpack.c.l.b16 %v357
      %v431 = vunpack.c.h.b16 %v357
      %v432 = vunpack.c.l.b16 %v358
      %v433 = vunpack.c.h.b16 %v358
      %v434 = vunpack.c.l.b16 %v359
      %v435 = vunpack.c.h.b16 %v359
      %v436 = vunpack.c.l.b16 %v360
      %v437 = vunpack.c.h.b16 %v360
      %v438 = vunpack.c.l.b16 %v361
      %v439 = vunpack.c.h.b16 %v361
      %v440 = vunpack.c.l.b16 %v362
      %v441 = vunpack.c.h.b16 %v362
      %v442 = vunpack.c.l.b16 %v363
      %v443 = vunpack.c.h.b16 %v363
      %v444 = vunpack.c.l.b16 %v364
      %v445 = vunpack.c.h.b16 %v364
      %v446 = vunpack.c.l.b16 %v365
      %v447 = vunpack.c.h.b16 %v365
      %v448 = vunpack.c.l.b16 %v366
      %v449 = vunpack.c.h.b16 %v366
      %v450 = vunpack.c.l.b16 %v367
      %v451 = vunpack.c.h.b16 %v367
      %v452 = vunpack.c.l.b16 %v368
      %v453 = vunpack.c.h.b16 %v368
      %v454 = vunpack.c.l.b16 %v369
      %v455 = vunpack.c.h.b16 %v369
      %v456 = vunpack.c.l.b16 %v370
      %v457 = vunpack.c.h.b16 %v370
      %v458 = vunpack.c.l.b16 %v371
      %v459 = vunpack.c.h.b16 %v371
      %v460 = vunpack.c.l.b16 %v372
      %v461 = vunpack.c.h.b16 %v372
      %v462 = vunpack.c.l.b16 %v373
      %v463 = vunpack.c.h.b16 %v373
      %v464 = vunpack.c.l.b16 %v374
      %v465 = vunpack.c.h.b16 %v374
      %v466 = vunpack.c.l.b16 %v375
      %v467 = vunpack.c.h.b16 %v375
      %v468 = vunpack.c.l.b16 %v376
      %v469 = vunpack.c.h.b16 %v376
      %v470 = vunpack.c.l.b16 %v377
      %v471 = vunpack.c.h.b16 %v377
      %v472 = vunpack.c.l.b16 %v378
      %v473 = vunpack.c.h.b16 %v378
      %v474 = vunpack.c.l.b16 %v379
      %v475 = vunpack.c.h.b16 %v379
      %v476 = vpack.c.b16 %v414, %v412
      %v477 = vpack.c.b16 %v415, %v413
      %v478 = vpack.c.b16 %v418, %v416
      %v479 = vpack.c.b16 %v419, %v417
      %v480 = vpack.c.b16 %v422, %v420
      %v481 = vpack.c.b16 %v423, %v421
      %v482 = vpack.c.b16 %v426, %v424
      %v483 = vpack.c.b16 %v427, %v425
      %v484 = vpack.c.b16 %v430, %v428
      %v485 = vpack.c.b16 %v431, %v429
      %v486 = vpack.c.b16 %v434, %v432
      %v487 = vpack.c.b16 %v435, %v433
      %v488 = vpack.c.b16 %v438, %v436
      %v489 = vpack.c.b16 %v439, %v437
      %v490 = vpack.c.b16 %v442, %v440
      %v491 = vpack.c.b16 %v443, %v441
      %v492 = vpack.c.b16 %v446, %v444
      %v493 = vpack.c.b16 %v447, %v445
      %v494 = vpack.c.b16 %v450, %v448
      %v495 = vpack.c.b16 %v451, %v449
      %v496 = vpack.c.b16 %v454, %v452
      %v497 = vpack.c.b16 %v455, %v453
      %v498 = vpack.c.b16 %v458, %v456
      %v499 = vpack.c.b16 %v459, %v457
      %v500 = vpack.c.b16 %v462, %v460
      %v501 = vpack.c.b16 %v463, %v461
      %v502 = vpack.c.b16 %v466, %v464
      %v503 = vpack.c.b16 %v467, %v465
      %v504 = vpack.c.b16 %v470, %v468
      %v505 = vpack.c.b16 %v471, %v469
      %v506 = vpack.c.b16 %v474, %v472
      %v507 = vpack.c.b16 %v475, %v473
      %540 = vmatprep.subr.bf16.mxu0 %v491
      %541 = vmatpush1.bf16.msra.mxu0 %v490
      %542 = vmatprep.subr.bf16.mxu0 %v489
      %543 = vmatpush1.bf16.msra.mxu0 %v488
      %544 = vmatprep.subr.bf16.mxu0 %v487
      %545 = vmatpush1.bf16.msra.mxu0 %v486
      %546 = vmatprep.subr.bf16.mxu0 %v485
      %547 = vmatpush1.bf16.msra.mxu0 %v484
      %548 = vmatprep.subr.bf16.mxu0 %v483
      %549 = vmatpush1.bf16.msra.mxu0 %v482
      %550 = vmatprep.subr.bf16.mxu0 %v481
      %551 = vmatpush1.bf16.msra.mxu0 %v480
      %552 = vmatprep.subr.bf16.mxu0 %v479
      %553 = vmatpush1.bf16.msra.mxu0 %v478
      %554 = vmatprep.subr.bf16.mxu0 %v477
      %555 = vmatpush1.bf16.msra.mxu0 %v476
      %556 = vmatprep.subr.bf16.mxu0 %v507
      %557 = vmatpush2.bf16.msra.mxu0 %v506
      %558 = vmatprep.subr.bf16.mxu0 %v505
      %559 = vmatpush2.bf16.msra.mxu0 %v504
      %560 = vmatprep.subr.bf16.mxu0 %v503
      %561 = vmatpush2.bf16.msra.mxu0 %v502
      %562 = vmatprep.subr.bf16.mxu0 %v501
      %563 = vmatpush2.bf16.msra.mxu0 %v500
      %564 = vmatprep.subr.bf16.mxu0 %v499
      %565 = vmatpush2.bf16.msra.mxu0 %v498
      %566 = vmatprep.subr.bf16.mxu0 %v497
      %567 = vmatpush2.bf16.msra.mxu0 %v496
      %568 = vmatprep.subr.bf16.mxu0 %v495
      %569 = vmatpush2.bf16.msra.mxu0 %v494
      %570 = vmatprep.subr.bf16.mxu0 %v493
      %571 = vmatpush2.bf16.msra.mxu0 %v492
      %572 = vmatprep.mubr.bf16.mxu0 %v346
      %573 = vmatmul.mubr.bf16.gmra.mxu0 %v345
      %v574 = vpop.f32.mrf.mxu0
      %v575 = vadd.f32 0.0, %v574
      %v576 = vpop.f32.mrf.mxu0
      %v577 = vadd.f32 0.0, %v576
      %v578 = vpop.f32.mrf.mxu0
      %v579 = vpop.f32.mrf.mxu0
      %580 = vdwg.mxu0
      %v613 = vunpack.c.l.b16 %v313
      %v614 = vunpack.c.h.b16 %v313
      %v615 = vunpack.c.l.b16 %v314
      %v616 = vunpack.c.h.b16 %v314
      %v617 = vunpack.c.l.b16 %v315
      %v618 = vunpack.c.h.b16 %v315
      %v619 = vunpack.c.l.b16 %v316
      %v620 = vunpack.c.h.b16 %v316
      %v621 = vunpack.c.l.b16 %v317
      %v622 = vunpack.c.h.b16 %v317
      %v623 = vunpack.c.l.b16 %v318
      %v624 = vunpack.c.h.b16 %v318
      %v625 = vunpack.c.l.b16 %v319
      %v626 = vunpack.c.h.b16 %v319
      %v627 = vunpack.c.l.b16 %v320
      %v628 = vunpack.c.h.b16 %v320
      %v629 = vunpack.c.l.b16 %v321
      %v630 = vunpack.c.h.b16 %v321
      %v631 = vunpack.c.l.b16 %v322
      %v632 = vunpack.c.h.b16 %v322
      %v633 = vunpack.c.l.b16 %v323
      %v634 = vunpack.c.h.b16 %v323
      %v635 = vunpack.c.l.b16 %v324
      %v636 = vunpack.c.h.b16 %v324
      %v637 = vunpack.c.l.b16 %v325
      %v638 = vunpack.c.h.b16 %v325
      %v639 = vunpack.c.l.b16 %v326
      %v640 = vunpack.c.h.b16 %v326
      %v641 = vunpack.c.l.b16 %v327
      %v642 = vunpack.c.h.b16 %v327
      %v643 = vunpack.c.l.b16 %v328
      %v644 = vunpack.c.h.b16 %v328
      %v645 = vunpack.c.l.b16 %v329
      %v646 = vunpack.c.h.b16 %v329
      %v647 = vunpack.c.l.b16 %v330
      %v648 = vunpack.c.h.b16 %v330
      %v649 = vunpack.c.l.b16 %v331
      %v650 = vunpack.c.h.b16 %v331
      %v651 = vunpack.c.l.b16 %v332
      %v652 = vunpack.c.h.b16 %v332
      %v653 = vunpack.c.l.b16 %v333
      %v654 = vunpack.c.h.b16 %v333
      %v655 = vunpack.c.l.b16 %v334
      %v656 = vunpack.c.h.b16 %v334
      %v657 = vunpack.c.l.b16 %v335
      %v658 = vunpack.c.h.b16 %v335
      %v659 = vunpack.c.l.b16 %v336
      %v660 = vunpack.c.h.b16 %v336
      %v661 = vunpack.c.l.b16 %v337
      %v662 = vunpack.c.h.b16 %v337
      %v663 = vunpack.c.l.b16 %v338
      %v664 = vunpack.c.h.b16 %v338
      %v665 = vunpack.c.l.b16 %v339
      %v666 = vunpack.c.h.b16 %v339
      %v667 = vunpack.c.l.b16 %v340
      %v668 = vunpack.c.h.b16 %v340
      %v669 = vunpack.c.l.b16 %v341
      %v670 = vunpack.c.h.b16 %v341
      %v671 = vunpack.c.l.b16 %v342
      %v672 = vunpack.c.h.b16 %v342
      %v673 = vunpack.c.l.b16 %v343
      %v674 = vunpack.c.h.b16 %v343
      %v675 = vunpack.c.l.b16 %v344
      %v676 = vunpack.c.h.b16 %v344
      %v677 = vpack.c.b16 %v615, %v613
      %v678 = vpack.c.b16 %v616, %v614
      %v679 = vpack.c.b16 %v619, %v617
      %v680 = vpack.c.b16 %v620, %v618
      %v681 = vpack.c.b16 %v623, %v621
      %v682 = vpack.c.b16 %v624, %v622
      %v683 = vpack.c.b16 %v627, %v625
      %v684 = vpack.c.b16 %v628, %v626
      %v685 = vpack.c.b16 %v631, %v629
      %v686 = vpack.c.b16 %v632, %v630
      %v687 = vpack.c.b16 %v635, %v633
      %v688 = vpack.c.b16 %v636, %v634
      %v689 = vpack.c.b16 %v639, %v637
      %v690 = vpack.c.b16 %v640, %v638
      %v691 = vpack.c.b16 %v643, %v641
      %v692 = vpack.c.b16 %v644, %v642
      %v693 = vpack.c.b16 %v647, %v645
      %v694 = vpack.c.b16 %v648, %v646
      %v695 = vpack.c.b16 %v651, %v649
      %v696 = vpack.c.b16 %v652, %v650
      %v697 = vpack.c.b16 %v655, %v653
      %v698 = vpack.c.b16 %v656, %v654
      %v699 = vpack.c.b16 %v659, %v657
      %v700 = vpack.c.b16 %v660, %v658
      %v701 = vpack.c.b16 %v663, %v661
      %v702 = vpack.c.b16 %v664, %v662
      %v703 = vpack.c.b16 %v667, %v665
      %v704 = vpack.c.b16 %v668, %v666
      %v705 = vpack.c.b16 %v671, %v669
      %v706 = vpack.c.b16 %v672, %v670
      %v707 = vpack.c.b16 %v675, %v673
      %v708 = vpack.c.b16 %v676, %v674
      %741 = vmatprep.subr.bf16.mxu0 %v692
      %742 = vmatpush1.bf16.msra.mxu0 %v691
      %743 = vmatprep.subr.bf16.mxu0 %v690
      %744 = vmatpush1.bf16.msra.mxu0 %v689
      %745 = vmatprep.subr.bf16.mxu0 %v688
      %746 = vmatpush1.bf16.msra.mxu0 %v687
      %747 = vmatprep.subr.bf16.mxu0 %v686
      %748 = vmatpush1.bf16.msra.mxu0 %v685
      %749 = vmatprep.subr.bf16.mxu0 %v684
      %750 = vmatpush1.bf16.msra.mxu0 %v683
      %751 = vmatprep.subr.bf16.mxu0 %v682
      %752 = vmatpush1.bf16.msra.mxu0 %v681
      %753 = vmatprep.subr.bf16.mxu0 %v680
      %754 = vmatpush1.bf16.msra.mxu0 %v679
      %755 = vmatprep.subr.bf16.mxu0 %v678
      %756 = vmatpush1.bf16.msra.mxu0 %v677
      %757 = vmatprep.subr.bf16.mxu0 %v708
      %758 = vmatpush2.bf16.msra.mxu0 %v707
      %759 = vmatprep.subr.bf16.mxu0 %v706
      %760 = vmatpush2.bf16.msra.mxu0 %v705
      %761 = vmatprep.subr.bf16.mxu0 %v704
      %762 = vmatpush2.bf16.msra.mxu0 %v703
      %763 = vmatprep.subr.bf16.mxu0 %v702
      %764 = vmatpush2.bf16.msra.mxu0 %v701
      %765 = vmatprep.subr.bf16.mxu0 %v700
      %766 = vmatpush2.bf16.msra.mxu0 %v699
      %767 = vmatprep.subr.bf16.mxu0 %v698
      %768 = vmatpush2.bf16.msra.mxu0 %v697
      %769 = vmatprep.subr.bf16.mxu0 %v696
      %770 = vmatpush2.bf16.msra.mxu0 %v695
      %771 = vmatprep.subr.bf16.mxu0 %v694
      %772 = vmatpush2.bf16.msra.mxu0 %v693
      %773 = vmatprep.mubr.bf16.mxu0 %v312
      %774 = vmatmul.mubr.bf16.gmra.mxu0 %v311
      %v775 = vpop.f32.mrf.mxu0
      %v776 = vadd.f32 %v575, %v775
      %v777 = vpop.f32.mrf.mxu0
      %v778 = vadd.f32 %v577, %v777
      %v779 = vpop.f32.mrf.mxu0
      %v780 = vpop.f32.mrf.mxu0
      %781 = vdwg.mxu0
      %v782 = vpack.c.bf16 %v309, %v309
      %v783 = vpack.c.bf16 %v310, %v310
      %s784 = scalar_lea.vmem %s3, 512
      %v785 = vld [vmem:[%s784] sm:$0xff]
      %v786 = vld [vmem:[%s784 + $0x8] sm:$0xff]
      %v787 = vld [vmem:[%s784 + $0x10] sm:$0xff]
      %v788 = vld [vmem:[%s784 + $0x18] sm:$0xff]
      %v789 = vld [vmem:[%s784 + $0x20] sm:$0xff]
      %v790 = vld [vmem:[%s784 + $0x28] sm:$0xff]
      %v791 = vld [vmem:[%s784 + $0x30] sm:$0xff]
      %v792 = vld [vmem:[%s784 + $0x38] sm:$0xff]
      %v793 = vld [vmem:[%s784 + $0x40] sm:$0xff]
      %v794 = vld [vmem:[%s784 + $0x48] sm:$0xff]
      %v795 = vld [vmem:[%s784 + $0x50] sm:$0xff]
      %v796 = vld [vmem:[%s784 + $0x58] sm:$0xff]
      %v797 = vld [vmem:[%s784 + $0x60] sm:$0xff]
      %v798 = vld [vmem:[%s784 + $0x68] sm:$0xff]
      %v799 = vld [vmem:[%s784 + $0x70] sm:$0xff]
      %v800 = vld [vmem:[%s784 + $0x78] sm:$0xff]
      %v801 = vld [vmem:[%s784 + $0x80] sm:$0xff]
      %v802 = vld [vmem:[%s784 + $0x88] sm:$0xff]
      %v803 = vld [vmem:[%s784 + $0x90] sm:$0xff]
      %v804 = vld [vmem:[%s784 + $0x98] sm:$0xff]
      %v805 = vld [vmem:[%s784 + $0xa0] sm:$0xff]
      %v806 = vld [vmem:[%s784 + $0xa8] sm:$0xff]
      %v807 = vld [vmem:[%s784 + $0xb0] sm:$0xff]
      %v808 = vld [vmem:[%s784 + $0xb8] sm:$0xff]
      %v809 = vld [vmem:[%s784 + $0xc0] sm:$0xff]
      %v810 = vld [vmem:[%s784 + $0xc8] sm:$0xff]
      %v811 = vld [vmem:[%s784 + $0xd0] sm:$0xff]
      %v812 = vld [vmem:[%s784 + $0xd8] sm:$0xff]
      %v813 = vld [vmem:[%s784 + $0xe0] sm:$0xff]
      %v814 = vld [vmem:[%s784 + $0xe8] sm:$0xff]
      %v815 = vld [vmem:[%s784 + $0xf0] sm:$0xff]
      %v816 = vld [vmem:[%s784 + $0xf8] sm:$0xff]
      %v849 = vunpack.c.l.b16 %v785
      %v850 = vunpack.c.h.b16 %v785
      %v851 = vunpack.c.l.b16 %v786
      %v852 = vunpack.c.h.b16 %v786
      %v853 = vunpack.c.l.b16 %v787
      %v854 = vunpack.c.h.b16 %v787
      %v855 = vunpack.c.l.b16 %v788
      %v856 = vunpack.c.h.b16 %v788
      %v857 = vunpack.c.l.b16 %v789
      %v858 = vunpack.c.h.b16 %v789
      %v859 = vunpack.c.l.b16 %v790
      %v860 = vunpack.c.h.b16 %v790
      %v861 = vunpack.c.l.b16 %v791
      %v862 = vunpack.c.h.b16 %v791
      %v863 = vunpack.c.l.b16 %v792
      %v864 = vunpack.c.h.b16 %v792
      %v865 = vunpack.c.l.b16 %v793
      %v866 = vunpack.c.h.b16 %v793
      %v867 = vunpack.c.l.b16 %v794
      %v868 = vunpack.c.h.b16 %v794
      %v869 = vunpack.c.l.b16 %v795
      %v870 = vunpack.c.h.b16 %v795
      %v871 = vunpack.c.l.b16 %v796
      %v872 = vunpack.c.h.b16 %v796
      %v873 = vunpack.c.l.b16 %v797
      %v874 = vunpack.c.h.b16 %v797
      %v875 = vunpack.c.l.b16 %v798
      %v876 = vunpack.c.h.b16 %v798
      %v877 = vunpack.c.l.b16 %v799
      %v878 = vunpack.c.h.b16 %v799
      %v879 = vunpack.c.l.b16 %v800
      %v880 = vunpack.c.h.b16 %v800
      %v881 = vunpack.c.l.b16 %v801
      %v882 = vunpack.c.h.b16 %v801
      %v883 = vunpack.c.l.b16 %v802
      %v884 = vunpack.c.h.b16 %v802
      %v885 = vunpack.c.l.b16 %v803
      %v886 = vunpack.c.h.b16 %v803
      %v887 = vunpack.c.l.b16 %v804
      %v888 = vunpack.c.h.b16 %v804
      %v889 = vunpack.c.l.b16 %v805
      %v890 = vunpack.c.h.b16 %v805
      %v891 = vunpack.c.l.b16 %v806
      %v892 = vunpack.c.h.b16 %v806
      %v893 = vunpack.c.l.b16 %v807
      %v894 = vunpack.c.h.b16 %v807
      %v895 = vunpack.c.l.b16 %v808
      %v896 = vunpack.c.h.b16 %v808
      %v897 = vunpack.c.l.b16 %v809
      %v898 = vunpack.c.h.b16 %v809
      %v899 = vunpack.c.l.b16 %v810
      %v900 = vunpack.c.h.b16 %v810
      %v901 = vunpack.c.l.b16 %v811
      %v902 = vunpack.c.h.b16 %v811
      %v903 = vunpack.c.l.b16 %v812
      %v904 = vunpack.c.h.b16 %v812
      %v905 = vunpack.c.l.b16 %v813
      %v906 = vunpack.c.h.b16 %v813
      %v907 = vunpack.c.l.b16 %v814
      %v908 = vunpack.c.h.b16 %v814
      %v909 = vunpack.c.l.b16 %v815
      %v910 = vunpack.c.h.b16 %v815
      %v911 = vunpack.c.l.b16 %v816
      %v912 = vunpack.c.h.b16 %v816
      %v913 = vpack.c.b16 %v851, %v849
      %v914 = vpack.c.b16 %v852, %v850
      %v915 = vpack.c.b16 %v855, %v853
      %v916 = vpack.c.b16 %v856, %v854
      %v917 = vpack.c.b16 %v859, %v857
      %v918 = vpack.c.b16 %v860, %v858
      %v919 = vpack.c.b16 %v863, %v861
      %v920 = vpack.c.b16 %v864, %v862
      %v921 = vpack.c.b16 %v867, %v865
      %v922 = vpack.c.b16 %v868, %v866
      %v923 = vpack.c.b16 %v871, %v869
      %v924 = vpack.c.b16 %v872, %v870
      %v925 = vpack.c.b16 %v875, %v873
      %v926 = vpack.c.b16 %v876, %v874
      %v927 = vpack.c.b16 %v879, %v877
      %v928 = vpack.c.b16 %v880, %v878
      %v929 = vpack.c.b16 %v883, %v881
      %v930 = vpack.c.b16 %v884, %v882
      %v931 = vpack.c.b16 %v887, %v885
      %v932 = vpack.c.b16 %v888, %v886
      %v933 = vpack.c.b16 %v891, %v889
      %v934 = vpack.c.b16 %v892, %v890
      %v935 = vpack.c.b16 %v895, %v893
      %v936 = vpack.c.b16 %v896, %v894
      %v937 = vpack.c.b16 %v899, %v897
      %v938 = vpack.c.b16 %v900, %v898
      %v939 = vpack.c.b16 %v903, %v901
      %v940 = vpack.c.b16 %v904, %v902
      %v941 = vpack.c.b16 %v907, %v905
      %v942 = vpack.c.b16 %v908, %v906
      %v943 = vpack.c.b16 %v911, %v909
      %v944 = vpack.c.b16 %v912, %v910
      %977 = vmatprep.subr.bf16.mxu0 %v928
      %978 = vmatpush1.bf16.msra.mxu0 %v927
      %979 = vmatprep.subr.bf16.mxu0 %v926
      %980 = vmatpush1.bf16.msra.mxu0 %v925
      %981 = vmatprep.subr.bf16.mxu0 %v924
      %982 = vmatpush1.bf16.msra.mxu0 %v923
      %983 = vmatprep.subr.bf16.mxu0 %v922
      %984 = vmatpush1.bf16.msra.mxu0 %v921
      %985 = vmatprep.subr.bf16.mxu0 %v920
      %986 = vmatpush1.bf16.msra.mxu0 %v919
      %987 = vmatprep.subr.bf16.mxu0 %v918
      %988 = vmatpush1.bf16.msra.mxu0 %v917
      %989 = vmatprep.subr.bf16.mxu0 %v916
      %990 = vmatpush1.bf16.msra.mxu0 %v915
      %991 = vmatprep.subr.bf16.mxu0 %v914
      %992 = vmatpush1.bf16.msra.mxu0 %v913
      %993 = vmatprep.subr.bf16.mxu0 %v944
      %994 = vmatpush2.bf16.msra.mxu0 %v943
      %995 = vmatprep.subr.bf16.mxu0 %v942
      %996 = vmatpush2.bf16.msra.mxu0 %v941
      %997 = vmatprep.subr.bf16.mxu0 %v940
      %998 = vmatpush2.bf16.msra.mxu0 %v939
      %999 = vmatprep.subr.bf16.mxu0 %v938
      %1000 = vmatpush2.bf16.msra.mxu0 %v937
      %1001 = vmatprep.subr.bf16.mxu0 %v936
      %1002 = vmatpush2.bf16.msra.mxu0 %v935
      %1003 = vmatprep.subr.bf16.mxu0 %v934
      %1004 = vmatpush2.bf16.msra.mxu0 %v933
      %1005 = vmatprep.subr.bf16.mxu0 %v932
      %1006 = vmatpush2.bf16.msra.mxu0 %v931
      %1007 = vmatprep.subr.bf16.mxu0 %v930
      %1008 = vmatpush2.bf16.msra.mxu0 %v929
      %1009 = vmatprep.mubr.bf16.mxu0 %v783
      %1010 = vmatmul.mubr.bf16.gmra.mxu0 %v782
      %v1011 = vpop.f32.mrf.mxu0
      %v1012 = vadd.f32 0.0, %v1011
      %v1013 = vpop.f32.mrf.mxu0
      %v1014 = vadd.f32 0.0, %v1013
      %v1015 = vpop.f32.mrf.mxu0
      %v1016 = vpop.f32.mrf.mxu0
      %1017 = vdwg.mxu0
      %v1018 = vadd.f32 %v776, %v1012
      %v1019 = vadd.f32 %v778, %v1014
      %1020 = vst [vmem:[%s258] sm:$0xff] %v1018
      %1021 = vst [vmem:[%s258 + $0x8] sm:$0xff] %v1019
      %v1022 = vld [vmem:[%s4] sm:$0xff]
      %v1023 = vld [vmem:[%s4 + $0x8] sm:$0xff]
      %v1024 = vld [vmem:[%s4 + $0x10] sm:$0xff]
      %v1025 = vld [vmem:[%s4 + $0x18] sm:$0xff]
      %v1026 = vld [vmem:[%s4 + $0x20] sm:$0xff]
      %v1027 = vld [vmem:[%s4 + $0x28] sm:$0xff]
      %v1028 = vld [vmem:[%s4 + $0x30] sm:$0xff]
      %v1029 = vld [vmem:[%s4 + $0x38] sm:$0xff]
      %v1030 = vld [vmem:[%s4 + $0x40] sm:$0xff]
      %v1031 = vld [vmem:[%s4 + $0x48] sm:$0xff]
      %v1032 = vld [vmem:[%s4 + $0x50] sm:$0xff]
      %v1033 = vld [vmem:[%s4 + $0x58] sm:$0xff]
      %v1034 = vld [vmem:[%s4 + $0x60] sm:$0xff]
      %v1035 = vld [vmem:[%s4 + $0x68] sm:$0xff]
      %v1036 = vld [vmem:[%s4 + $0x70] sm:$0xff]
      %v1037 = vld [vmem:[%s4 + $0x78] sm:$0xff]
      %v1038 = vld [vmem:[%s4 + $0x80] sm:$0xff]
      %v1039 = vld [vmem:[%s4 + $0x88] sm:$0xff]
      %v1040 = vld [vmem:[%s4 + $0x90] sm:$0xff]
      %v1041 = vld [vmem:[%s4 + $0x98] sm:$0xff]
      %v1042 = vld [vmem:[%s4 + $0xa0] sm:$0xff]
      %v1043 = vld [vmem:[%s4 + $0xa8] sm:$0xff]
      %v1044 = vld [vmem:[%s4 + $0xb0] sm:$0xff]
      %v1045 = vld [vmem:[%s4 + $0xb8] sm:$0xff]
      %v1046 = vld [vmem:[%s4 + $0xc0] sm:$0xff]
      %v1047 = vld [vmem:[%s4 + $0xc8] sm:$0xff]
      %v1048 = vld [vmem:[%s4 + $0xd0] sm:$0xff]
      %v1049 = vld [vmem:[%s4 + $0xd8] sm:$0xff]
      %v1050 = vld [vmem:[%s4 + $0xe0] sm:$0xff]
      %v1051 = vld [vmem:[%s4 + $0xe8] sm:$0xff]
      %v1052 = vld [vmem:[%s4 + $0xf0] sm:$0xff]
      %v1053 = vld [vmem:[%s4 + $0xf8] sm:$0xff]
      %v1054 = vrot.slane %v1018, 4
      %v1055 = vadd.f32 %v1018, %v1054
      %v1056 = vrot.slane %v1055, 2
      %v1057 = vadd.f32 %v1055, %v1056
      %v1058 = vrot.slane %v1057, 1
      %v1059 = vadd.f32 %v1057, %v1058
      %v1060 = vrot.slane %v1019, 4
      %v1061 = vadd.f32 %v1019, %v1060
      %v1062 = vrot.slane %v1061, 2
      %v1063 = vadd.f32 %v1061, %v1062
      %v1064 = vrot.slane %v1063, 1
      %v1065 = vadd.f32 %v1063, %v1064
      %1066 = vmatprep.subr.mxu0 0.0
      %1067 = vmatpush1.msra.mxu0 %v1037
      %1068 = vmatprep.subr.mxu0 0.0
      %1069 = vmatpush1.msra.mxu0 %v1036
      %1070 = vmatprep.subr.mxu0 0.0
      %1071 = vmatpush1.msra.mxu0 %v1035
      %1072 = vmatprep.subr.mxu0 0.0
      %1073 = vmatpush1.msra.mxu0 %v1034
      %1074 = vmatprep.subr.mxu0 0.0
      %1075 = vmatpush1.msra.mxu0 %v1033
      %1076 = vmatprep.subr.mxu0 0.0
      %1077 = vmatpush1.msra.mxu0 %v1032
      %1078 = vmatprep.subr.mxu0 0.0
      %1079 = vmatpush1.msra.mxu0 %v1031
      %1080 = vmatprep.subr.mxu0 0.0
      %1081 = vmatpush1.msra.mxu0 %v1030
      %1082 = vmatprep.subr.mxu0 0.0
      %1083 = vmatpush1.msra.mxu0 %v1029
      %1084 = vmatprep.subr.mxu0 0.0
      %1085 = vmatpush1.msra.mxu0 %v1028
      %1086 = vmatprep.subr.mxu0 0.0
      %1087 = vmatpush1.msra.mxu0 %v1027
      %1088 = vmatprep.subr.mxu0 0.0
      %1089 = vmatpush1.msra.mxu0 %v1026
      %1090 = vmatprep.subr.mxu0 0.0
      %1091 = vmatpush1.msra.mxu0 %v1025
      %1092 = vmatprep.subr.mxu0 0.0
      %1093 = vmatpush1.msra.mxu0 %v1024
      %1094 = vmatprep.subr.mxu0 0.0
      %1095 = vmatpush1.msra.mxu0 %v1023
      %1096 = vmatprep.subr.mxu0 0.0
      %1097 = vmatpush1.msra.mxu0 %v1022
      %1098 = vmatprep.subr.mxu0 0.0
      %1099 = vmatpush2.msra.mxu0 %v1053
      %1100 = vmatprep.subr.mxu0 0.0
      %1101 = vmatpush2.msra.mxu0 %v1052
      %1102 = vmatprep.subr.mxu0 0.0
      %1103 = vmatpush2.msra.mxu0 %v1051
      %1104 = vmatprep.subr.mxu0 0.0
      %1105 = vmatpush2.msra.mxu0 %v1050
      %1106 = vmatprep.subr.mxu0 0.0
      %1107 = vmatpush2.msra.mxu0 %v1049
      %1108 = vmatprep.subr.mxu0 0.0
      %1109 = vmatpush2.msra.mxu0 %v1048
      %1110 = vmatprep.subr.mxu0 0.0
      %1111 = vmatpush2.msra.mxu0 %v1047
      %1112 = vmatprep.subr.mxu0 0.0
      %1113 = vmatpush2.msra.mxu0 %v1046
      %1114 = vmatprep.subr.mxu0 0.0
      %1115 = vmatpush2.msra.mxu0 %v1045
      %1116 = vmatprep.subr.mxu0 0.0
      %1117 = vmatpush2.msra.mxu0 %v1044
      %1118 = vmatprep.subr.mxu0 0.0
      %1119 = vmatpush2.msra.mxu0 %v1043
      %1120 = vmatprep.subr.mxu0 0.0
      %1121 = vmatpush2.msra.mxu0 %v1042
      %1122 = vmatprep.subr.mxu0 0.0
      %1123 = vmatpush2.msra.mxu0 %v1041
      %1124 = vmatprep.subr.mxu0 0.0
      %1125 = vmatpush2.msra.mxu0 %v1040
      %1126 = vmatprep.subr.mxu0 0.0
      %1127 = vmatpush2.msra.mxu0 %v1039
      %1128 = vmatprep.subr.mxu0 0.0
      %1129 = vmatpush2.msra.mxu0 %v1038
      %1130 = vmatprep.mubr.f32.mxu0 %v1065
      %1131 = vmatmul.mubr.f32.gmra.mxu0 %v1059
      %v1132 = vpop.f32.mrf.mxu0
      %v1133 = vadd.f32 0.0, %v1132
      %v1134 = vpop.f32.mrf.mxu0
      %1135 = vdwg.mxu0
      %v1136 = vmul.f32 %v1018, %v1018
      %v1137 = vmul.f32 %v1019, %v1019
      %v1138 = vrot.slane %v1136, 4
      %v1139 = vadd.f32 %v1136, %v1138
      %v1140 = vrot.slane %v1139, 2
      %v1141 = vadd.f32 %v1139, %v1140
      %v1142 = vrot.slane %v1141, 1
      %v1143 = vadd.f32 %v1141, %v1142
      %v1144 = vrot.slane %v1137, 4
      %v1145 = vadd.f32 %v1137, %v1144
      %v1146 = vrot.slane %v1145, 2
      %v1147 = vadd.f32 %v1145, %v1146
      %v1148 = vrot.slane %v1147, 1
      %v1149 = vadd.f32 %v1147, %v1148
      %1150 = vmatprep.subr.mxu0 0.0
      %1151 = vmatpush1.msra.mxu0 %v1037
      %1152 = vmatprep.subr.mxu0 0.0
      %1153 = vmatpush1.msra.mxu0 %v1036
      %1154 = vmatprep.subr.mxu0 0.0
      %1155 = vmatpush1.msra.mxu0 %v1035
      %1156 = vmatprep.subr.mxu0 0.0
      %1157 = vmatpush1.msra.mxu0 %v1034
      %1158 = vmatprep.subr.mxu0 0.0
      %1159 = vmatpush1.msra.mxu0 %v1033
      %1160 = vmatprep.subr.mxu0 0.0
      %1161 = vmatpush1.msra.mxu0 %v1032
      %1162 = vmatprep.subr.mxu0 0.0
      %1163 = vmatpush1.msra.mxu0 %v1031
      %1164 = vmatprep.subr.mxu0 0.0
      %1165 = vmatpush1.msra.mxu0 %v1030
      %1166 = vmatprep.subr.mxu0 0.0
      %1167 = vmatpush1.msra.mxu0 %v1029
      %1168 = vmatprep.subr.mxu0 0.0
      %1169 = vmatpush1.msra.mxu0 %v1028
      %1170 = vmatprep.subr.mxu0 0.0
      %1171 = vmatpush1.msra.mxu0 %v1027
      %1172 = vmatprep.subr.mxu0 0.0
      %1173 = vmatpush1.msra.mxu0 %v1026
      %1174 = vmatprep.subr.mxu0 0.0
      %1175 = vmatpush1.msra.mxu0 %v1025
      %1176 = vmatprep.subr.mxu0 0.0
      %1177 = vmatpush1.msra.mxu0 %v1024
      %1178 = vmatprep.subr.mxu0 0.0
      %1179 = vmatpush1.msra.mxu0 %v1023
      %1180 = vmatprep.subr.mxu0 0.0
      %1181 = vmatpush1.msra.mxu0 %v1022
      %1182 = vmatprep.subr.mxu0 0.0
      %1183 = vmatpush2.msra.mxu0 %v1053
      %1184 = vmatprep.subr.mxu0 0.0
      %1185 = vmatpush2.msra.mxu0 %v1052
      %1186 = vmatprep.subr.mxu0 0.0
      %1187 = vmatpush2.msra.mxu0 %v1051
      %1188 = vmatprep.subr.mxu0 0.0
      %1189 = vmatpush2.msra.mxu0 %v1050
      %1190 = vmatprep.subr.mxu0 0.0
      %1191 = vmatpush2.msra.mxu0 %v1049
      %1192 = vmatprep.subr.mxu0 0.0
      %1193 = vmatpush2.msra.mxu0 %v1048
      %1194 = vmatprep.subr.mxu0 0.0
      %1195 = vmatpush2.msra.mxu0 %v1047
      %1196 = vmatprep.subr.mxu0 0.0
      %1197 = vmatpush2.msra.mxu0 %v1046
      %1198 = vmatprep.subr.mxu0 0.0
      %1199 = vmatpush2.msra.mxu0 %v1045
      %1200 = vmatprep.subr.mxu0 0.0
      %1201 = vmatpush2.msra.mxu0 %v1044
      %1202 = vmatprep.subr.mxu0 0.0
      %1203 = vmatpush2.msra.mxu0 %v1043
      %1204 = vmatprep.subr.mxu0 0.0
      %1205 = vmatpush2.msra.mxu0 %v1042
      %1206 = vmatprep.subr.mxu0 0.0
      %1207 = vmatpush2.msra.mxu0 %v1041
      %1208 = vmatprep.subr.mxu0 0.0
      %1209 = vmatpush2.msra.mxu0 %v1040
      %1210 = vmatprep.subr.mxu0 0.0
      %1211 = vmatpush2.msra.mxu0 %v1039
      %1212 = vmatprep.subr.mxu0 0.0
      %1213 = vmatpush2.msra.mxu0 %v1038
      %1214 = vmatprep.mubr.f32.mxu0 %v1149
      %1215 = vmatmul.mubr.f32.gmra.mxu0 %v1143
      %v1216 = vpop.f32.mrf.mxu0
      %v1217 = vadd.f32 0.0, %v1216
      %v1218 = vpop.f32.mrf.mxu0
      %1219 = vdwg.mxu0
      %v1221 = vrot.slane %v1217, 7
      %v1223 = vsel %vm301, %v1133, %v1221
      %1224 = vst [vmem:[%s262] sm:$0x3] %v1223
      %p1225 = scmp.lt.s32.totalorder %s18, 1
      %s1226 = scalar_select %p1225, %s18, 1
      %s1227 = smul.addr %s1226, 2
      %s1228 = smul.addr %s1227, 8
      %s1229 = scalar_lea.vmem %s5, %s1228
      %p1230 = scmp.lt.s32.totalorder %s18, 1
      %s1231 = scalar_select %p1230, %s18, 1
      %s1232 = smul.addr %s1231, 2
      %s1233 = scalar_lea.vmem %s6, %s1232
      // Predicated region
      $region41: #{residual_forward.4} parent=39 // pred_check
        %p1234 = pneg %p146
      $region42: #{residual_forward.4} parent=39 // pred_check_branch
        %1236 = sbr.rel (%p1234) target = $region44
      $region43: #{residual_forward.4} parent=39 // pred_region
        _
      $region44: #{residual_forward.4} parent=39 // pred_fallthru
        _
      // Predicated region
      $region45: #{residual_forward.4} parent=39 // pred_check
        %p1237 = pneg %p172
      $region46: #{residual_forward.4} parent=39 // pred_check_branch
        %1239 = sbr.rel (%p1237) target = $region48
      $region47: #{residual_forward.4} parent=39 // pred_region
        _
      $region48: #{residual_forward.4} parent=39 // pred_fallthru
        _
    $region40: #{residual_forward.4} parent=5 // pred_fallthru
      _
    %p1240 = scmp.le.s32.totalorder 2, %s13
    // Predicated region
    $region49: #{residual_forward.4} parent=5 // pred_check
      %p1241 = pneg %p1240
    $region50: #{residual_forward.4} parent=5 // pred_check_branch
      %1243 = sbr.rel (%p1241) target = $region52
    $region51: #{residual_forward.4} parent=5 // pred_region
      %s1244 = ssub.s32 %s13, 2
      // Predicated region
      $region53: #{residual_forward.4} parent=51 // pred_check
        %p1245 = pneg %p152
      $region54: #{residual_forward.4} parent=51 // pred_check_branch
        %1247 = sbr.rel (%p1245) target = $region56
      $region55: #{residual_forward.4} parent=51 // pred_region
        %p1248 = scmp.lt.s32.totalorder %s19, 1
        %s1249 = scalar_select %p1248, %s19, 1
        %s1250 = smul.addr %s1249, 2
        %s1251 = smul.addr %s1250, 8
        %s1252 = scalar_lea.vmem %s5, %s1251
      $region56: #{residual_forward.4} parent=51 // pred_fallthru
        _
      // Predicated region
      $region57: #{residual_forward.4} parent=51 // pred_check
        %p1253 = pneg %p178
      $region58: #{residual_forward.4} parent=51 // pred_check_branch
        %1255 = sbr.rel (%p1253) target = $region60
      $region59: #{residual_forward.4} parent=51 // pred_region
        %p1256 = scmp.lt.s32.totalorder %s19, 1
        %s1257 = scalar_select %p1256, %s19, 1
        %s1258 = smul.addr %s1257, 2
        %s1259 = scalar_lea.vmem %s6, %s1258
      $region60: #{residual_forward.4} parent=51 // pred_fallthru
        _
    $region52: #{residual_forward.4} parent=5 // pred_fallthru
      _
  $region6: #{residual_forward.4} parent=0 // loop_footer
    %s17 = sadd.s32 1, %s13
  $region7: #{residual_forward.4} parent=0 // loop_footer_branch
    %12 = sbr.rel target = $region3
  $region8: #{residual_forward.4} parent=0 // loop_exit
    _

// kernel: residual_forward.5
$region0: #{residual_forward.5}
  #allocation0 [shape = 'u32[]', space=smem, size = 0x4, offset = 0x4, fixed_abs, tag = 'smem constant byte address 0x4 - core index']
  #allocation1 [shape = 'u32[144,128]{1,0:T(1,128)}', space=vmem, size = 0x12000, scoped, tag = 'internal scratch']
  %s0 = inlined_call_operand.vmem [shape: f32[16,256], index: 0, kind: input, shape index: {}]
  %s1 = inlined_call_operand.vmem [shape: f32[1,256], index: 1, kind: input, shape index: {}]
  %s2 = inlined_call_operand.vmem [shape: f32[1,256], index: 2, kind: input, shape index: {}]
  %s3 = inlined_call_operand.vmem [shape: f32[16,256], index: 3, kind: input, shape index: {}]
  %s4 = inlined_call_operand.vmem [shape: f32[16,256], index: 4, kind: output, shape index: {}]
  %s5 = sld [smem:[#allocation0]]
  $region49: #{residual_forward.5} parent=0
    _
  %s7 = ssub.s32 1, %s5
  %s8 = scalar_select 0, %s7, %s5
  loop: start=0, step=1, limit=4
  $region2: #{residual_forward.5} parent=0 // loop_pre_header
    _
  $region3: #{residual_forward.5} parent=0 // loop_header
    %s10 = sphi 0, %s14
    %p11 = scmp.ge.s32.totalorder %s10, 4
    %s20 = sphi 0, %s22
    %s23 = sphi 0, %s20
    %s24 = sphi 0, %s23
    %s40 = sphi 0, %s24
    %s44 = sphi 0, %s44
    %s46 = sphi 0, %s44
    %s47 = sphi 0, %s46
    %s61 = sphi 0, %s47
    %s65 = sphi 0, %s65
    %s67 = sphi 0, %s65
    %s68 = sphi 0, %s67
    %s82 = sphi 0, %s68
    %s88 = sphi 0, %s90
    %s91 = sphi 0, %s88
    %s92 = sphi 0, %s91
    %s108 = sphi 0, %s92
    %s114 = sphi 0, %s116
    %s117 = sphi 0, %s114
    %s118 = sphi 0, %s117
    %s134 = sphi 0, %s118
  $region4: #{residual_forward.5} parent=0 // loop_header_branch
    %13 = sbr.rel (%p11) target = $region8
  $region5: #{residual_forward.5} parent=0 // loop_body
    %s15 = ssub.s32 %s10, 1
    %s16 = ssub.s32 %s10, 2
    %s17 = sadd.s32 %s10, 1
    %s18 = ssub.s32 %s10, %s17
    %p19 = scmp.eq.s32.totalorder %s18, 0
    %s21 = sadd.s32 %s20, 1
    %s22 = scalar_select %p19, %s20, %s21
    %p25 = pneg %p19
    %p26 = scmp.eq.s32.totalorder %s10, 1
    %p27 = por %p25, %p26
    %p28 = scmp.ne.s32.totalorder %s20, %s23
    %p29 = scmp.eq.s32.totalorder %s10, 0
    %p30 = por %p28, %p29
    %p31 = scmp.ne.s32.totalorder %s20, %s23
    %p32 = scmp.eq.s32.totalorder %s15, 1
    %p33 = por %p31, %p32
    %p34 = scmp.ne.s32.totalorder %s23, %s24
    %p35 = scmp.eq.s32.totalorder %s15, 0
    %p36 = por %p34, %p35
    %p37 = scmp.ne.s32.totalorder %s23, %s24
    %p38 = scmp.eq.s32.totalorder %s16, 1
    %p39 = por %p37, %p38
    %p41 = scmp.ne.s32.totalorder %s24, %s40
    %p42 = scmp.eq.s32.totalorder %s16, 0
    %p43 = por %p41, %p42
    %s45 = sadd.s32 %s44, 1
    %p48 = scmp.eq.s32.totalorder %s10, 1
    %p49 = scmp.ne.s32.totalorder %s44, %s46
    %p50 = scmp.eq.s32.totalorder %s10, 0
    %p51 = por %p49, %p50
    %p52 = scmp.ne.s32.totalorder %s44, %s46
    %p53 = scmp.eq.s32.totalorder %s15, 1
    %p54 = por %p52, %p53
    %p55 = scmp.ne.s32.totalorder %s46, %s47
    %p56 = scmp.eq.s32.totalorder %s15, 0
    %p57 = por %p55, %p56
    %p58 = scmp.ne.s32.totalorder %s46, %s47
    %p59 = scmp.eq.s32.totalorder %s16, 1
    %p60 = por %p58, %p59
    %p62 = scmp.ne.s32.totalorder %s47, %s61
    %p63 = scmp.eq.s32.totalorder %s16, 0
    %p64 = por %p62, %p63
    %s66 = sadd.s32 %s65, 1
    %p69 = scmp.eq.s32.totalorder %s10, 1
    %p70 = scmp.ne.s32.totalorder %s65, %s67
    %p71 = scmp.eq.s32.totalorder %s10, 0
    %p72 = por %p70, %p71
    %p73 = scmp.ne.s32.totalorder %s65, %s67
    %p74 = scmp.eq.s32.totalorder %s15, 1
    %p75 = por %p73, %p74
    %p76 = scmp.ne.s32.totalorder %s67, %s68
    %p77 = scmp.eq.s32.totalorder %s15, 0
    %p78 = por %p76, %p77
    %p79 = scmp.ne.s32.totalorder %s67, %s68
    %p80 = scmp.eq.s32.totalorder %s16, 1
    %p81 = por %p79, %p80
    %p83 = scmp.ne.s32.totalorder %s68, %s82
    %p84 = scmp.eq.s32.totalorder %s16, 0
    %p85 = por %p83, %p84
    %s86 = ssub.s32 %s10, %s17
    %p87 = scmp.eq.s32.totalorder %s86, 0
    %s89 = sadd.s32 %s88, 1
    %s90 = scalar_select %p87, %s88, %s89
    %p93 = pneg %p87
    %p94 = scmp.eq.s32.totalorder %s10, 1
    %p95 = por %p93, %p94
    %p96 = scmp.ne.s32.totalorder %s88, %s91
    %p97 = scmp.eq.s32.totalorder %s10, 0
    %p98 = por %p96, %p97
    %p99 = scmp.ne.s32.totalorder %s88, %s91
    %p100 = scmp.eq.s32.totalorder %s15, 1
    %p101 = por %p99, %p100
    %p102 = scmp.ne.s32.totalorder %s91, %s92
    %p103 = scmp.eq.s32.totalorder %s15, 0
    %p104 = por %p102, %p103
    %p105 = scmp.ne.s32.totalorder %s91, %s92
    %p106 = scmp.eq.s32.totalorder %s16, 1
    %p107 = por %p105, %p106
    %p109 = scmp.ne.s32.totalorder %s92, %s108
    %p110 = scmp.eq.s32.totalorder %s16, 0
    %p111 = por %p109, %p110
    %s112 = ssub.s32 %s10, %s17
    %p113 = scmp.eq.s32.totalorder %s112, 0
    %s115 = sadd.s32 %s114, 1
    %s116 = scalar_select %p113, %s114, %s115
    %p119 = pneg %p113
    %p120 = scmp.eq.s32.totalorder %s10, 1
    %p121 = por %p119, %p120
    %p122 = scmp.ne.s32.totalorder %s114, %s117
    %p123 = scmp.eq.s32.totalorder %s10, 0
    %p124 = por %p122, %p123
    %p125 = scmp.ne.s32.totalorder %s114, %s117
    %p126 = scmp.eq.s32.totalorder %s15, 1
    %p127 = por %p125, %p126
    %p128 = scmp.ne.s32.totalorder %s117, %s118
    %p129 = scmp.eq.s32.totalorder %s15, 0
    %p130 = por %p128, %p129
    %p131 = scmp.ne.s32.totalorder %s117, %s118
    %p132 = scmp.eq.s32.totalorder %s16, 1
    %p133 = por %p131, %p132
    %p135 = scmp.ne.s32.totalorder %s118, %s134
    %p136 = scmp.eq.s32.totalorder %s16, 0
    %p137 = por %p135, %p136
    %p138 = scmp.le.s32.totalorder 1, %s10
    %p139 = scmp.lt.s32.totalorder %s10, 3
    %p140 = pnand %p138, %p139
    %p141 = pneg %p140
    // Predicated region
    $region9: #{residual_forward.5} parent=5 // pred_check
      _
    $region10: #{residual_forward.5} parent=5 // pred_check_branch
      %143 = sbr.rel (%p140) target = $region12
    $region11: #{residual_forward.5} parent=5 // pred_region
      %s144 = ssub.s32 %s10, 1
      // Predicated region
      $region13: #{residual_forward.5} parent=11 // pred_check
        %p145 = pneg %p57
      $region14: #{residual_forward.5} parent=11 // pred_check_branch
        %147 = sbr.rel (%p145) target = $region16
      $region15: #{residual_forward.5} parent=11 // pred_region
        _
      $region16: #{residual_forward.5} parent=11 // pred_fallthru
        _
      // Predicated region
      $region17: #{residual_forward.5} parent=11 // pred_check
        %p148 = pneg %p78
      $region18: #{residual_forward.5} parent=11 // pred_check_branch
        %150 = sbr.rel (%p148) target = $region20
      $region19: #{residual_forward.5} parent=11 // pred_region
        _
      $region20: #{residual_forward.5} parent=11 // pred_fallthru
        _
    $region12: #{residual_forward.5} parent=5 // pred_fallthru
      _
    %p151 = scmp.lt.s32.totalorder %s10, 2
    // Predicated region
    $region21: #{residual_forward.5} parent=5 // pred_check
      %p152 = pneg %p151
    $region22: #{residual_forward.5} parent=5 // pred_check_branch
      %154 = sbr.rel (%p152) target = $region24
    $region23: #{residual_forward.5} parent=5 // pred_region
      // Predicated region
      $region25: #{residual_forward.5} parent=23 // pred_check
        %p155 = pneg %p30
      $region26: #{residual_forward.5} parent=23 // pred_check_branch
        %157 = sbr.rel (%p155) target = $region28
      $region27: #{residual_forward.5} parent=23 // pred_region
        %p158 = scmp.lt.s32.totalorder %s10, 1
        %s159 = scalar_select %p158, %s10, 1
        %s160 = smul.addr %s159, 2
        %s161 = smul.addr %s160, 8
        %s162 = scalar_lea.vmem %s0, %s161
      $region28: #{residual_forward.5} parent=23 // pred_fallthru
        _
      // Predicated region
      $region29: #{residual_forward.5} parent=23 // pred_check
        %p163 = pneg %p98
      $region30: #{residual_forward.5} parent=23 // pred_check_branch
        %165 = sbr.rel (%p163) target = $region32
      $region31: #{residual_forward.5} parent=23 // pred_region
        %p166 = scmp.lt.s32.totalorder %s10, 1
        %s167 = scalar_select %p166, %s10, 1
        %s168 = smul.addr %s167, 2
        %s169 = smul.addr %s168, 8
        %s170 = scalar_lea.vmem %s3, %s169
      $region32: #{residual_forward.5} parent=23 // pred_fallthru
        _
    $region24: #{residual_forward.5} parent=5 // pred_fallthru
      _
    %p171 = scmp.le.s32.totalorder 1, %s10
    %p172 = scmp.lt.s32.totalorder %s10, 3
    %p173 = pnand %p171, %p172
    %p174 = pneg %p173
    // Predicated region
    $region33: #{residual_forward.5} parent=5 // pred_check
      _
    $region34: #{residual_forward.5} parent=5 // pred_check_branch
      %176 = sbr.rel (%p173) target = $region36
    $region35: #{residual_forward.5} parent=5 // pred_region
      %s177 = ssub.s32 %s10, 1
      %p178 = scmp.lt.s32.totalorder %s15, 1
      %s179 = scalar_select %p178, %s15, 1
      %s180 = smul.addr %s179, 2
      %s181 = smul.addr %s180, 8
      %s182 = scalar_lea.vmem %s0, %s181
      %p183 = pneg %p36
      %p184 = pneg %p33
      %p185 = pneg %p57
      %p186 = pneg %p54
      %p187 = pneg %p78
      %p188 = pneg %p75
      %p189 = scmp.lt.s32.totalorder %s15, 1
      %s190 = scalar_select %p189, %s15, 1
      %s191 = smul.addr %s190, 2
      %s192 = smul.addr %s191, 8
      %s193 = scalar_lea.vmem %s3, %s192
      %p194 = pneg %p104
      %p195 = pneg %p101
      %p196 = pneg %p130
      %p197 = pneg %p127
      %p198 = scmp.lt.s32.totalorder %s15, 1
      %s199 = scalar_select %p198, %s15, 1
      %s200 = smul.addr %s199, 2
      %s201 = smul.addr %s200, 8
      %s202 = scalar_lea.vmem %s4, %s201
      %p203 = scmp.lt.s32.totalorder %s15, 1
      %s204 = scalar_select %p203, %s15, 1
      %s205 = smul.addr %s204, 2
      %s206 = smul.addr %s205, 8
      %s207 = scalar_lea.vmem %s0, %s206
      %p208 = scmp.lt.s32.totalorder %s15, 1
      %s209 = scalar_select %p208, %s15, 1
      %s210 = smul.addr %s209, 2
      %s211 = smul.addr %s210, 8
      %s212 = scalar_lea.vmem %s3, %s211
      %p213 = scmp.lt.s32.totalorder %s15, 1
      %s214 = scalar_select %p213, %s15, 1
      %s215 = smul.addr %s214, 2
      %s216 = smul.addr %s215, 8
      %s217 = scalar_lea.vmem %s4, %s216
      %v218 = vld [vmem:[%s207] sm:$0xff]
      %v219 = vld [vmem:[%s207 + $0x8] sm:$0xff]
      %v220 = vld [vmem:[%s1] sm:$0x3]
      %v222 = vlaneseq
      %v223 = vshrl.u32 %v222, 7
      %v224 = vsub.s32 0, %v223
      %v225 = vrot.slane %v220, %v224
      %v226 = vlaneseq
      %v227 = vshrl.u32 %v226, 7
      %v228 = vsub.s32 1, %v227
      %v229 = vrot.slane %v220, %v228
      %v232 = vmul.f32 %v218, %v225
      %v233 = vmul.f32 %v219, %v229
      %v234 = vld [vmem:[%s2] sm:$0x3]
      %v236 = vlaneseq
      %v237 = vshrl.u32 %v236, 7
      %v238 = vsub.s32 0, %v237
      %v239 = vrot.slane %v234, %v238
      %v240 = vlaneseq
      %v241 = vshrl.u32 %v240, 7
      %v242 = vsub.s32 1, %v241
      %v243 = vrot.slane %v234, %v242
      %v246 = vadd.f32 %v232, %v239
      %v247 = vadd.f32 %v233, %v243
      %v248 = vld [vmem:[%s212] sm:$0xff]
      %v249 = vld [vmem:[%s212 + $0x8] sm:$0xff]
      %v250 = vadd.f32 %v246, %v248
      %v251 = vadd.f32 %v247, %v249
      %v252 = vmax.f32 %v250, 0.0
      %v253 = vmax.f32 %v251, 0.0
      %254 = vst [vmem:[%s217] sm:$0xff] %v252
      %255 = vst [vmem:[%s217 + $0x8] sm:$0xff] %v253
      %p256 = scmp.lt.s32.totalorder %s15, 1
      %s257 = scalar_select %p256, %s15, 1
      %s258 = smul.addr %s257, 2
      %s259 = smul.addr %s258, 8
      %s260 = scalar_lea.vmem %s4, %s259
      // Predicated region
      $region37: #{residual_forward.5} parent=35 // pred_check
        %p261 = pneg %p127
      $region38: #{residual_forward.5} parent=35 // pred_check_branch
        %263 = sbr.rel (%p261) target = $region40
      $region39: #{residual_forward.5} parent=35 // pred_region
        _
      $region40: #{residual_forward.5} parent=35 // pred_fallthru
        _
    $region36: #{residual_forward.5} parent=5 // pred_fallthru
      _
    %p264 = scmp.le.s32.totalorder 2, %s10
    // Predicated region
    $region41: #{residual_forward.5} parent=5 // pred_check
      %p265 = pneg %p264
    $region42: #{residual_forward.5} parent=5 // pred_check_branch
      %267 = sbr.rel (%p265) target = $region44
    $region43: #{residual_forward.5} parent=5 // pred_region
      %s268 = ssub.s32 %s10, 2
      // Predicated region
      $region45: #{residual_forward.5} parent=43 // pred_check
        %p269 = pneg %p133
      $region46: #{residual_forward.5} parent=43 // pred_check_branch
        %271 = sbr.rel (%p269) target = $region48
      $region47: #{residual_forward.5} parent=43 // pred_region
        %p272 = scmp.lt.s32.totalorder %s16, 1
        %s273 = scalar_select %p272, %s16, 1
        %s274 = smul.addr %s273, 2
        %s275 = smul.addr %s274, 8
        %s276 = scalar_lea.vmem %s4, %s275
      $region48: #{residual_forward.5} parent=43 // pred_fallthru
        _
    $region44: #{residual_forward.5} parent=5 // pred_fallthru
      _
  $region6: #{residual_forward.5} parent=0 // loop_footer
    %s14 = sadd.s32 1, %s10
  $region7: #{residual_forward.5} parent=0 // loop_footer_branch
    %9 = sbr.rel target = $region3
  $region8: #{residual_forward.5} parent=0 // loop_exit
    _

</llo_original>
